<compile_context>
chip_gen: v7x
topology: tpu7x:2x2x1
jax: 0.10.0
libtpu: 0.0.40
codegen_flags: <defaults>
</compile_context>

<pallas_src>
import functools

import jax
import jax.numpy as jnp
from jax.experimental import pallas as pl
from jax.experimental.pallas import tpu as pltpu

LATENT_DIM = 20
IN_DIM = 28 * 28          # 784
COND_DIM = 10
HID_DIM = 400
HEAD_DIM = 128            # lane-dense padded width of the fused mu|logvar head


def _round_up(n, m):
    return ((n + m - 1) // m) * m


def vae_fwd_kernel(
    x_ref, y_ref, eps_ref,
    w1x_ref, w1y_ref, b1_ref,
    w2_ref, b2_ref,                # fused fc21|fc22, padded to HEAD_DIM lanes
    w3z_ref, w3y_ref, b3_ref,
    w4_ref, b4_ref,
    recon_ref, mulogvar_ref,
):
    x_bf = x_ref[...]              # [TB, 784] bf16 (cast at the call boundary)
    y = y_ref[...]                 # [TB, 10]  f32
    eps = eps_ref[...]             # [TB, 20]  f32
    y_bf = y.astype(jnp.bfloat16)

    # ---- encode: h1 = relu(cat([x, y]) @ W1 + b1) ----
    h1 = (
        jnp.dot(x_bf, w1x_ref[...], preferred_element_type=jnp.float32)
        + jnp.dot(y_bf, w1y_ref[...], preferred_element_type=jnp.float32)
        + b1_ref[...]
    )
    h1_bf = jnp.maximum(h1, 0.0).astype(jnp.bfloat16)

    # ---- fused fc21|fc22 head: [TB, 128] lane-dense slab = [mu | logvar | 0] ----
    mu_logvar = (
        jnp.dot(h1_bf, w2_ref[...], preferred_element_type=jnp.float32)
        + b2_ref[...]
    )
    mu = mu_logvar[:, :LATENT_DIM]
    logvar = mu_logvar[:, LATENT_DIM:2 * LATENT_DIM]

    # ---- reparameterize: z = mu + eps * exp(0.5 * logvar) ----
    std = jnp.exp(0.5 * logvar)
    z_bf = (mu + eps * std).astype(jnp.bfloat16)

    # ---- decode: h3 = relu(cat([z, y]) @ W3 + b3); recon = sigmoid(h3 @ W4 + b4) ----
    # TODO(synk): optionally fuse the two tiny K<=20 decoder dots into a single
    # zero-padded [32, 400] weight (small MXU drain-overhead win at tiny tb).
    h3 = (
        jnp.dot(z_bf, w3z_ref[...], preferred_element_type=jnp.float32)
        + jnp.dot(y_bf, w3y_ref[...], preferred_element_type=jnp.float32)
        + b3_ref[...]
    )
    h3_bf = jnp.maximum(h3, 0.0).astype(jnp.bfloat16)

    logits = jnp.dot(h3_bf, w4_ref[...], preferred_element_type=jnp.float32) + b4_ref[...]

    # sigmoid = 1 / (1 + exp(-x)): exp and the approx reciprocal both run on the EUP.
    recon = pl.reciprocal(1.0 + jnp.exp(-logits), approx=True)
    recon_ref[...] = recon.astype(jnp.bfloat16)
    mulogvar_ref[...] = mu_logvar


def _batch_spec(tb, feat):
    # Tiled along batch; whole feature axis in one block.
    return pl.BlockSpec((tb, feat), lambda i: (i, 0))


def _const_spec(shape):
    # Weight / bias: one whole-array block, constant across the batch grid
    # (stays VMEM-resident while batch tiles stream through).
    return pl.BlockSpec(shape, lambda i: (0, 0))


@functools.partial(jax.jit, static_argnames=("block_b",))
def vae_forward(x, y, eps, params, *, block_b=512):
    B = x.shape[0]
    # Tile size: multiple of 8 (sublane), capped at block_b.
    tb = min(block_b, _round_up(B, 8))
    # Guarantee >= 2 grid steps when the batch allows it so the "parallel"
    # batch axis can shard across both v7x TensorCores (no-op on v5e/v6e).
    if B > 8 and _round_up(B, tb) // tb < 2:
        tb = _round_up((B + 1) // 2, 8)
    b_pad = _round_up(B, tb)

    x = x.astype(jnp.bfloat16)          # bf16 kernel-boundary input stream
    if b_pad != B:
        pad = ((0, b_pad - B), (0, 0))
        x = jnp.pad(x, pad)
        y = jnp.pad(y, pad)
        eps = jnp.pad(eps, pad)

    weight_keys = ("w1x", "w1y", "b1", "w2", "b2", "w3z", "w3y", "b3", "w4", "b4")
    inputs = (x, y, eps) + tuple(params[k] for k in weight_keys)

    in_specs = [
        _batch_spec(tb, IN_DIM),            # x  (bf16)
        _batch_spec(tb, COND_DIM),          # y  (f32)
        _batch_spec(tb, LATENT_DIM),        # eps (f32)
    ] + [_const_spec(params[k].shape) for k in weight_keys]

    out_shapes = (
        jax.ShapeDtypeStruct((b_pad, IN_DIM), jnp.bfloat16),     # recon (bf16)
        jax.ShapeDtypeStruct((b_pad, HEAD_DIM), jnp.float32),    # [mu|logvar|0]
    )
    out_specs = (
        _batch_spec(tb, IN_DIM),
        _batch_spec(tb, HEAD_DIM),
    )

    weight_bytes = sum(int(params[k].size) * params[k].dtype.itemsize
                       for k in weight_keys)
    io_bytes = b_pad * (
        IN_DIM * 2 + COND_DIM * 4 + LATENT_DIM * 4      # x bf16, y / eps f32 in
        + IN_DIM * 2 + HEAD_DIM * 4                     # recon bf16, mu|logvar f32 out
    )
    flops = 2 * b_pad * (
        (IN_DIM + COND_DIM) * HID_DIM
        + HID_DIM * HEAD_DIM
        + (LATENT_DIM + COND_DIM) * HID_DIM
        + HID_DIM * IN_DIM
    )
    cost = pl.CostEstimate(
        flops=flops,
        transcendentals=b_pad * (2 * IN_DIM + LATENT_DIM),   # sigmoid exp+recip, std exp
        bytes_accessed=weight_bytes + io_bytes,
    )

    recon, mu_logvar = pl.pallas_call(
        vae_fwd_kernel,
        out_shape=out_shapes,
        grid=(b_pad // tb,),
        in_specs=in_specs,
        out_specs=out_specs,
        compiler_params=pltpu.CompilerParams(
            dimension_semantics=("parallel",),
            # Double-buffered bf16 x/recon tiles + resident bf16 weights +
            # f32 h1/h3/logits intermediates fit comfortably in 48 MiB even at
            # tb=1024; explicit so the v5e 16 MiB / default 32 MiB scoped
            # limits don't cap the tile, while leaving headroom on v7x (64 MiB).
            vmem_limit_bytes=48 * 1024 * 1024,
        ),
        cost_estimate=cost,
    )(*inputs)

    recon = recon[:B]
    mu = mu_logvar[:B, :LATENT_DIM]
    logvar = mu_logvar[:B, LATENT_DIM:2 * LATENT_DIM]
    return recon, mu, logvar


def init_params(key):
    """Deterministic init mimicking nn.Linear: U(-1/sqrt(fan_in), 1/sqrt(fan_in)).

    Weights are stored pre-transposed as [in_features, out_features] in bf16
    (MXU-friendly); biases stay f32.  The concatenated-input layers (fc1, fc3)
    are split into per-source weight blocks; fc21/fc22 are fused into a single
    weight zero-padded to HEAD_DIM output lanes for a lane-dense head store.
    """
    def linear(key, fan_in, fan_out):
        kw, kb = jax.random.split(key)
        bound = 1.0 / jnp.sqrt(fan_in)
        w = jax.random.uniform(kw, (fan_in, fan_out), jnp.float32, -bound, bound)
        b = jax.random.uniform(kb, (1, fan_out), jnp.float32, -bound, bound)
        return w, b

    k1, k21, k22, k3, k4 = jax.random.split(key, 5)

    w1, b1 = linear(k1, IN_DIM + COND_DIM, HID_DIM)          # fc1 : 794 -> 400
    w21, b21 = linear(k21, HID_DIM, LATENT_DIM)              # fc21: 400 -> 20
    w22, b22 = linear(k22, HID_DIM, LATENT_DIM)              # fc22: 400 -> 20
    w3, b3 = linear(k3, LATENT_DIM + COND_DIM, HID_DIM)      # fc3 :  30 -> 400
    w4, b4 = linear(k4, HID_DIM, IN_DIM)                     # fc4 : 400 -> 784

    head_pad = ((0, 0), (0, HEAD_DIM - 2 * LATENT_DIM))
    w2 = jnp.pad(jnp.concatenate([w21, w22], axis=1), head_pad)   # [400, 128]
    b2 = jnp.pad(jnp.concatenate([b21, b22], axis=1), head_pad)   # [1, 128]

    bf16 = jnp.bfloat16
    return {
        "w1x": w1[:IN_DIM].astype(bf16),
        "w1y": w1[IN_DIM:].astype(bf16),
        "b1": b1,
        "w2": w2.astype(bf16),
        "b2": b2,
        "w3z": w3[:LATENT_DIM].astype(bf16),
        "w3y": w3[LATENT_DIM:].astype(bf16),
        "b3": b3,
        "w4": w4.astype(bf16),
        "b4": b4,
    }


def vae_reference(x, y, eps, params):
    """Pure-JAX reference with the same bf16 weight / activation casting."""
    xb = x.astype(jnp.bfloat16)
    yb = y.astype(jnp.bfloat16)
    h1 = jnp.maximum(
        jnp.dot(xb, params["w1x"], preferred_element_type=jnp.float32)
        + jnp.dot(yb, params["w1y"], preferred_element_type=jnp.float32)
        + params["b1"], 0.0)
    ml = (jnp.dot(h1.astype(jnp.bfloat16), params["w2"],
                  preferred_element_type=jnp.float32) + params["b2"])
    mu = ml[:, :LATENT_DIM]
    logvar = ml[:, LATENT_DIM:2 * LATENT_DIM]
    z = mu + eps * jnp.exp(0.5 * logvar)
    h3 = jnp.maximum(
        jnp.dot(z.astype(jnp.bfloat16), params["w3z"],
                preferred_element_type=jnp.float32)
        + jnp.dot(yb, params["w3y"], preferred_element_type=jnp.float32)
        + params["b3"], 0.0)
    logits = (jnp.dot(h3.astype(jnp.bfloat16), params["w4"],
                      preferred_element_type=jnp.float32) + params["b4"])
    return jax.nn.sigmoid(logits), mu, logvar


if __name__ == "__main__":
    key = jax.random.PRNGKey(0)
    kp, kx, ky, keps = jax.random.split(key, 4)

    B = 8
    params = init_params(kp)
    x = jax.random.uniform(kx, (B, IN_DIM), jnp.float32)          # flattened 28x28 images
    y_idx = jax.random.randint(ky, (B,), 0, COND_DIM)
    y = jax.nn.one_hot(y_idx, COND_DIM, dtype=jnp.float32)        # class conditioning
    eps = jax.random.normal(keps, (B, LATENT_DIM), jnp.float32)   # torch.randn_like(std)

    recon, mu, logvar = vae_forward(x, y, eps, params)
    jax.block_until_ready((recon, mu, logvar))

    assert recon.shape == (B, IN_DIM)
    assert mu.shape == (B, LATENT_DIM)
    assert logvar.shape == (B, LATENT_DIM)
    assert bool(jnp.all(jnp.isfinite(recon.astype(jnp.float32))))
    assert bool(jnp.all((recon >= 0.0) & (recon <= 1.0)))

    # Tolerance check against a pure-JAX reference (bf16 weights; recon is bf16
    # and uses the approx-EUP reciprocal, so it is compared loosely).
    r_ref, mu_ref, lv_ref = vae_reference(x, y, eps, params)
    assert float(jnp.max(jnp.abs(mu - mu_ref))) < 5e-3
    assert float(jnp.max(jnp.abs(logvar - lv_ref))) < 5e-3
    assert float(jnp.max(jnp.abs(recon.astype(jnp.float32) - r_ref))) < 5e-2

    print("KERNEL_OK")
</pallas_src>

<mosaic_0001>
module attributes {stable_mosaic.version = 11 : i64} {
  func.func @vae_fwd_kernel(%arg0: i32, %arg1: memref<8x784xbf16, #tpu.memory_space<vmem>>, %arg2: memref<8x10xf32, #tpu.memory_space<vmem>>, %arg3: memref<8x20xf32, #tpu.memory_space<vmem>>, %arg4: memref<784x400xbf16, #tpu.memory_space<vmem>>, %arg5: memref<10x400xbf16, #tpu.memory_space<vmem>>, %arg6: memref<1x400xf32, #tpu.memory_space<vmem>>, %arg7: memref<400x128xbf16, #tpu.memory_space<vmem>>, %arg8: memref<1x128xf32, #tpu.memory_space<vmem>>, %arg9: memref<20x400xbf16, #tpu.memory_space<vmem>>, %arg10: memref<10x400xbf16, #tpu.memory_space<vmem>>, %arg11: memref<1x400xf32, #tpu.memory_space<vmem>>, %arg12: memref<400x784xbf16, #tpu.memory_space<vmem>>, %arg13: memref<1x784xf32, #tpu.memory_space<vmem>>, %arg14: memref<8x784xbf16, #tpu.memory_space<vmem>>, %arg15: memref<8x128xf32, #tpu.memory_space<vmem>>) attributes {dimension_semantics = [#tpu.dimension_semantics<parallel>], iteration_bounds = array<i64: 1>, scalar_prefetch = 0 : i64, scratch_operands = 0 : i64, tpu.core_type = #tpu.core_type<tc>, window_params = [{transform_indices = @transform_0, window_bounds = array<i64: 8, 784>}, {transform_indices = @transform_1, window_bounds = array<i64: 8, 10>}, {transform_indices = @transform_2, window_bounds = array<i64: 8, 20>}, {pipeline_mode = #tpu.pipeline_mode<synchronous>, transform_indices = @transform_3, window_bounds = array<i64: 784, 400>}, {pipeline_mode = #tpu.pipeline_mode<synchronous>, transform_indices = @transform_4, window_bounds = array<i64: 10, 400>}, {pipeline_mode = #tpu.pipeline_mode<synchronous>, transform_indices = @transform_5, window_bounds = array<i64: 1, 400>}, {pipeline_mode = #tpu.pipeline_mode<synchronous>, transform_indices = @transform_6, window_bounds = array<i64: 400, 128>}, {pipeline_mode = #tpu.pipeline_mode<synchronous>, transform_indices = @transform_7, window_bounds = array<i64: 1, 128>}, {pipeline_mode = #tpu.pipeline_mode<synchronous>, transform_indices = @transform_8, window_bounds = array<i64: 20, 400>}, {pipeline_mode = #tpu.pipeline_mode<synchronous>, transform_indices = @transform_9, window_bounds = array<i64: 10, 400>}, {pipeline_mode = #tpu.pipeline_mode<synchronous>, transform_indices = @transform_10, window_bounds = array<i64: 1, 400>}, {pipeline_mode = #tpu.pipeline_mode<synchronous>, transform_indices = @transform_11, window_bounds = array<i64: 400, 784>}, {pipeline_mode = #tpu.pipeline_mode<synchronous>, transform_indices = @transform_12, window_bounds = array<i64: 1, 784>}, {transform_indices = @transform_13, window_bounds = array<i64: 8, 784>}, {transform_indices = @transform_14, window_bounds = array<i64: 8, 128>}]} {
    %c0 = arith.constant 0 : index
    %c0_0 = arith.constant 0 : index
    %0 = vector.load %arg1[%c0, %c0_0] : memref<8x784xbf16, #tpu.memory_space<vmem>>, vector<8x784xbf16>
    %c0_1 = arith.constant 0 : index
    %c0_2 = arith.constant 0 : index
    %1 = vector.load %arg2[%c0_1, %c0_2] : memref<8x10xf32, #tpu.memory_space<vmem>>, vector<8x10xf32>
    %c0_3 = arith.constant 0 : index
    %c0_4 = arith.constant 0 : index
    %2 = vector.load %arg3[%c0_3, %c0_4] : memref<8x20xf32, #tpu.memory_space<vmem>>, vector<8x20xf32>
    %3 = arith.truncf %1 : vector<8x10xf32> to vector<8x10xbf16>
    %c0_5 = arith.constant 0 : index
    %c0_6 = arith.constant 0 : index
    %4 = vector.load %arg4[%c0_5, %c0_6] : memref<784x400xbf16, #tpu.memory_space<vmem>>, vector<784x400xbf16>
    %cst = arith.constant dense<0.000000e+00> : vector<8x400xf32>
    %5 = tpu.matmul %0, %4, %cst {dimension_numbers = #tpu.dot_dimension_numbers<[1], [0], [0], [1], [0, 0, 1, 1], [], []>} : vector<8x784xbf16>, vector<784x400xbf16>, vector<8x400xf32> -> vector<8x400xf32>
    %c0_7 = arith.constant 0 : index
    %c0_8 = arith.constant 0 : index
    %6 = vector.load %arg5[%c0_7, %c0_8] : memref<10x400xbf16, #tpu.memory_space<vmem>>, vector<10x400xbf16>
    %cst_9 = arith.constant dense<0.000000e+00> : vector<8x400xf32>
    %7 = tpu.matmul %3, %6, %cst_9 {dimension_numbers = #tpu.dot_dimension_numbers<[1], [0], [0], [1], [0, 0, 1, 1], [], []>} : vector<8x10xbf16>, vector<10x400xbf16>, vector<8x400xf32> -> vector<8x400xf32>
    %8 = arith.addf %5, %7 : vector<8x400xf32>
    %c0_10 = arith.constant 0 : index
    %c0_11 = arith.constant 0 : index
    %9 = vector.load %arg6[%c0_10, %c0_11] : memref<1x400xf32, #tpu.memory_space<vmem>>, vector<1x400xf32>
    %10 = vector.broadcast %9 : vector<1x400xf32> to vector<8x400xf32>
    %11 = arith.addf %8, %10 : vector<8x400xf32>
    %cst_12 = arith.constant 0.000000e+00 : f32
    %12 = vector.broadcast %cst_12 : f32 to vector<8x400xf32>
    %13 = arith.maximumf %11, %12 : vector<8x400xf32>
    %14 = arith.truncf %13 : vector<8x400xf32> to vector<8x400xbf16>
    %c0_13 = arith.constant 0 : index
    %c0_14 = arith.constant 0 : index
    %15 = vector.load %arg7[%c0_13, %c0_14] : memref<400x128xbf16, #tpu.memory_space<vmem>>, vector<400x128xbf16>
    %cst_15 = arith.constant dense<0.000000e+00> : vector<8x128xf32>
    %16 = tpu.matmul %14, %15, %cst_15 {dimension_numbers = #tpu.dot_dimension_numbers<[1], [0], [0], [1], [0, 0, 1, 1], [], []>} : vector<8x400xbf16>, vector<400x128xbf16>, vector<8x128xf32> -> vector<8x128xf32>
    %c0_16 = arith.constant 0 : index
    %c0_17 = arith.constant 0 : index
    %17 = vector.load %arg8[%c0_16, %c0_17] : memref<1x128xf32, #tpu.memory_space<vmem>>, vector<1x128xf32>
    %18 = vector.broadcast %17 : vector<1x128xf32> to vector<8x128xf32>
    %19 = arith.addf %16, %18 : vector<8x128xf32>
    %20 = vector.extract_strided_slice %19 {offsets = [0, 0], sizes = [8, 20], strides = [1, 1]} : vector<8x128xf32> to vector<8x20xf32>
    %21 = vector.extract_strided_slice %19 {offsets = [0, 20], sizes = [8, 20], strides = [1, 1]} : vector<8x128xf32> to vector<8x20xf32>
    %cst_18 = arith.constant 5.000000e-01 : f32
    %22 = vector.broadcast %cst_18 : f32 to vector<8x20xf32>
    %23 = arith.mulf %22, %21 : vector<8x20xf32>
    %24 = math.exp %23 : vector<8x20xf32>
    %25 = arith.mulf %2, %24 : vector<8x20xf32>
    %26 = arith.addf %20, %25 : vector<8x20xf32>
    %27 = arith.truncf %26 : vector<8x20xf32> to vector<8x20xbf16>
    %c0_19 = arith.constant 0 : index
    %c0_20 = arith.constant 0 : index
    %28 = vector.load %arg9[%c0_19, %c0_20] : memref<20x400xbf16, #tpu.memory_space<vmem>>, vector<20x400xbf16>
    %cst_21 = arith.constant dense<0.000000e+00> : vector<8x400xf32>
    %29 = tpu.matmul %27, %28, %cst_21 {dimension_numbers = #tpu.dot_dimension_numbers<[1], [0], [0], [1], [0, 0, 1, 1], [], []>} : vector<8x20xbf16>, vector<20x400xbf16>, vector<8x400xf32> -> vector<8x400xf32>
    %c0_22 = arith.constant 0 : index
    %c0_23 = arith.constant 0 : index
    %30 = vector.load %arg10[%c0_22, %c0_23] : memref<10x400xbf16, #tpu.memory_space<vmem>>, vector<10x400xbf16>
    %cst_24 = arith.constant dense<0.000000e+00> : vector<8x400xf32>
    %31 = tpu.matmul %3, %30, %cst_24 {dimension_numbers = #tpu.dot_dimension_numbers<[1], [0], [0], [1], [0, 0, 1, 1], [], []>} : vector<8x10xbf16>, vector<10x400xbf16>, vector<8x400xf32> -> vector<8x400xf32>
    %32 = arith.addf %29, %31 : vector<8x400xf32>
    %c0_25 = arith.constant 0 : index
    %c0_26 = arith.constant 0 : index
    %33 = vector.load %arg11[%c0_25, %c0_26] : memref<1x400xf32, #tpu.memory_space<vmem>>, vector<1x400xf32>
    %34 = vector.broadcast %33 : vector<1x400xf32> to vector<8x400xf32>
    %35 = arith.addf %32, %34 : vector<8x400xf32>
    %cst_27 = arith.constant 0.000000e+00 : f32
    %36 = vector.broadcast %cst_27 : f32 to vector<8x400xf32>
    %37 = arith.maximumf %35, %36 : vector<8x400xf32>
    %38 = arith.truncf %37 : vector<8x400xf32> to vector<8x400xbf16>
    %c0_28 = arith.constant 0 : index
    %c0_29 = arith.constant 0 : index
    %39 = vector.load %arg12[%c0_28, %c0_29] : memref<400x784xbf16, #tpu.memory_space<vmem>>, vector<400x784xbf16>
    %cst_30 = arith.constant dense<0.000000e+00> : vector<8x784xf32>
    %40 = tpu.matmul %38, %39, %cst_30 {dimension_numbers = #tpu.dot_dimension_numbers<[1], [0], [0], [1], [0, 0, 1, 1], [], []>} : vector<8x400xbf16>, vector<400x784xbf16>, vector<8x784xf32> -> vector<8x784xf32>
    %c0_31 = arith.constant 0 : index
    %c0_32 = arith.constant 0 : index
    %41 = vector.load %arg13[%c0_31, %c0_32] : memref<1x784xf32, #tpu.memory_space<vmem>>, vector<1x784xf32>
    %42 = vector.broadcast %41 : vector<1x784xf32> to vector<8x784xf32>
    %43 = arith.addf %40, %42 : vector<8x784xf32>
    %cst_33 = arith.constant 0.000000e+00 : f32
    %44 = vector.broadcast %cst_33 : f32 to vector<8x784xf32>
    %45 = arith.subf %44, %43 : vector<8x784xf32>
    %46 = math.exp %45 : vector<8x784xf32>
    %cst_34 = arith.constant 1.000000e+00 : f32
    %47 = vector.broadcast %cst_34 : f32 to vector<8x784xf32>
    %48 = arith.addf %47, %46 : vector<8x784xf32>
    %49 = tpu.reciprocal %48 {approx = true} : vector<8x784xf32> -> vector<8x784xf32>
    %50 = arith.truncf %49 : vector<8x784xf32> to vector<8x784xbf16>
    %c0_35 = arith.constant 0 : index
    %c0_36 = arith.constant 0 : index
    %51 = vector.load %arg14[%c0_35, %c0_36] : memref<8x784xbf16, #tpu.memory_space<vmem>>, vector<8x784xbf16>
    tpu.vector_store %arg14[%c0_35, %c0_36], %50 {strides = array<i32>} : memref<8x784xbf16, #tpu.memory_space<vmem>>, vector<8x784xbf16>,
    %c0_37 = arith.constant 0 : index
    %c0_38 = arith.constant 0 : index
    %52 = vector.load %arg15[%c0_37, %c0_38] : memref<8x128xf32, #tpu.memory_space<vmem>>, vector<8x128xf32>
    tpu.vector_store %arg15[%c0_37, %c0_38], %19 {strides = array<i32>} : memref<8x128xf32, #tpu.memory_space<vmem>>, vector<8x128xf32>,
    return
  }
  func.func @transform_0(%arg0: i32) -> (i32, i32) {
    %c0_i32 = arith.constant 0 : i32
    %c0_i32_0 = arith.constant 0 : i32
    return %arg0, %c0_i32 : i32, i32
  }
  func.func @transform_1(%arg0: i32) -> (i32, i32) {
    %c0_i32 = arith.constant 0 : i32
    %c0_i32_0 = arith.constant 0 : i32
    return %arg0, %c0_i32 : i32, i32
  }
  func.func @transform_2(%arg0: i32) -> (i32, i32) {
    %c0_i32 = arith.constant 0 : i32
    %c0_i32_0 = arith.constant 0 : i32
    return %arg0, %c0_i32 : i32, i32
  }
  func.func @transform_3(%arg0: i32) -> (i32, i32) {
    %c0_i32 = arith.constant 0 : i32
    %c0_i32_0 = arith.constant 0 : i32
    %c0_i32_1 = arith.constant 0 : i32
    return %c0_i32, %c0_i32_0 : i32, i32
  }
  func.func @transform_4(%arg0: i32) -> (i32, i32) {
    %c0_i32 = arith.constant 0 : i32
    %c0_i32_0 = arith.constant 0 : i32
    %c0_i32_1 = arith.constant 0 : i32
    return %c0_i32, %c0_i32_0 : i32, i32
  }
  func.func @transform_5(%arg0: i32) -> (i32, i32) {
    %c0_i32 = arith.constant 0 : i32
    %c0_i32_0 = arith.constant 0 : i32
    %c0_i32_1 = arith.constant 0 : i32
    return %c0_i32, %c0_i32_0 : i32, i32
  }
  func.func @transform_6(%arg0: i32) -> (i32, i32) {
    %c0_i32 = arith.constant 0 : i32
    %c0_i32_0 = arith.constant 0 : i32
    %c0_i32_1 = arith.constant 0 : i32
    return %c0_i32, %c0_i32_0 : i32, i32
  }
  func.func @transform_7(%arg0: i32) -> (i32, i32) {
    %c0_i32 = arith.constant 0 : i32
    %c0_i32_0 = arith.constant 0 : i32
    %c0_i32_1 = arith.constant 0 : i32
    return %c0_i32, %c0_i32_0 : i32, i32
  }
  func.func @transform_8(%arg0: i32) -> (i32, i32) {
    %c0_i32 = arith.constant 0 : i32
    %c0_i32_0 = arith.constant 0 : i32
    %c0_i32_1 = arith.constant 0 : i32
    return %c0_i32, %c0_i32_0 : i32, i32
  }
  func.func @transform_9(%arg0: i32) -> (i32, i32) {
    %c0_i32 = arith.constant 0 : i32
    %c0_i32_0 = arith.constant 0 : i32
    %c0_i32_1 = arith.constant 0 : i32
    return %c0_i32, %c0_i32_0 : i32, i32
  }
  func.func @transform_10(%arg0: i32) -> (i32, i32) {
    %c0_i32 = arith.constant 0 : i32
    %c0_i32_0 = arith.constant 0 : i32
    %c0_i32_1 = arith.constant 0 : i32
    return %c0_i32, %c0_i32_0 : i32, i32
  }
  func.func @transform_11(%arg0: i32) -> (i32, i32) {
    %c0_i32 = arith.constant 0 : i32
    %c0_i32_0 = arith.constant 0 : i32
    %c0_i32_1 = arith.constant 0 : i32
    return %c0_i32, %c0_i32_0 : i32, i32
  }
  func.func @transform_12(%arg0: i32) -> (i32, i32) {
    %c0_i32 = arith.constant 0 : i32
    %c0_i32_0 = arith.constant 0 : i32
    %c0_i32_1 = arith.constant 0 : i32
    return %c0_i32, %c0_i32_0 : i32, i32
  }
  func.func @transform_13(%arg0: i32) -> (i32, i32) {
    %c0_i32 = arith.constant 0 : i32
    %c0_i32_0 = arith.constant 0 : i32
    return %arg0, %c0_i32 : i32, i32
  }
  func.func @transform_14(%arg0: i32) -> (i32, i32) {
    %c0_i32 = arith.constant 0 : i32
    %c0_i32_0 = arith.constant 0 : i32
    return %arg0, %c0_i32 : i32, i32
  }
}

</mosaic_0001>

<llo_original>
// kernel: vae_forward.1
$region0: #{vae_forward.1}
  #allocation0 [shape = 'u32[]', space=smem, size = 0x4, offset = 0x4, fixed_abs, tag = 'smem constant byte address 0x4 - core index']
  #allocation1 [shape = 'u32[144,128]{1,0:T(1,128)}', space=vmem, size = 0x12000, scoped, tag = 'internal scratch']
  %s0 = inlined_call_operand.vmem [shape: bf16[8,784], index: 0, kind: input, shape index: {}]
  %s1 = inlined_call_operand.vmem [shape: f32[8,10], index: 1, kind: input, shape index: {}]
  %s2 = inlined_call_operand.vmem [shape: f32[8,20], index: 2, kind: input, shape index: {}]
  %s3 = inlined_call_operand.vmem [shape: bf16[784,400], index: 3, kind: input, shape index: {}]
  %s4 = inlined_call_operand.vmem [shape: bf16[10,400], index: 4, kind: input, shape index: {}]
  %s5 = inlined_call_operand.vmem [shape: f32[1,400], index: 5, kind: input, shape index: {}]
  %s6 = inlined_call_operand.vmem [shape: bf16[400,128], index: 6, kind: input, shape index: {}]
  %s7 = inlined_call_operand.vmem [shape: f32[1,128], index: 7, kind: input, shape index: {}]
  %s8 = inlined_call_operand.vmem [shape: bf16[20,400], index: 8, kind: input, shape index: {}]
  %s9 = inlined_call_operand.vmem [shape: bf16[10,400], index: 9, kind: input, shape index: {}]
  %s10 = inlined_call_operand.vmem [shape: f32[1,400], index: 10, kind: input, shape index: {}]
  %s11 = inlined_call_operand.vmem [shape: bf16[400,784], index: 11, kind: input, shape index: {}]
  %s12 = inlined_call_operand.vmem [shape: f32[1,784], index: 12, kind: input, shape index: {}]
  %s13 = inlined_call_operand.hbm [shape: bf16[8,784], index: 13, kind: output, shape index: {0}]
  %s14 = inlined_call_operand.vmem [shape: f32[8,128], index: 14, kind: output, shape index: {1}]
  %15 = xla_tuple %s13, %s14
  %s16 = sld [smem:[#allocation0]]
  $region70: #{vae_forward.1} parent=0
    _
  %s18 = ssub.s32 1, %s16
  %s19 = scalar_select 0, %s18, %s16
  $region1: #{vae_forward.1} parent=0
    #allocation2 [shape = 'u8[14336]{0}', space=vmem, size = 0x3800, scoped, tag = 'output window, operand 0, single buffered']
    #allocation3 [shape = 's32[1]{0}', space=sflag, size = 0x4, scoped, tag = 'scoped memory for vae_forward.1']
    %20 = vsyncpa [#allocation3], 0
    // Predicated region
    $region2: #{vae_forward.1} parent=1 // pred_check
      _
    $region3: #{vae_forward.1} parent=1 // pred_check_branch
      %22 = sbr.rel (0) target = $region5
    $region4: #{vae_forward.1} parent=1 // pred_region
      _
    $region5: #{vae_forward.1} parent=1 // pred_fallthru
      _
    // Predicated region
    $region6: #{vae_forward.1} parent=1 // pred_check
      _
    $region7: #{vae_forward.1} parent=1 // pred_check_branch
      %24 = sbr.rel (0) target = $region9
    $region8: #{vae_forward.1} parent=1 // pred_region
      _
    $region9: #{vae_forward.1} parent=1 // pred_fallthru
      _
    // Predicated region
    $region10: #{vae_forward.1} parent=1 // pred_check
      _
    $region11: #{vae_forward.1} parent=1 // pred_check_branch
      %26 = sbr.rel (0) target = $region13
    $region12: #{vae_forward.1} parent=1 // pred_region
      _
    $region13: #{vae_forward.1} parent=1 // pred_fallthru
      _
    // Predicated region
    $region14: #{vae_forward.1} parent=1 // pred_check
      _
    $region15: #{vae_forward.1} parent=1 // pred_check_branch
      %28 = sbr.rel (0) target = $region17
    $region16: #{vae_forward.1} parent=1 // pred_region
      _
    $region17: #{vae_forward.1} parent=1 // pred_fallthru
      _
    // Predicated region
    $region18: #{vae_forward.1} parent=1 // pred_check
      _
    $region19: #{vae_forward.1} parent=1 // pred_check_branch
      %30 = sbr.rel (0) target = $region21
    $region20: #{vae_forward.1} parent=1 // pred_region
      _
    $region21: #{vae_forward.1} parent=1 // pred_fallthru
      _
    // Predicated region
    $region22: #{vae_forward.1} parent=1 // pred_check
      _
    $region23: #{vae_forward.1} parent=1 // pred_check_branch
      %32 = sbr.rel (0) target = $region25
    $region24: #{vae_forward.1} parent=1 // pred_region
      _
    $region25: #{vae_forward.1} parent=1 // pred_fallthru
      _
    // Predicated region
    $region26: #{vae_forward.1} parent=1 // pred_check
      _
    $region27: #{vae_forward.1} parent=1 // pred_check_branch
      %34 = sbr.rel (0) target = $region29
    $region28: #{vae_forward.1} parent=1 // pred_region
      _
    $region29: #{vae_forward.1} parent=1 // pred_fallthru
      _
    // Predicated region
    $region30: #{vae_forward.1} parent=1 // pred_check
      _
    $region31: #{vae_forward.1} parent=1 // pred_check_branch
      %36 = sbr.rel (0) target = $region33
    $region32: #{vae_forward.1} parent=1 // pred_region
      _
    $region33: #{vae_forward.1} parent=1 // pred_fallthru
      _
    // Predicated region
    $region34: #{vae_forward.1} parent=1 // pred_check
      _
    $region35: #{vae_forward.1} parent=1 // pred_check_branch
      %38 = sbr.rel (0) target = $region37
    $region36: #{vae_forward.1} parent=1 // pred_region
      _
    $region37: #{vae_forward.1} parent=1 // pred_fallthru
      _
    // Predicated region
    $region38: #{vae_forward.1} parent=1 // pred_check
      _
    $region39: #{vae_forward.1} parent=1 // pred_check_branch
      %40 = sbr.rel (0) target = $region41
    $region40: #{vae_forward.1} parent=1 // pred_region
      _
    $region41: #{vae_forward.1} parent=1 // pred_fallthru
      _
    // Predicated region
    $region42: #{vae_forward.1} parent=1 // pred_check
      _
    $region43: #{vae_forward.1} parent=1 // pred_check_branch
      %42 = sbr.rel (0) target = $region45
    $region44: #{vae_forward.1} parent=1 // pred_region
      _
    $region45: #{vae_forward.1} parent=1 // pred_fallthru
      _
    // Predicated region
    $region46: #{vae_forward.1} parent=1 // pred_check
      _
    $region47: #{vae_forward.1} parent=1 // pred_check_branch
      %44 = sbr.rel (0) target = $region49
    $region48: #{vae_forward.1} parent=1 // pred_region
      _
    $region49: #{vae_forward.1} parent=1 // pred_fallthru
      _
    // Predicated region
    $region50: #{vae_forward.1} parent=1 // pred_check
      _
    $region51: #{vae_forward.1} parent=1 // pred_check_branch
      %46 = sbr.rel (0) target = $region53
    $region52: #{vae_forward.1} parent=1 // pred_region
      _
    $region53: #{vae_forward.1} parent=1 // pred_fallthru
      _
    %v48 = vld [vmem:[%s0] sm:$0xff]
    %v49 = vld [vmem:[%s0 + $0x8] sm:$0xff]
    %v50 = vld [vmem:[%s0 + $0x10] sm:$0xff]
    %v51 = vld [vmem:[%s0 + $0x18] sm:$0xf]
    %v52 = vld [vmem:[%s1] sm:$0xff]
    %v53 = vld [vmem:[%s2] sm:$0xff]
    %v54 = vpack.c.bf16 %v52, %v52
    %v55 = vld [vmem:[%s3] sm:$0xff]
    %v56 = vld [vmem:[%s3 + $0x8] sm:$0xff]
    %v57 = vld [vmem:[%s3 + $0x10] sm:$0xff]
    %v58 = vld [vmem:[%s3 + $0x18] sm:$0xff]
    %v59 = vld [vmem:[%s3 + $0x20] sm:$0xff]
    %v60 = vld [vmem:[%s3 + $0x28] sm:$0xff]
    %v61 = vld [vmem:[%s3 + $0x30] sm:$0xff]
    %v62 = vld [vmem:[%s3 + $0x38] sm:$0xff]
    %v63 = vld [vmem:[%s3 + $0x40] sm:$0xff]
    %v64 = vld [vmem:[%s3 + $0x48] sm:$0xff]
    %v65 = vld [vmem:[%s3 + $0x50] sm:$0xff]
    %v66 = vld [vmem:[%s3 + $0x58] sm:$0xff]
    %v67 = vld [vmem:[%s3 + $0x60] sm:$0xff]
    %v68 = vld [vmem:[%s3 + $0x68] sm:$0xff]
    %v69 = vld [vmem:[%s3 + $0x70] sm:$0xff]
    %v70 = vld [vmem:[%s3 + $0x78] sm:$0xff]
    %v71 = vld [vmem:[%s3 + $0x80] sm:$0xff]
    %v72 = vld [vmem:[%s3 + $0x88] sm:$0xff]
    %v73 = vld [vmem:[%s3 + $0x90] sm:$0xff]
    %v74 = vld [vmem:[%s3 + $0x98] sm:$0xff]
    %v75 = vld [vmem:[%s3 + $0xa0] sm:$0xff]
    %v76 = vld [vmem:[%s3 + $0xa8] sm:$0xff]
    %v77 = vld [vmem:[%s3 + $0xb0] sm:$0xff]
    %v78 = vld [vmem:[%s3 + $0xb8] sm:$0xff]
    %v79 = vld [vmem:[%s3 + $0xc0] sm:$0xff]
    %v80 = vld [vmem:[%s3 + $0xc8] sm:$0xff]
    %v81 = vld [vmem:[%s3 + $0xd0] sm:$0xff]
    %v82 = vld [vmem:[%s3 + $0xd8] sm:$0xff]
    %v83 = vld [vmem:[%s3 + $0xe0] sm:$0xff]
    %v84 = vld [vmem:[%s3 + $0xe8] sm:$0xff]
    %v85 = vld [vmem:[%s3 + $0xf0] sm:$0xff]
    %v86 = vld [vmem:[%s3 + $0xf8] sm:$0xff]
    %v87 = vld [vmem:[%s3 + $0x100] sm:$0xff]
    %v88 = vld [vmem:[%s3 + $0x108] sm:$0xff]
    %v89 = vld [vmem:[%s3 + $0x110] sm:$0xff]
    %v90 = vld [vmem:[%s3 + $0x118] sm:$0xff]
    %v91 = vld [vmem:[%s3 + $0x120] sm:$0xff]
    %v92 = vld [vmem:[%s3 + $0x128] sm:$0xff]
    %v93 = vld [vmem:[%s3 + $0x130] sm:$0xff]
    %v94 = vld [vmem:[%s3 + $0x138] sm:$0xff]
    %v95 = vld [vmem:[%s3 + $0x140] sm:$0xff]
    %v96 = vld [vmem:[%s3 + $0x148] sm:$0xff]
    %v97 = vld [vmem:[%s3 + $0x150] sm:$0xff]
    %v98 = vld [vmem:[%s3 + $0x158] sm:$0xff]
    %v99 = vld [vmem:[%s3 + $0x160] sm:$0xff]
    %v100 = vld [vmem:[%s3 + $0x168] sm:$0xff]
    %v101 = vld [vmem:[%s3 + $0x170] sm:$0xff]
    %v102 = vld [vmem:[%s3 + $0x178] sm:$0xff]
    %v103 = vld [vmem:[%s3 + $0x180] sm:$0xff]
    %v104 = vld [vmem:[%s3 + $0x188] sm:$0xff]
    %v105 = vld [vmem:[%s3 + $0x190] sm:$0xff]
    %v106 = vld [vmem:[%s3 + $0x198] sm:$0xff]
    %v107 = vld [vmem:[%s3 + $0x1a0] sm:$0xff]
    %v108 = vld [vmem:[%s3 + $0x1a8] sm:$0xff]
    %v109 = vld [vmem:[%s3 + $0x1b0] sm:$0xff]
    %v110 = vld [vmem:[%s3 + $0x1b8] sm:$0xff]
    %v111 = vld [vmem:[%s3 + $0x1c0] sm:$0xff]
    %v112 = vld [vmem:[%s3 + $0x1c8] sm:$0xff]
    %v113 = vld [vmem:[%s3 + $0x1d0] sm:$0xff]
    %v114 = vld [vmem:[%s3 + $0x1d8] sm:$0xff]
    %v115 = vld [vmem:[%s3 + $0x1e0] sm:$0xff]
    %v116 = vld [vmem:[%s3 + $0x1e8] sm:$0xff]
    %v117 = vld [vmem:[%s3 + $0x1f0] sm:$0xff]
    %v118 = vld [vmem:[%s3 + $0x1f8] sm:$0xff]
    %v119 = vld [vmem:[%s3 + $0x200] sm:$0xff]
    %v120 = vld [vmem:[%s3 + $0x208] sm:$0xff]
    %v121 = vld [vmem:[%s3 + $0x210] sm:$0xff]
    %v122 = vld [vmem:[%s3 + $0x218] sm:$0xff]
    %v123 = vld [vmem:[%s3 + $0x220] sm:$0xff]
    %v124 = vld [vmem:[%s3 + $0x228] sm:$0xff]
    %v125 = vld [vmem:[%s3 + $0x230] sm:$0xff]
    %v126 = vld [vmem:[%s3 + $0x238] sm:$0xff]
    %v127 = vld [vmem:[%s3 + $0x240] sm:$0xff]
    %v128 = vld [vmem:[%s3 + $0x248] sm:$0xff]
    %v129 = vld [vmem:[%s3 + $0x250] sm:$0xff]
    %v130 = vld [vmem:[%s3 + $0x258] sm:$0xff]
    %v131 = vld [vmem:[%s3 + $0x260] sm:$0xff]
    %v132 = vld [vmem:[%s3 + $0x268] sm:$0xff]
    %v133 = vld [vmem:[%s3 + $0x270] sm:$0xff]
    %v134 = vld [vmem:[%s3 + $0x278] sm:$0xff]
    %v135 = vld [vmem:[%s3 + $0x280] sm:$0xff]
    %v136 = vld [vmem:[%s3 + $0x288] sm:$0xff]
    %v137 = vld [vmem:[%s3 + $0x290] sm:$0xff]
    %v138 = vld [vmem:[%s3 + $0x298] sm:$0xff]
    %v139 = vld [vmem:[%s3 + $0x2a0] sm:$0xff]
    %v140 = vld [vmem:[%s3 + $0x2a8] sm:$0xff]
    %v141 = vld [vmem:[%s3 + $0x2b0] sm:$0xff]
    %v142 = vld [vmem:[%s3 + $0x2b8] sm:$0xff]
    %v143 = vld [vmem:[%s3 + $0x2c0] sm:$0xff]
    %v144 = vld [vmem:[%s3 + $0x2c8] sm:$0xff]
    %v145 = vld [vmem:[%s3 + $0x2d0] sm:$0xff]
    %v146 = vld [vmem:[%s3 + $0x2d8] sm:$0xff]
    %v147 = vld [vmem:[%s3 + $0x2e0] sm:$0xff]
    %v148 = vld [vmem:[%s3 + $0x2e8] sm:$0xff]
    %v149 = vld [vmem:[%s3 + $0x2f0] sm:$0xff]
    %v150 = vld [vmem:[%s3 + $0x2f8] sm:$0xff]
    %v151 = vld [vmem:[%s3 + $0x300] sm:$0xff]
    %v152 = vld [vmem:[%s3 + $0x308] sm:$0xff]
    %v153 = vld [vmem:[%s3 + $0x310] sm:$0xff]
    %v154 = vld [vmem:[%s3 + $0x318] sm:$0xff]
    %v155 = vld [vmem:[%s3 + $0x320] sm:$0xff]
    %v156 = vld [vmem:[%s3 + $0x328] sm:$0xff]
    %v157 = vld [vmem:[%s3 + $0x330] sm:$0xff]
    %v158 = vld [vmem:[%s3 + $0x338] sm:$0xff]
    %v159 = vld [vmem:[%s3 + $0x340] sm:$0xff]
    %v160 = vld [vmem:[%s3 + $0x348] sm:$0xff]
    %v161 = vld [vmem:[%s3 + $0x350] sm:$0xff]
    %v162 = vld [vmem:[%s3 + $0x358] sm:$0xff]
    %v163 = vld [vmem:[%s3 + $0x360] sm:$0xff]
    %v164 = vld [vmem:[%s3 + $0x368] sm:$0xff]
    %v165 = vld [vmem:[%s3 + $0x370] sm:$0xff]
    %v166 = vld [vmem:[%s3 + $0x378] sm:$0xff]
    %v167 = vld [vmem:[%s3 + $0x380] sm:$0xff]
    %v168 = vld [vmem:[%s3 + $0x388] sm:$0xff]
    %v169 = vld [vmem:[%s3 + $0x390] sm:$0xff]
    %v170 = vld [vmem:[%s3 + $0x398] sm:$0xff]
    %v171 = vld [vmem:[%s3 + $0x3a0] sm:$0xff]
    %v172 = vld [vmem:[%s3 + $0x3a8] sm:$0xff]
    %v173 = vld [vmem:[%s3 + $0x3b0] sm:$0xff]
    %v174 = vld [vmem:[%s3 + $0x3b8] sm:$0xff]
    %v175 = vld [vmem:[%s3 + $0x3c0] sm:$0xff]
    %v176 = vld [vmem:[%s3 + $0x3c8] sm:$0xff]
    %v177 = vld [vmem:[%s3 + $0x3d0] sm:$0xff]
    %v178 = vld [vmem:[%s3 + $0x3d8] sm:$0xff]
    %v179 = vld [vmem:[%s3 + $0x3e0] sm:$0xff]
    %v180 = vld [vmem:[%s3 + $0x3e8] sm:$0xff]
    %v181 = vld [vmem:[%s3 + $0x3f0] sm:$0xff]
    %v182 = vld [vmem:[%s3 + $0x3f8] sm:$0xff]
    %v183 = vld [vmem:[%s3 + $0x400] sm:$0xff]
    %v184 = vld [vmem:[%s3 + $0x408] sm:$0xff]
    %v185 = vld [vmem:[%s3 + $0x410] sm:$0xff]
    %v186 = vld [vmem:[%s3 + $0x418] sm:$0xff]
    %v187 = vld [vmem:[%s3 + $0x420] sm:$0xff]
    %v188 = vld [vmem:[%s3 + $0x428] sm:$0xff]
    %v189 = vld [vmem:[%s3 + $0x430] sm:$0xff]
    %v190 = vld [vmem:[%s3 + $0x438] sm:$0xff]
    %v191 = vld [vmem:[%s3 + $0x440] sm:$0xff]
    %v192 = vld [vmem:[%s3 + $0x448] sm:$0xff]
    %v193 = vld [vmem:[%s3 + $0x450] sm:$0xff]
    %v194 = vld [vmem:[%s3 + $0x458] sm:$0xff]
    %v195 = vld [vmem:[%s3 + $0x460] sm:$0xff]
    %v196 = vld [vmem:[%s3 + $0x468] sm:$0xff]
    %v197 = vld [vmem:[%s3 + $0x470] sm:$0xff]
    %v198 = vld [vmem:[%s3 + $0x478] sm:$0xff]
    %v199 = vld [vmem:[%s3 + $0x480] sm:$0xff]
    %v200 = vld [vmem:[%s3 + $0x488] sm:$0xff]
    %v201 = vld [vmem:[%s3 + $0x490] sm:$0xff]
    %v202 = vld [vmem:[%s3 + $0x498] sm:$0xff]
    %v203 = vld [vmem:[%s3 + $0x4a0] sm:$0xff]
    %v204 = vld [vmem:[%s3 + $0x4a8] sm:$0xff]
    %v205 = vld [vmem:[%s3 + $0x4b0] sm:$0xff]
    %v206 = vld [vmem:[%s3 + $0x4b8] sm:$0xff]
    %v207 = vld [vmem:[%s3 + $0x4c0] sm:$0xff]
    %v208 = vld [vmem:[%s3 + $0x4c8] sm:$0xff]
    %v209 = vld [vmem:[%s3 + $0x4d0] sm:$0xff]
    %v210 = vld [vmem:[%s3 + $0x4d8] sm:$0xff]
    %v211 = vld [vmem:[%s3 + $0x4e0] sm:$0xff]
    %v212 = vld [vmem:[%s3 + $0x4e8] sm:$0xff]
    %v213 = vld [vmem:[%s3 + $0x4f0] sm:$0xff]
    %v214 = vld [vmem:[%s3 + $0x4f8] sm:$0xff]
    %v215 = vld [vmem:[%s3 + $0x500] sm:$0xff]
    %v216 = vld [vmem:[%s3 + $0x508] sm:$0xff]
    %v217 = vld [vmem:[%s3 + $0x510] sm:$0xff]
    %v218 = vld [vmem:[%s3 + $0x518] sm:$0xff]
    %v219 = vld [vmem:[%s3 + $0x520] sm:$0xff]
    %v220 = vld [vmem:[%s3 + $0x528] sm:$0xff]
    %v221 = vld [vmem:[%s3 + $0x530] sm:$0xff]
    %v222 = vld [vmem:[%s3 + $0x538] sm:$0xff]
    %v223 = vld [vmem:[%s3 + $0x540] sm:$0xff]
    %v224 = vld [vmem:[%s3 + $0x548] sm:$0xff]
    %v225 = vld [vmem:[%s3 + $0x550] sm:$0xff]
    %v226 = vld [vmem:[%s3 + $0x558] sm:$0xff]
    %v227 = vld [vmem:[%s3 + $0x560] sm:$0xff]
    %v228 = vld [vmem:[%s3 + $0x568] sm:$0xff]
    %v229 = vld [vmem:[%s3 + $0x570] sm:$0xff]
    %v230 = vld [vmem:[%s3 + $0x578] sm:$0xff]
    %v231 = vld [vmem:[%s3 + $0x580] sm:$0xff]
    %v232 = vld [vmem:[%s3 + $0x588] sm:$0xff]
    %v233 = vld [vmem:[%s3 + $0x590] sm:$0xff]
    %v234 = vld [vmem:[%s3 + $0x598] sm:$0xff]
    %v235 = vld [vmem:[%s3 + $0x5a0] sm:$0xff]
    %v236 = vld [vmem:[%s3 + $0x5a8] sm:$0xff]
    %v237 = vld [vmem:[%s3 + $0x5b0] sm:$0xff]
    %v238 = vld [vmem:[%s3 + $0x5b8] sm:$0xff]
    %v239 = vld [vmem:[%s3 + $0x5c0] sm:$0xff]
    %v240 = vld [vmem:[%s3 + $0x5c8] sm:$0xff]
    %v241 = vld [vmem:[%s3 + $0x5d0] sm:$0xff]
    %v242 = vld [vmem:[%s3 + $0x5d8] sm:$0xff]
    %v243 = vld [vmem:[%s3 + $0x5e0] sm:$0xff]
    %v244 = vld [vmem:[%s3 + $0x5e8] sm:$0xff]
    %v245 = vld [vmem:[%s3 + $0x5f0] sm:$0xff]
    %v246 = vld [vmem:[%s3 + $0x5f8] sm:$0xff]
    %v247 = vld [vmem:[%s3 + $0x600] sm:$0xff]
    %v248 = vld [vmem:[%s3 + $0x608] sm:$0xff]
    %v249 = vld [vmem:[%s3 + $0x610] sm:$0xff]
    %v250 = vld [vmem:[%s3 + $0x618] sm:$0xff]
    %v251 = vld [vmem:[%s4] sm:$0xff]
    %v252 = vld [vmem:[%s4 + $0x8] sm:$0xff]
    %v253 = vld [vmem:[%s4 + $0x10] sm:$0x11]
    %v254 = vld [vmem:[%s4 + $0x18] sm:$0x11]
    %v259 = vunpack.c.l.b16 %v251
    %v260 = vunpack.c.h.b16 %v251
    %v261 = vunpack.c.l.b16 %v252
    %v262 = vunpack.c.h.b16 %v252
    %v263 = vunpack.c.l.b16 %v253
    %v264 = vunpack.c.h.b16 %v253
    %v265 = vunpack.c.l.b16 %v254
    %v266 = vunpack.c.h.b16 %v254
    %v267 = vpack.c.b16 %v263, %v259
    %v268 = vpack.c.b16 %v264, %v260
    %v269 = vpack.c.b16 %v265, %v261
    %v270 = vpack.c.b16 %v266, %v262
    %vm271 = vcmask 80896
    %v273 = vsel %vm271, %v54, 0
    %vm275 = vcmask 1044480
    %v277 = vsel %vm275, %v267, 0
    %v280 = vsel %vm275, %v268, 0
    %v283 = vsel %vm275, %v269, 0
    %v286 = vsel %vm275, %v270, 0
    %288 = vmatprep.subr.bf16.mxu0 %v280
    %289 = vmatpush1.bf16.msra.mxu0 %v277
    %290 = vmatprep.subr.bf16.mxu0 0
    %291 = vmatpush1.bf16.msra.mxu0 0
    %292 = vmatprep.subr.bf16.mxu0 0
    %293 = vmatpush1.bf16.msra.mxu0 0
    %294 = vmatprep.subr.bf16.mxu0 0
    %295 = vmatpush1.bf16.msra.mxu0 0
    %296 = vmatprep.subr.bf16.mxu0 0
    %297 = vmatpush1.bf16.msra.mxu0 0
    %298 = vmatprep.subr.bf16.mxu0 0
    %299 = vmatpush1.bf16.msra.mxu0 0
    %300 = vmatprep.subr.bf16.mxu0 0
    %301 = vmatpush1.bf16.msra.mxu0 0
    %302 = vmatprep.subr.bf16.mxu0 0
    %303 = vmatpush1.bf16.msra.mxu0 0
    %304 = vmatprep.subr.bf16.mxu0 0
    %305 = vmatpush1.bf16.msra.mxu0 0
    %306 = vmatprep.subr.bf16.mxu0 0
    %307 = vmatpush1.bf16.msra.mxu0 0
    %308 = vmatprep.subr.bf16.mxu0 0
    %309 = vmatpush1.bf16.msra.mxu0 0
    %310 = vmatprep.subr.bf16.mxu0 0
    %311 = vmatpush1.bf16.msra.mxu0 0
    %312 = vmatprep.subr.bf16.mxu0 0
    %313 = vmatpush1.bf16.msra.mxu0 0
    %314 = vmatprep.subr.bf16.mxu0 0
    %315 = vmatpush1.bf16.msra.mxu0 0
    %316 = vmatprep.subr.bf16.mxu0 0
    %317 = vmatpush1.bf16.msra.mxu0 0
    %318 = vmatprep.subr.bf16.mxu0 0
    %319 = vmatpush1.bf16.msra.mxu0 0
    %320 = vmatprep.mubr.bf16.mxu0 0
    %321 = vmatmul.mubr.bf16.gmra.mrb[0].mxu0 %v273
    %v322 = vpop.f32.mrb[0].mxu0
    %v323 = vadd.f32 0.0, %v322
    %v324 = vpop.f32.mrb[0].mxu0
    %v325 = vadd.f32 0.0, %v324
    %v326 = vpop.f32.mrb[0].mxu0
    %v327 = vpop.f32.mrb[0].mxu0
    %328 = vdwg.mxu0
    %329 = vmatprep.subr.bf16.mxu0 %v286
    %330 = vmatpush1.bf16.msra.mxu0 %v283
    %331 = vmatprep.subr.bf16.mxu0 0
    %332 = vmatpush1.bf16.msra.mxu0 0
    %333 = vmatprep.subr.bf16.mxu0 0
    %334 = vmatpush1.bf16.msra.mxu0 0
    %335 = vmatprep.subr.bf16.mxu0 0
    %336 = vmatpush1.bf16.msra.mxu0 0
    %337 = vmatprep.subr.bf16.mxu0 0
    %338 = vmatpush1.bf16.msra.mxu0 0
    %339 = vmatprep.subr.bf16.mxu0 0
    %340 = vmatpush1.bf16.msra.mxu0 0
    %341 = vmatprep.subr.bf16.mxu0 0
    %342 = vmatpush1.bf16.msra.mxu0 0
    %343 = vmatprep.subr.bf16.mxu0 0
    %344 = vmatpush1.bf16.msra.mxu0 0
    %345 = vmatprep.subr.bf16.mxu0 0
    %346 = vmatpush1.bf16.msra.mxu0 0
    %347 = vmatprep.subr.bf16.mxu0 0
    %348 = vmatpush1.bf16.msra.mxu0 0
    %349 = vmatprep.subr.bf16.mxu0 0
    %350 = vmatpush1.bf16.msra.mxu0 0
    %351 = vmatprep.subr.bf16.mxu0 0
    %352 = vmatpush1.bf16.msra.mxu0 0
    %353 = vmatprep.subr.bf16.mxu0 0
    %354 = vmatpush1.bf16.msra.mxu0 0
    %355 = vmatprep.subr.bf16.mxu0 0
    %356 = vmatpush1.bf16.msra.mxu0 0
    %357 = vmatprep.subr.bf16.mxu0 0
    %358 = vmatpush1.bf16.msra.mxu0 0
    %359 = vmatprep.subr.bf16.mxu0 0
    %360 = vmatpush1.bf16.msra.mxu0 0
    %361 = vmatprep.mubr.bf16.mxu0 0
    %362 = vmatmul.mubr.bf16.gmra.mrb[0].mxu0 %v273
    %v363 = vpop.f32.mrb[0].mxu0
    %v364 = vadd.f32 0.0, %v363
    %v365 = vpop.f32.mrb[0].mxu0
    %v366 = vadd.f32 0.0, %v365
    %v367 = vpop.f32.mrb[0].mxu0
    %v368 = vpop.f32.mrb[0].mxu0
    %369 = vdwg.mxu0
    %v374 = vunpack.c.l.b16 %v48
    %v375 = vunpack.c.h.b16 %v48
    %v376 = vunpack.c.l.b16 %v49
    %v377 = vunpack.c.h.b16 %v49
    %v378 = vunpack.c.l.b16 %v50
    %v379 = vunpack.c.h.b16 %v50
    %v380 = vunpack.c.l.b16 %v51
    %v381 = vpack.c.b16 %v374, %v374
    %v382 = vpack.c.b16 %v375, %v375
    %v383 = vpack.c.b16 %v376, %v376
    %v384 = vpack.c.b16 %v377, %v377
    %v385 = vpack.c.b16 %v378, %v378
    %v386 = vpack.c.b16 %v379, %v379
    %v387 = vpack.c.b16 %v380, %v380
    %v590 = vunpack.c.l.b16 %v55
    %v591 = vunpack.c.h.b16 %v55
    %v592 = vunpack.c.l.b16 %v56
    %v593 = vunpack.c.h.b16 %v56
    %v594 = vunpack.c.l.b16 %v57
    %v595 = vunpack.c.h.b16 %v57
    %v596 = vunpack.c.l.b16 %v58
    %v597 = vunpack.c.h.b16 %v58
    %v598 = vunpack.c.l.b16 %v59
    %v599 = vunpack.c.h.b16 %v59
    %v600 = vunpack.c.l.b16 %v60
    %v601 = vunpack.c.h.b16 %v60
    %v602 = vunpack.c.l.b16 %v61
    %v603 = vunpack.c.h.b16 %v61
    %v604 = vunpack.c.l.b16 %v62
    %v605 = vunpack.c.h.b16 %v62
    %v606 = vunpack.c.l.b16 %v63
    %v607 = vunpack.c.h.b16 %v63
    %v608 = vunpack.c.l.b16 %v64
    %v609 = vunpack.c.h.b16 %v64
    %v610 = vunpack.c.l.b16 %v65
    %v611 = vunpack.c.h.b16 %v65
    %v612 = vunpack.c.l.b16 %v66
    %v613 = vunpack.c.h.b16 %v66
    %v614 = vunpack.c.l.b16 %v67
    %v615 = vunpack.c.h.b16 %v67
    %v616 = vunpack.c.l.b16 %v68
    %v617 = vunpack.c.h.b16 %v68
    %v618 = vunpack.c.l.b16 %v69
    %v619 = vunpack.c.h.b16 %v69
    %v620 = vunpack.c.l.b16 %v70
    %v621 = vunpack.c.h.b16 %v70
    %v622 = vunpack.c.l.b16 %v71
    %v623 = vunpack.c.h.b16 %v71
    %v624 = vunpack.c.l.b16 %v72
    %v625 = vunpack.c.h.b16 %v72
    %v626 = vunpack.c.l.b16 %v73
    %v627 = vunpack.c.h.b16 %v73
    %v628 = vunpack.c.l.b16 %v74
    %v629 = vunpack.c.h.b16 %v74
    %v630 = vunpack.c.l.b16 %v75
    %v631 = vunpack.c.h.b16 %v75
    %v632 = vunpack.c.l.b16 %v76
    %v633 = vunpack.c.h.b16 %v76
    %v634 = vunpack.c.l.b16 %v77
    %v635 = vunpack.c.h.b16 %v77
    %v636 = vunpack.c.l.b16 %v78
    %v637 = vunpack.c.h.b16 %v78
    %v638 = vunpack.c.l.b16 %v79
    %v639 = vunpack.c.h.b16 %v79
    %v640 = vunpack.c.l.b16 %v80
    %v641 = vunpack.c.h.b16 %v80
    %v642 = vunpack.c.l.b16 %v81
    %v643 = vunpack.c.h.b16 %v81
    %v644 = vunpack.c.l.b16 %v82
    %v645 = vunpack.c.h.b16 %v82
    %v646 = vunpack.c.l.b16 %v83
    %v647 = vunpack.c.h.b16 %v83
    %v648 = vunpack.c.l.b16 %v84
    %v649 = vunpack.c.h.b16 %v84
    %v650 = vunpack.c.l.b16 %v85
    %v651 = vunpack.c.h.b16 %v85
    %v652 = vunpack.c.l.b16 %v86
    %v653 = vunpack.c.h.b16 %v86
    %v654 = vunpack.c.l.b16 %v87
    %v655 = vunpack.c.h.b16 %v87
    %v656 = vunpack.c.l.b16 %v88
    %v657 = vunpack.c.h.b16 %v88
    %v658 = vunpack.c.l.b16 %v89
    %v659 = vunpack.c.h.b16 %v89
    %v660 = vunpack.c.l.b16 %v90
    %v661 = vunpack.c.h.b16 %v90
    %v662 = vunpack.c.l.b16 %v91
    %v663 = vunpack.c.h.b16 %v91
    %v664 = vunpack.c.l.b16 %v92
    %v665 = vunpack.c.h.b16 %v92
    %v666 = vunpack.c.l.b16 %v93
    %v667 = vunpack.c.h.b16 %v93
    %v668 = vunpack.c.l.b16 %v94
    %v669 = vunpack.c.h.b16 %v94
    %v670 = vunpack.c.l.b16 %v95
    %v671 = vunpack.c.h.b16 %v95
    %v672 = vunpack.c.l.b16 %v96
    %v673 = vunpack.c.h.b16 %v96
    %v674 = vunpack.c.l.b16 %v97
    %v675 = vunpack.c.h.b16 %v97
    %v676 = vunpack.c.l.b16 %v98
    %v677 = vunpack.c.h.b16 %v98
    %v678 = vunpack.c.l.b16 %v99
    %v679 = vunpack.c.h.b16 %v99
    %v680 = vunpack.c.l.b16 %v100
    %v681 = vunpack.c.h.b16 %v100
    %v682 = vunpack.c.l.b16 %v101
    %v683 = vunpack.c.h.b16 %v101
    %v684 = vunpack.c.l.b16 %v102
    %v685 = vunpack.c.h.b16 %v102
    %v686 = vunpack.c.l.b16 %v103
    %v687 = vunpack.c.h.b16 %v103
    %v688 = vunpack.c.l.b16 %v104
    %v689 = vunpack.c.h.b16 %v104
    %v690 = vunpack.c.l.b16 %v105
    %v691 = vunpack.c.h.b16 %v105
    %v692 = vunpack.c.l.b16 %v106
    %v693 = vunpack.c.h.b16 %v106
    %v694 = vunpack.c.l.b16 %v107
    %v695 = vunpack.c.h.b16 %v107
    %v696 = vunpack.c.l.b16 %v108
    %v697 = vunpack.c.h.b16 %v108
    %v698 = vunpack.c.l.b16 %v109
    %v699 = vunpack.c.h.b16 %v109
    %v700 = vunpack.c.l.b16 %v110
    %v701 = vunpack.c.h.b16 %v110
    %v702 = vunpack.c.l.b16 %v111
    %v703 = vunpack.c.h.b16 %v111
    %v704 = vunpack.c.l.b16 %v112
    %v705 = vunpack.c.h.b16 %v112
    %v706 = vunpack.c.l.b16 %v113
    %v707 = vunpack.c.h.b16 %v113
    %v708 = vunpack.c.l.b16 %v114
    %v709 = vunpack.c.h.b16 %v114
    %v710 = vunpack.c.l.b16 %v115
    %v711 = vunpack.c.h.b16 %v115
    %v712 = vunpack.c.l.b16 %v116
    %v713 = vunpack.c.h.b16 %v116
    %v714 = vunpack.c.l.b16 %v117
    %v715 = vunpack.c.h.b16 %v117
    %v716 = vunpack.c.l.b16 %v118
    %v717 = vunpack.c.h.b16 %v118
    %v718 = vunpack.c.l.b16 %v119
    %v719 = vunpack.c.h.b16 %v119
    %v720 = vunpack.c.l.b16 %v120
    %v721 = vunpack.c.h.b16 %v120
    %v722 = vunpack.c.l.b16 %v121
    %v723 = vunpack.c.h.b16 %v121
    %v724 = vunpack.c.l.b16 %v122
    %v725 = vunpack.c.h.b16 %v122
    %v726 = vunpack.c.l.b16 %v123
    %v727 = vunpack.c.h.b16 %v123
    %v728 = vunpack.c.l.b16 %v124
    %v729 = vunpack.c.h.b16 %v124
    %v730 = vunpack.c.l.b16 %v125
    %v731 = vunpack.c.h.b16 %v125
    %v732 = vunpack.c.l.b16 %v126
    %v733 = vunpack.c.h.b16 %v126
    %v734 = vunpack.c.l.b16 %v127
    %v735 = vunpack.c.h.b16 %v127
    %v736 = vunpack.c.l.b16 %v128
    %v737 = vunpack.c.h.b16 %v128
    %v738 = vunpack.c.l.b16 %v129
    %v739 = vunpack.c.h.b16 %v129
    %v740 = vunpack.c.l.b16 %v130
    %v741 = vunpack.c.h.b16 %v130
    %v742 = vunpack.c.l.b16 %v131
    %v743 = vunpack.c.h.b16 %v131
    %v744 = vunpack.c.l.b16 %v132
    %v745 = vunpack.c.h.b16 %v132
    %v746 = vunpack.c.l.b16 %v133
    %v747 = vunpack.c.h.b16 %v133
    %v748 = vunpack.c.l.b16 %v134
    %v749 = vunpack.c.h.b16 %v134
    %v750 = vunpack.c.l.b16 %v135
    %v751 = vunpack.c.h.b16 %v135
    %v752 = vunpack.c.l.b16 %v136
    %v753 = vunpack.c.h.b16 %v136
    %v754 = vunpack.c.l.b16 %v137
    %v755 = vunpack.c.h.b16 %v137
    %v756 = vunpack.c.l.b16 %v138
    %v757 = vunpack.c.h.b16 %v138
    %v758 = vunpack.c.l.b16 %v139
    %v759 = vunpack.c.h.b16 %v139
    %v760 = vunpack.c.l.b16 %v140
    %v761 = vunpack.c.h.b16 %v140
    %v762 = vunpack.c.l.b16 %v141
    %v763 = vunpack.c.h.b16 %v141
    %v764 = vunpack.c.l.b16 %v142
    %v765 = vunpack.c.h.b16 %v142
    %v766 = vunpack.c.l.b16 %v143
    %v767 = vunpack.c.h.b16 %v143
    %v768 = vunpack.c.l.b16 %v144
    %v769 = vunpack.c.h.b16 %v144
    %v770 = vunpack.c.l.b16 %v145
    %v771 = vunpack.c.h.b16 %v145
    %v772 = vunpack.c.l.b16 %v146
    %v773 = vunpack.c.h.b16 %v146
    %v774 = vunpack.c.l.b16 %v147
    %v775 = vunpack.c.h.b16 %v147
    %v776 = vunpack.c.l.b16 %v148
    %v777 = vunpack.c.h.b16 %v148
    %v778 = vunpack.c.l.b16 %v149
    %v779 = vunpack.c.h.b16 %v149
    %v780 = vunpack.c.l.b16 %v150
    %v781 = vunpack.c.h.b16 %v150
    %v782 = vunpack.c.l.b16 %v151
    %v783 = vunpack.c.h.b16 %v151
    %v784 = vunpack.c.l.b16 %v152
    %v785 = vunpack.c.h.b16 %v152
    %v786 = vunpack.c.l.b16 %v153
    %v787 = vunpack.c.h.b16 %v153
    %v788 = vunpack.c.l.b16 %v154
    %v789 = vunpack.c.h.b16 %v154
    %v790 = vunpack.c.l.b16 %v155
    %v791 = vunpack.c.h.b16 %v155
    %v792 = vunpack.c.l.b16 %v156
    %v793 = vunpack.c.h.b16 %v156
    %v794 = vunpack.c.l.b16 %v157
    %v795 = vunpack.c.h.b16 %v157
    %v796 = vunpack.c.l.b16 %v158
    %v797 = vunpack.c.h.b16 %v158
    %v798 = vunpack.c.l.b16 %v159
    %v799 = vunpack.c.h.b16 %v159
    %v800 = vunpack.c.l.b16 %v160
    %v801 = vunpack.c.h.b16 %v160
    %v802 = vunpack.c.l.b16 %v161
    %v803 = vunpack.c.h.b16 %v161
    %v804 = vunpack.c.l.b16 %v162
    %v805 = vunpack.c.h.b16 %v162
    %v806 = vunpack.c.l.b16 %v163
    %v807 = vunpack.c.h.b16 %v163
    %v808 = vunpack.c.l.b16 %v164
    %v809 = vunpack.c.h.b16 %v164
    %v810 = vunpack.c.l.b16 %v165
    %v811 = vunpack.c.h.b16 %v165
    %v812 = vunpack.c.l.b16 %v166
    %v813 = vunpack.c.h.b16 %v166
    %v814 = vunpack.c.l.b16 %v167
    %v815 = vunpack.c.h.b16 %v167
    %v816 = vunpack.c.l.b16 %v168
    %v817 = vunpack.c.h.b16 %v168
    %v818 = vunpack.c.l.b16 %v169
    %v819 = vunpack.c.h.b16 %v169
    %v820 = vunpack.c.l.b16 %v170
    %v821 = vunpack.c.h.b16 %v170
    %v822 = vunpack.c.l.b16 %v171
    %v823 = vunpack.c.h.b16 %v171
    %v824 = vunpack.c.l.b16 %v172
    %v825 = vunpack.c.h.b16 %v172
    %v826 = vunpack.c.l.b16 %v173
    %v827 = vunpack.c.h.b16 %v173
    %v828 = vunpack.c.l.b16 %v174
    %v829 = vunpack.c.h.b16 %v174
    %v830 = vunpack.c.l.b16 %v175
    %v831 = vunpack.c.h.b16 %v175
    %v832 = vunpack.c.l.b16 %v176
    %v833 = vunpack.c.h.b16 %v176
    %v834 = vunpack.c.l.b16 %v177
    %v835 = vunpack.c.h.b16 %v177
    %v836 = vunpack.c.l.b16 %v178
    %v837 = vunpack.c.h.b16 %v178
    %v838 = vunpack.c.l.b16 %v179
    %v839 = vunpack.c.h.b16 %v179
    %v840 = vunpack.c.l.b16 %v180
    %v841 = vunpack.c.h.b16 %v180
    %v842 = vunpack.c.l.b16 %v181
    %v843 = vunpack.c.h.b16 %v181
    %v844 = vunpack.c.l.b16 %v182
    %v845 = vunpack.c.h.b16 %v182
    %v846 = vunpack.c.l.b16 %v183
    %v847 = vunpack.c.h.b16 %v183
    %v848 = vunpack.c.l.b16 %v184
    %v849 = vunpack.c.h.b16 %v184
    %v850 = vunpack.c.l.b16 %v185
    %v851 = vunpack.c.h.b16 %v185
    %v852 = vunpack.c.l.b16 %v186
    %v853 = vunpack.c.h.b16 %v186
    %v854 = vunpack.c.l.b16 %v187
    %v855 = vunpack.c.h.b16 %v187
    %v856 = vunpack.c.l.b16 %v188
    %v857 = vunpack.c.h.b16 %v188
    %v858 = vunpack.c.l.b16 %v189
    %v859 = vunpack.c.h.b16 %v189
    %v860 = vunpack.c.l.b16 %v190
    %v861 = vunpack.c.h.b16 %v190
    %v862 = vunpack.c.l.b16 %v191
    %v863 = vunpack.c.h.b16 %v191
    %v864 = vunpack.c.l.b16 %v192
    %v865 = vunpack.c.h.b16 %v192
    %v866 = vunpack.c.l.b16 %v193
    %v867 = vunpack.c.h.b16 %v193
    %v868 = vunpack.c.l.b16 %v194
    %v869 = vunpack.c.h.b16 %v194
    %v870 = vunpack.c.l.b16 %v195
    %v871 = vunpack.c.h.b16 %v195
    %v872 = vunpack.c.l.b16 %v196
    %v873 = vunpack.c.h.b16 %v196
    %v874 = vunpack.c.l.b16 %v197
    %v875 = vunpack.c.h.b16 %v197
    %v876 = vunpack.c.l.b16 %v198
    %v877 = vunpack.c.h.b16 %v198
    %v878 = vunpack.c.l.b16 %v199
    %v879 = vunpack.c.h.b16 %v199
    %v880 = vunpack.c.l.b16 %v200
    %v881 = vunpack.c.h.b16 %v200
    %v882 = vunpack.c.l.b16 %v201
    %v883 = vunpack.c.h.b16 %v201
    %v884 = vunpack.c.l.b16 %v202
    %v885 = vunpack.c.h.b16 %v202
    %v886 = vunpack.c.l.b16 %v203
    %v887 = vunpack.c.h.b16 %v203
    %v888 = vunpack.c.l.b16 %v204
    %v889 = vunpack.c.h.b16 %v204
    %v890 = vunpack.c.l.b16 %v205
    %v891 = vunpack.c.h.b16 %v205
    %v892 = vunpack.c.l.b16 %v206
    %v893 = vunpack.c.h.b16 %v206
    %v894 = vunpack.c.l.b16 %v207
    %v895 = vunpack.c.h.b16 %v207
    %v896 = vunpack.c.l.b16 %v208
    %v897 = vunpack.c.h.b16 %v208
    %v898 = vunpack.c.l.b16 %v209
    %v899 = vunpack.c.h.b16 %v209
    %v900 = vunpack.c.l.b16 %v210
    %v901 = vunpack.c.h.b16 %v210
    %v902 = vunpack.c.l.b16 %v211
    %v903 = vunpack.c.h.b16 %v211
    %v904 = vunpack.c.l.b16 %v212
    %v905 = vunpack.c.h.b16 %v212
    %v906 = vunpack.c.l.b16 %v213
    %v907 = vunpack.c.h.b16 %v213
    %v908 = vunpack.c.l.b16 %v214
    %v909 = vunpack.c.h.b16 %v214
    %v910 = vunpack.c.l.b16 %v215
    %v911 = vunpack.c.h.b16 %v215
    %v912 = vunpack.c.l.b16 %v216
    %v913 = vunpack.c.h.b16 %v216
    %v914 = vunpack.c.l.b16 %v217
    %v915 = vunpack.c.h.b16 %v217
    %v916 = vunpack.c.l.b16 %v218
    %v917 = vunpack.c.h.b16 %v218
    %v918 = vunpack.c.l.b16 %v219
    %v919 = vunpack.c.h.b16 %v219
    %v920 = vunpack.c.l.b16 %v220
    %v921 = vunpack.c.h.b16 %v220
    %v922 = vunpack.c.l.b16 %v221
    %v923 = vunpack.c.h.b16 %v221
    %v924 = vunpack.c.l.b16 %v222
    %v925 = vunpack.c.h.b16 %v222
    %v926 = vunpack.c.l.b16 %v223
    %v927 = vunpack.c.h.b16 %v223
    %v928 = vunpack.c.l.b16 %v224
    %v929 = vunpack.c.h.b16 %v224
    %v930 = vunpack.c.l.b16 %v225
    %v931 = vunpack.c.h.b16 %v225
    %v932 = vunpack.c.l.b16 %v226
    %v933 = vunpack.c.h.b16 %v226
    %v934 = vunpack.c.l.b16 %v227
    %v935 = vunpack.c.h.b16 %v227
    %v936 = vunpack.c.l.b16 %v228
    %v937 = vunpack.c.h.b16 %v228
    %v938 = vunpack.c.l.b16 %v229
    %v939 = vunpack.c.h.b16 %v229
    %v940 = vunpack.c.l.b16 %v230
    %v941 = vunpack.c.h.b16 %v230
    %v942 = vunpack.c.l.b16 %v231
    %v943 = vunpack.c.h.b16 %v231
    %v944 = vunpack.c.l.b16 %v232
    %v945 = vunpack.c.h.b16 %v232
    %v946 = vunpack.c.l.b16 %v233
    %v947 = vunpack.c.h.b16 %v233
    %v948 = vunpack.c.l.b16 %v234
    %v949 = vunpack.c.h.b16 %v234
    %v950 = vunpack.c.l.b16 %v235
    %v951 = vunpack.c.h.b16 %v235
    %v952 = vunpack.c.l.b16 %v236
    %v953 = vunpack.c.h.b16 %v236
    %v954 = vunpack.c.l.b16 %v237
    %v955 = vunpack.c.h.b16 %v237
    %v956 = vunpack.c.l.b16 %v238
    %v957 = vunpack.c.h.b16 %v238
    %v958 = vunpack.c.l.b16 %v239
    %v959 = vunpack.c.h.b16 %v239
    %v960 = vunpack.c.l.b16 %v240
    %v961 = vunpack.c.h.b16 %v240
    %v962 = vunpack.c.l.b16 %v241
    %v963 = vunpack.c.h.b16 %v241
    %v964 = vunpack.c.l.b16 %v242
    %v965 = vunpack.c.h.b16 %v242
    %v966 = vunpack.c.l.b16 %v243
    %v967 = vunpack.c.h.b16 %v243
    %v968 = vunpack.c.l.b16 %v244
    %v969 = vunpack.c.h.b16 %v244
    %v970 = vunpack.c.l.b16 %v245
    %v971 = vunpack.c.h.b16 %v245
    %v972 = vunpack.c.l.b16 %v246
    %v973 = vunpack.c.h.b16 %v246
    %v974 = vunpack.c.l.b16 %v247
    %v975 = vunpack.c.h.b16 %v247
    %v976 = vunpack.c.l.b16 %v248
    %v977 = vunpack.c.h.b16 %v248
    %v978 = vunpack.c.l.b16 %v249
    %v979 = vunpack.c.h.b16 %v249
    %v980 = vunpack.c.l.b16 %v250
    %v981 = vunpack.c.h.b16 %v250
    %v982 = vpack.c.b16 %v594, %v590
    %v983 = vpack.c.b16 %v595, %v591
    %v984 = vpack.c.b16 %v596, %v592
    %v985 = vpack.c.b16 %v597, %v593
    %v986 = vpack.c.b16 %v602, %v598
    %v987 = vpack.c.b16 %v603, %v599
    %v988 = vpack.c.b16 %v604, %v600
    %v989 = vpack.c.b16 %v605, %v601
    %v990 = vpack.c.b16 %v610, %v606
    %v991 = vpack.c.b16 %v611, %v607
    %v992 = vpack.c.b16 %v612, %v608
    %v993 = vpack.c.b16 %v613, %v609
    %v994 = vpack.c.b16 %v618, %v614
    %v995 = vpack.c.b16 %v619, %v615
    %v996 = vpack.c.b16 %v620, %v616
    %v997 = vpack.c.b16 %v621, %v617
    %v998 = vpack.c.b16 %v626, %v622
    %v999 = vpack.c.b16 %v627, %v623
    %v1000 = vpack.c.b16 %v628, %v624
    %v1001 = vpack.c.b16 %v629, %v625
    %v1002 = vpack.c.b16 %v634, %v630
    %v1003 = vpack.c.b16 %v635, %v631
    %v1004 = vpack.c.b16 %v636, %v632
    %v1005 = vpack.c.b16 %v637, %v633
    %v1006 = vpack.c.b16 %v642, %v638
    %v1007 = vpack.c.b16 %v643, %v639
    %v1008 = vpack.c.b16 %v644, %v640
    %v1009 = vpack.c.b16 %v645, %v641
    %v1010 = vpack.c.b16 %v650, %v646
    %v1011 = vpack.c.b16 %v651, %v647
    %v1012 = vpack.c.b16 %v652, %v648
    %v1013 = vpack.c.b16 %v653, %v649
    %v1014 = vpack.c.b16 %v658, %v654
    %v1015 = vpack.c.b16 %v659, %v655
    %v1016 = vpack.c.b16 %v660, %v656
    %v1017 = vpack.c.b16 %v661, %v657
    %v1018 = vpack.c.b16 %v666, %v662
    %v1019 = vpack.c.b16 %v667, %v663
    %v1020 = vpack.c.b16 %v668, %v664
    %v1021 = vpack.c.b16 %v669, %v665
    %v1022 = vpack.c.b16 %v674, %v670
    %v1023 = vpack.c.b16 %v675, %v671
    %v1024 = vpack.c.b16 %v676, %v672
    %v1025 = vpack.c.b16 %v677, %v673
    %v1026 = vpack.c.b16 %v682, %v678
    %v1027 = vpack.c.b16 %v683, %v679
    %v1028 = vpack.c.b16 %v684, %v680
    %v1029 = vpack.c.b16 %v685, %v681
    %v1030 = vpack.c.b16 %v690, %v686
    %v1031 = vpack.c.b16 %v691, %v687
    %v1032 = vpack.c.b16 %v692, %v688
    %v1033 = vpack.c.b16 %v693, %v689
    %v1034 = vpack.c.b16 %v698, %v694
    %v1035 = vpack.c.b16 %v699, %v695
    %v1036 = vpack.c.b16 %v700, %v696
    %v1037 = vpack.c.b16 %v701, %v697
    %v1038 = vpack.c.b16 %v706, %v702
    %v1039 = vpack.c.b16 %v707, %v703
    %v1040 = vpack.c.b16 %v708, %v704
    %v1041 = vpack.c.b16 %v709, %v705
    %v1042 = vpack.c.b16 %v714, %v710
    %v1043 = vpack.c.b16 %v715, %v711
    %v1044 = vpack.c.b16 %v716, %v712
    %v1045 = vpack.c.b16 %v717, %v713
    %v1046 = vpack.c.b16 %v722, %v718
    %v1047 = vpack.c.b16 %v723, %v719
    %v1048 = vpack.c.b16 %v724, %v720
    %v1049 = vpack.c.b16 %v725, %v721
    %v1050 = vpack.c.b16 %v730, %v726
    %v1051 = vpack.c.b16 %v731, %v727
    %v1052 = vpack.c.b16 %v732, %v728
    %v1053 = vpack.c.b16 %v733, %v729
    %v1054 = vpack.c.b16 %v738, %v734
    %v1055 = vpack.c.b16 %v739, %v735
    %v1056 = vpack.c.b16 %v740, %v736
    %v1057 = vpack.c.b16 %v741, %v737
    %v1058 = vpack.c.b16 %v746, %v742
    %v1059 = vpack.c.b16 %v747, %v743
    %v1060 = vpack.c.b16 %v748, %v744
    %v1061 = vpack.c.b16 %v749, %v745
    %v1062 = vpack.c.b16 %v754, %v750
    %v1063 = vpack.c.b16 %v755, %v751
    %v1064 = vpack.c.b16 %v756, %v752
    %v1065 = vpack.c.b16 %v757, %v753
    %v1066 = vpack.c.b16 %v762, %v758
    %v1067 = vpack.c.b16 %v763, %v759
    %v1068 = vpack.c.b16 %v764, %v760
    %v1069 = vpack.c.b16 %v765, %v761
    %v1070 = vpack.c.b16 %v770, %v766
    %v1071 = vpack.c.b16 %v771, %v767
    %v1072 = vpack.c.b16 %v772, %v768
    %v1073 = vpack.c.b16 %v773, %v769
    %v1074 = vpack.c.b16 %v778, %v774
    %v1075 = vpack.c.b16 %v779, %v775
    %v1076 = vpack.c.b16 %v780, %v776
    %v1077 = vpack.c.b16 %v781, %v777
    %v1078 = vpack.c.b16 %v786, %v782
    %v1079 = vpack.c.b16 %v787, %v783
    %v1080 = vpack.c.b16 %v788, %v784
    %v1081 = vpack.c.b16 %v789, %v785
    %v1082 = vpack.c.b16 %v794, %v790
    %v1083 = vpack.c.b16 %v795, %v791
    %v1084 = vpack.c.b16 %v796, %v792
    %v1085 = vpack.c.b16 %v797, %v793
    %v1086 = vpack.c.b16 %v802, %v798
    %v1087 = vpack.c.b16 %v803, %v799
    %v1088 = vpack.c.b16 %v804, %v800
    %v1089 = vpack.c.b16 %v805, %v801
    %v1090 = vpack.c.b16 %v810, %v806
    %v1091 = vpack.c.b16 %v811, %v807
    %v1092 = vpack.c.b16 %v812, %v808
    %v1093 = vpack.c.b16 %v813, %v809
    %v1094 = vpack.c.b16 %v818, %v814
    %v1095 = vpack.c.b16 %v819, %v815
    %v1096 = vpack.c.b16 %v820, %v816
    %v1097 = vpack.c.b16 %v821, %v817
    %v1098 = vpack.c.b16 %v826, %v822
    %v1099 = vpack.c.b16 %v827, %v823
    %v1100 = vpack.c.b16 %v828, %v824
    %v1101 = vpack.c.b16 %v829, %v825
    %v1102 = vpack.c.b16 %v834, %v830
    %v1103 = vpack.c.b16 %v835, %v831
    %v1104 = vpack.c.b16 %v836, %v832
    %v1105 = vpack.c.b16 %v837, %v833
    %v1106 = vpack.c.b16 %v842, %v838
    %v1107 = vpack.c.b16 %v843, %v839
    %v1108 = vpack.c.b16 %v844, %v840
    %v1109 = vpack.c.b16 %v845, %v841
    %v1110 = vpack.c.b16 %v850, %v846
    %v1111 = vpack.c.b16 %v851, %v847
    %v1112 = vpack.c.b16 %v852, %v848
    %v1113 = vpack.c.b16 %v853, %v849
    %v1114 = vpack.c.b16 %v858, %v854
    %v1115 = vpack.c.b16 %v859, %v855
    %v1116 = vpack.c.b16 %v860, %v856
    %v1117 = vpack.c.b16 %v861, %v857
    %v1118 = vpack.c.b16 %v866, %v862
    %v1119 = vpack.c.b16 %v867, %v863
    %v1120 = vpack.c.b16 %v868, %v864
    %v1121 = vpack.c.b16 %v869, %v865
    %v1122 = vpack.c.b16 %v874, %v870
    %v1123 = vpack.c.b16 %v875, %v871
    %v1124 = vpack.c.b16 %v876, %v872
    %v1125 = vpack.c.b16 %v877, %v873
    %v1126 = vpack.c.b16 %v882, %v878
    %v1127 = vpack.c.b16 %v883, %v879
    %v1128 = vpack.c.b16 %v884, %v880
    %v1129 = vpack.c.b16 %v885, %v881
    %v1130 = vpack.c.b16 %v890, %v886
    %v1131 = vpack.c.b16 %v891, %v887
    %v1132 = vpack.c.b16 %v892, %v888
    %v1133 = vpack.c.b16 %v893, %v889
    %v1134 = vpack.c.b16 %v898, %v894
    %v1135 = vpack.c.b16 %v899, %v895
    %v1136 = vpack.c.b16 %v900, %v896
    %v1137 = vpack.c.b16 %v901, %v897
    %v1138 = vpack.c.b16 %v906, %v902
    %v1139 = vpack.c.b16 %v907, %v903
    %v1140 = vpack.c.b16 %v908, %v904
    %v1141 = vpack.c.b16 %v909, %v905
    %v1142 = vpack.c.b16 %v914, %v910
    %v1143 = vpack.c.b16 %v915, %v911
    %v1144 = vpack.c.b16 %v916, %v912
    %v1145 = vpack.c.b16 %v917, %v913
    %v1146 = vpack.c.b16 %v922, %v918
    %v1147 = vpack.c.b16 %v923, %v919
    %v1148 = vpack.c.b16 %v924, %v920
    %v1149 = vpack.c.b16 %v925, %v921
    %v1150 = vpack.c.b16 %v930, %v926
    %v1151 = vpack.c.b16 %v931, %v927
    %v1152 = vpack.c.b16 %v932, %v928
    %v1153 = vpack.c.b16 %v933, %v929
    %v1154 = vpack.c.b16 %v938, %v934
    %v1155 = vpack.c.b16 %v939, %v935
    %v1156 = vpack.c.b16 %v940, %v936
    %v1157 = vpack.c.b16 %v941, %v937
    %v1158 = vpack.c.b16 %v946, %v942
    %v1159 = vpack.c.b16 %v947, %v943
    %v1160 = vpack.c.b16 %v948, %v944
    %v1161 = vpack.c.b16 %v949, %v945
    %v1162 = vpack.c.b16 %v954, %v950
    %v1163 = vpack.c.b16 %v955, %v951
    %v1164 = vpack.c.b16 %v956, %v952
    %v1165 = vpack.c.b16 %v957, %v953
    %v1166 = vpack.c.b16 %v962, %v958
    %v1167 = vpack.c.b16 %v963, %v959
    %v1168 = vpack.c.b16 %v964, %v960
    %v1169 = vpack.c.b16 %v965, %v961
    %v1170 = vpack.c.b16 %v970, %v966
    %v1171 = vpack.c.b16 %v971, %v967
    %v1172 = vpack.c.b16 %v972, %v968
    %v1173 = vpack.c.b16 %v973, %v969
    %v1174 = vpack.c.b16 %v978, %v974
    %v1175 = vpack.c.b16 %v979, %v975
    %v1176 = vpack.c.b16 %v980, %v976
    %v1177 = vpack.c.b16 %v981, %v977
    %vm1374 = vcmask 130048
    %v1376 = vsel %vm1374, %v387, 0
    %1378 = vmatprep.subr.bf16.mxu0 %v983
    %1379 = vmatpush1.bf16.msra.mxu0 %v982
    %1380 = vmatprep.subr.bf16.mxu0 %v987
    %1381 = vmatpush1.bf16.msra.mxu0 %v986
    %1382 = vmatprep.subr.bf16.mxu0 %v991
    %1383 = vmatpush1.bf16.msra.mxu0 %v990
    %1384 = vmatprep.subr.bf16.mxu0 %v995
    %1385 = vmatpush1.bf16.msra.mxu0 %v994
    %1386 = vmatprep.subr.bf16.mxu0 %v999
    %1387 = vmatpush1.bf16.msra.mxu0 %v998
    %1388 = vmatprep.subr.bf16.mxu0 %v1003
    %1389 = vmatpush1.bf16.msra.mxu0 %v1002
    %1390 = vmatprep.subr.bf16.mxu0 %v1007
    %1391 = vmatpush1.bf16.msra.mxu0 %v1006
    %1392 = vmatprep.subr.bf16.mxu0 %v1011
    %1393 = vmatpush1.bf16.msra.mxu0 %v1010
    %1394 = vmatprep.subr.bf16.mxu0 %v1015
    %1395 = vmatpush1.bf16.msra.mxu0 %v1014
    %1396 = vmatprep.subr.bf16.mxu0 %v1019
    %1397 = vmatpush1.bf16.msra.mxu0 %v1018
    %1398 = vmatprep.subr.bf16.mxu0 %v1023
    %1399 = vmatpush1.bf16.msra.mxu0 %v1022
    %1400 = vmatprep.subr.bf16.mxu0 %v1027
    %1401 = vmatpush1.bf16.msra.mxu0 %v1026
    %1402 = vmatprep.subr.bf16.mxu0 %v1031
    %1403 = vmatpush1.bf16.msra.mxu0 %v1030
    %1404 = vmatprep.subr.bf16.mxu0 %v1035
    %1405 = vmatpush1.bf16.msra.mxu0 %v1034
    %1406 = vmatprep.subr.bf16.mxu0 %v1039
    %1407 = vmatpush1.bf16.msra.mxu0 %v1038
    %1408 = vmatprep.subr.bf16.mxu0 %v1043
    %1409 = vmatpush1.bf16.msra.mxu0 %v1042
    %1410 = vmatprep.mubr.bf16.mxu0 %v382
    %1411 = vmatmul.mubr.bf16.gmra.mrb[0].mxu0 %v381
    %v1412 = vpop.f32.mrb[0].mxu0
    %v1413 = vadd.f32 %v323, %v1412
    %v1414 = vpop.f32.mrb[0].mxu0
    %v1415 = vadd.f32 %v325, %v1414
    %v1416 = vpop.f32.mrb[0].mxu0
    %v1417 = vpop.f32.mrb[0].mxu0
    %1418 = vdwg.mxu0
    %1419 = vmatprep.subr.bf16.mxu0 %v1047
    %1420 = vmatpush1.bf16.msra.mxu0 %v1046
    %1421 = vmatprep.subr.bf16.mxu0 %v1051
    %1422 = vmatpush1.bf16.msra.mxu0 %v1050
    %1423 = vmatprep.subr.bf16.mxu0 %v1055
    %1424 = vmatpush1.bf16.msra.mxu0 %v1054
    %1425 = vmatprep.subr.bf16.mxu0 %v1059
    %1426 = vmatpush1.bf16.msra.mxu0 %v1058
    %1427 = vmatprep.subr.bf16.mxu0 %v1063
    %1428 = vmatpush1.bf16.msra.mxu0 %v1062
    %1429 = vmatprep.subr.bf16.mxu0 %v1067
    %1430 = vmatpush1.bf16.msra.mxu0 %v1066
    %1431 = vmatprep.subr.bf16.mxu0 %v1071
    %1432 = vmatpush1.bf16.msra.mxu0 %v1070
    %1433 = vmatprep.subr.bf16.mxu0 %v1075
    %1434 = vmatpush1.bf16.msra.mxu0 %v1074
    %1435 = vmatprep.subr.bf16.mxu0 %v1079
    %1436 = vmatpush1.bf16.msra.mxu0 %v1078
    %1437 = vmatprep.subr.bf16.mxu0 %v1083
    %1438 = vmatpush1.bf16.msra.mxu0 %v1082
    %1439 = vmatprep.subr.bf16.mxu0 %v1087
    %1440 = vmatpush1.bf16.msra.mxu0 %v1086
    %1441 = vmatprep.subr.bf16.mxu0 %v1091
    %1442 = vmatpush1.bf16.msra.mxu0 %v1090
    %1443 = vmatprep.subr.bf16.mxu0 %v1095
    %1444 = vmatpush1.bf16.msra.mxu0 %v1094
    %1445 = vmatprep.subr.bf16.mxu0 %v1099
    %1446 = vmatpush1.bf16.msra.mxu0 %v1098
    %1447 = vmatprep.subr.bf16.mxu0 %v1103
    %1448 = vmatpush1.bf16.msra.mxu0 %v1102
    %1449 = vmatprep.subr.bf16.mxu0 %v1107
    %1450 = vmatpush1.bf16.msra.mxu0 %v1106
    %1451 = vmatprep.mubr.bf16.mxu0 %v384
    %1452 = vmatmul.mubr.bf16.gmra.mrb[0].mxu0 %v383
    %v1453 = vpop.f32.mrb[0].mxu0
    %v1454 = vadd.f32 %v1413, %v1453
    %v1455 = vpop.f32.mrb[0].mxu0
    %v1456 = vadd.f32 %v1415, %v1455
    %v1457 = vpop.f32.mrb[0].mxu0
    %v1458 = vpop.f32.mrb[0].mxu0
    %1459 = vdwg.mxu0
    %1460 = vmatprep.subr.bf16.mxu0 %v1111
    %1461 = vmatpush1.bf16.msra.mxu0 %v1110
    %1462 = vmatprep.subr.bf16.mxu0 %v1115
    %1463 = vmatpush1.bf16.msra.mxu0 %v1114
    %1464 = vmatprep.subr.bf16.mxu0 %v1119
    %1465 = vmatpush1.bf16.msra.mxu0 %v1118
    %1466 = vmatprep.subr.bf16.mxu0 %v1123
    %1467 = vmatpush1.bf16.msra.mxu0 %v1122
    %1468 = vmatprep.subr.bf16.mxu0 %v1127
    %1469 = vmatpush1.bf16.msra.mxu0 %v1126
    %1470 = vmatprep.subr.bf16.mxu0 %v1131
    %1471 = vmatpush1.bf16.msra.mxu0 %v1130
    %1472 = vmatprep.subr.bf16.mxu0 %v1135
    %1473 = vmatpush1.bf16.msra.mxu0 %v1134
    %1474 = vmatprep.subr.bf16.mxu0 %v1139
    %1475 = vmatpush1.bf16.msra.mxu0 %v1138
    %1476 = vmatprep.subr.bf16.mxu0 %v1143
    %1477 = vmatpush1.bf16.msra.mxu0 %v1142
    %1478 = vmatprep.subr.bf16.mxu0 %v1147
    %1479 = vmatpush1.bf16.msra.mxu0 %v1146
    %1480 = vmatprep.subr.bf16.mxu0 %v1151
    %1481 = vmatpush1.bf16.msra.mxu0 %v1150
    %1482 = vmatprep.subr.bf16.mxu0 %v1155
    %1483 = vmatpush1.bf16.msra.mxu0 %v1154
    %1484 = vmatprep.subr.bf16.mxu0 %v1159
    %1485 = vmatpush1.bf16.msra.mxu0 %v1158
    %1486 = vmatprep.subr.bf16.mxu0 %v1163
    %1487 = vmatpush1.bf16.msra.mxu0 %v1162
    %1488 = vmatprep.subr.bf16.mxu0 %v1167
    %1489 = vmatpush1.bf16.msra.mxu0 %v1166
    %1490 = vmatprep.subr.bf16.mxu0 %v1171
    %1491 = vmatpush1.bf16.msra.mxu0 %v1170
    %1492 = vmatprep.mubr.bf16.mxu0 %v386
    %1493 = vmatmul.mubr.bf16.gmra.mrb[0].mxu0 %v385
    %v1494 = vpop.f32.mrb[0].mxu0
    %v1495 = vadd.f32 %v1454, %v1494
    %v1496 = vpop.f32.mrb[0].mxu0
    %v1497 = vadd.f32 %v1456, %v1496
    %v1498 = vpop.f32.mrb[0].mxu0
    %v1499 = vpop.f32.mrb[0].mxu0
    %1500 = vdwg.mxu0
    %1501 = vmatprep.subr.bf16.mxu0 %v1175
    %1502 = vmatpush1.bf16.msra.mxu0 %v1174
    %1503 = vmatprep.subr.bf16.mxu0 0
    %1504 = vmatpush1.bf16.msra.mxu0 0
    %1505 = vmatprep.subr.bf16.mxu0 0
    %1506 = vmatpush1.bf16.msra.mxu0 0
    %1507 = vmatprep.subr.bf16.mxu0 0
    %1508 = vmatpush1.bf16.msra.mxu0 0
    %1509 = vmatprep.subr.bf16.mxu0 0
    %1510 = vmatpush1.bf16.msra.mxu0 0
    %1511 = vmatprep.subr.bf16.mxu0 0
    %1512 = vmatpush1.bf16.msra.mxu0 0
    %1513 = vmatprep.subr.bf16.mxu0 0
    %1514 = vmatpush1.bf16.msra.mxu0 0
    %1515 = vmatprep.subr.bf16.mxu0 0
    %1516 = vmatpush1.bf16.msra.mxu0 0
    %1517 = vmatprep.subr.bf16.mxu0 0
    %1518 = vmatpush1.bf16.msra.mxu0 0
    %1519 = vmatprep.subr.bf16.mxu0 0
    %1520 = vmatpush1.bf16.msra.mxu0 0
    %1521 = vmatprep.subr.bf16.mxu0 0
    %1522 = vmatpush1.bf16.msra.mxu0 0
    %1523 = vmatprep.subr.bf16.mxu0 0
    %1524 = vmatpush1.bf16.msra.mxu0 0
    %1525 = vmatprep.subr.bf16.mxu0 0
    %1526 = vmatpush1.bf16.msra.mxu0 0
    %1527 = vmatprep.subr.bf16.mxu0 0
    %1528 = vmatpush1.bf16.msra.mxu0 0
    %1529 = vmatprep.subr.bf16.mxu0 0
    %1530 = vmatpush1.bf16.msra.mxu0 0
    %1531 = vmatprep.subr.bf16.mxu0 0
    %1532 = vmatpush1.bf16.msra.mxu0 0
    %1533 = vmatprep.mubr.bf16.mxu0 0
    %1534 = vmatmul.mubr.bf16.gmra.mrb[0].mxu0 %v1376
    %v1535 = vpop.f32.mrb[0].mxu0
    %v1536 = vadd.f32 %v1495, %v1535
    %v1537 = vpop.f32.mrb[0].mxu0
    %v1538 = vadd.f32 %v1497, %v1537
    %v1539 = vpop.f32.mrb[0].mxu0
    %v1540 = vpop.f32.mrb[0].mxu0
    %1541 = vdwg.mxu0
    %1542 = vmatprep.subr.bf16.mxu0 %v985
    %1543 = vmatpush1.bf16.msra.mxu0 %v984
    %1544 = vmatprep.subr.bf16.mxu0 %v989
    %1545 = vmatpush1.bf16.msra.mxu0 %v988
    %1546 = vmatprep.subr.bf16.mxu0 %v993
    %1547 = vmatpush1.bf16.msra.mxu0 %v992
    %1548 = vmatprep.subr.bf16.mxu0 %v997
    %1549 = vmatpush1.bf16.msra.mxu0 %v996
    %1550 = vmatprep.subr.bf16.mxu0 %v1001
    %1551 = vmatpush1.bf16.msra.mxu0 %v1000
    %1552 = vmatprep.subr.bf16.mxu0 %v1005
    %1553 = vmatpush1.bf16.msra.mxu0 %v1004
    %1554 = vmatprep.subr.bf16.mxu0 %v1009
    %1555 = vmatpush1.bf16.msra.mxu0 %v1008
    %1556 = vmatprep.subr.bf16.mxu0 %v1013
    %1557 = vmatpush1.bf16.msra.mxu0 %v1012
    %1558 = vmatprep.subr.bf16.mxu0 %v1017
    %1559 = vmatpush1.bf16.msra.mxu0 %v1016
    %1560 = vmatprep.subr.bf16.mxu0 %v1021
    %1561 = vmatpush1.bf16.msra.mxu0 %v1020
    %1562 = vmatprep.subr.bf16.mxu0 %v1025
    %1563 = vmatpush1.bf16.msra.mxu0 %v1024
    %1564 = vmatprep.subr.bf16.mxu0 %v1029
    %1565 = vmatpush1.bf16.msra.mxu0 %v1028
    %1566 = vmatprep.subr.bf16.mxu0 %v1033
    %1567 = vmatpush1.bf16.msra.mxu0 %v1032
    %1568 = vmatprep.subr.bf16.mxu0 %v1037
    %1569 = vmatpush1.bf16.msra.mxu0 %v1036
    %1570 = vmatprep.subr.bf16.mxu0 %v1041
    %1571 = vmatpush1.bf16.msra.mxu0 %v1040
    %1572 = vmatprep.subr.bf16.mxu0 %v1045
    %1573 = vmatpush1.bf16.msra.mxu0 %v1044
    %1574 = vmatprep.mubr.bf16.mxu0 %v382
    %1575 = vmatmul.mubr.bf16.gmra.mrb[0].mxu0 %v381
    %v1576 = vpop.f32.mrb[0].mxu0
    %v1577 = vadd.f32 %v364, %v1576
    %v1578 = vpop.f32.mrb[0].mxu0
    %v1579 = vadd.f32 %v366, %v1578
    %v1580 = vpop.f32.mrb[0].mxu0
    %v1581 = vpop.f32.mrb[0].mxu0
    %1582 = vdwg.mxu0
    %1583 = vmatprep.subr.bf16.mxu0 %v1049
    %1584 = vmatpush1.bf16.msra.mxu0 %v1048
    %1585 = vmatprep.subr.bf16.mxu0 %v1053
    %1586 = vmatpush1.bf16.msra.mxu0 %v1052
    %1587 = vmatprep.subr.bf16.mxu0 %v1057
    %1588 = vmatpush1.bf16.msra.mxu0 %v1056
    %1589 = vmatprep.subr.bf16.mxu0 %v1061
    %1590 = vmatpush1.bf16.msra.mxu0 %v1060
    %1591 = vmatprep.subr.bf16.mxu0 %v1065
    %1592 = vmatpush1.bf16.msra.mxu0 %v1064
    %1593 = vmatprep.subr.bf16.mxu0 %v1069
    %1594 = vmatpush1.bf16.msra.mxu0 %v1068
    %1595 = vmatprep.subr.bf16.mxu0 %v1073
    %1596 = vmatpush1.bf16.msra.mxu0 %v1072
    %1597 = vmatprep.subr.bf16.mxu0 %v1077
    %1598 = vmatpush1.bf16.msra.mxu0 %v1076
    %1599 = vmatprep.subr.bf16.mxu0 %v1081
    %1600 = vmatpush1.bf16.msra.mxu0 %v1080
    %1601 = vmatprep.subr.bf16.mxu0 %v1085
    %1602 = vmatpush1.bf16.msra.mxu0 %v1084
    %1603 = vmatprep.subr.bf16.mxu0 %v1089
    %1604 = vmatpush1.bf16.msra.mxu0 %v1088
    %1605 = vmatprep.subr.bf16.mxu0 %v1093
    %1606 = vmatpush1.bf16.msra.mxu0 %v1092
    %1607 = vmatprep.subr.bf16.mxu0 %v1097
    %1608 = vmatpush1.bf16.msra.mxu0 %v1096
    %1609 = vmatprep.subr.bf16.mxu0 %v1101
    %1610 = vmatpush1.bf16.msra.mxu0 %v1100
    %1611 = vmatprep.subr.bf16.mxu0 %v1105
    %1612 = vmatpush1.bf16.msra.mxu0 %v1104
    %1613 = vmatprep.subr.bf16.mxu0 %v1109
    %1614 = vmatpush1.bf16.msra.mxu0 %v1108
    %1615 = vmatprep.mubr.bf16.mxu0 %v384
    %1616 = vmatmul.mubr.bf16.gmra.mrb[0].mxu0 %v383
    %v1617 = vpop.f32.mrb[0].mxu0
    %v1618 = vadd.f32 %v1577, %v1617
    %v1619 = vpop.f32.mrb[0].mxu0
    %v1620 = vadd.f32 %v1579, %v1619
    %v1621 = vpop.f32.mrb[0].mxu0
    %v1622 = vpop.f32.mrb[0].mxu0
    %1623 = vdwg.mxu0
    %1624 = vmatprep.subr.bf16.mxu0 %v1113
    %1625 = vmatpush1.bf16.msra.mxu0 %v1112
    %1626 = vmatprep.subr.bf16.mxu0 %v1117
    %1627 = vmatpush1.bf16.msra.mxu0 %v1116
    %1628 = vmatprep.subr.bf16.mxu0 %v1121
    %1629 = vmatpush1.bf16.msra.mxu0 %v1120
    %1630 = vmatprep.subr.bf16.mxu0 %v1125
    %1631 = vmatpush1.bf16.msra.mxu0 %v1124
    %1632 = vmatprep.subr.bf16.mxu0 %v1129
    %1633 = vmatpush1.bf16.msra.mxu0 %v1128
    %1634 = vmatprep.subr.bf16.mxu0 %v1133
    %1635 = vmatpush1.bf16.msra.mxu0 %v1132
    %1636 = vmatprep.subr.bf16.mxu0 %v1137
    %1637 = vmatpush1.bf16.msra.mxu0 %v1136
    %1638 = vmatprep.subr.bf16.mxu0 %v1141
    %1639 = vmatpush1.bf16.msra.mxu0 %v1140
    %1640 = vmatprep.subr.bf16.mxu0 %v1145
    %1641 = vmatpush1.bf16.msra.mxu0 %v1144
    %1642 = vmatprep.subr.bf16.mxu0 %v1149
    %1643 = vmatpush1.bf16.msra.mxu0 %v1148
    %1644 = vmatprep.subr.bf16.mxu0 %v1153
    %1645 = vmatpush1.bf16.msra.mxu0 %v1152
    %1646 = vmatprep.subr.bf16.mxu0 %v1157
    %1647 = vmatpush1.bf16.msra.mxu0 %v1156
    %1648 = vmatprep.subr.bf16.mxu0 %v1161
    %1649 = vmatpush1.bf16.msra.mxu0 %v1160
    %1650 = vmatprep.subr.bf16.mxu0 %v1165
    %1651 = vmatpush1.bf16.msra.mxu0 %v1164
    %1652 = vmatprep.subr.bf16.mxu0 %v1169
    %1653 = vmatpush1.bf16.msra.mxu0 %v1168
    %1654 = vmatprep.subr.bf16.mxu0 %v1173
    %1655 = vmatpush1.bf16.msra.mxu0 %v1172
    %1656 = vmatprep.mubr.bf16.mxu0 %v386
    %1657 = vmatmul.mubr.bf16.gmra.mrb[0].mxu0 %v385
    %v1658 = vpop.f32.mrb[0].mxu0
    %v1659 = vadd.f32 %v1618, %v1658
    %v1660 = vpop.f32.mrb[0].mxu0
    %v1661 = vadd.f32 %v1620, %v1660
    %v1662 = vpop.f32.mrb[0].mxu0
    %v1663 = vpop.f32.mrb[0].mxu0
    %1664 = vdwg.mxu0
    %1665 = vmatprep.subr.bf16.mxu0 %v1177
    %1666 = vmatpush1.bf16.msra.mxu0 %v1176
    %1667 = vmatprep.subr.bf16.mxu0 0
    %1668 = vmatpush1.bf16.msra.mxu0 0
    %1669 = vmatprep.subr.bf16.mxu0 0
    %1670 = vmatpush1.bf16.msra.mxu0 0
    %1671 = vmatprep.subr.bf16.mxu0 0
    %1672 = vmatpush1.bf16.msra.mxu0 0
    %1673 = vmatprep.subr.bf16.mxu0 0
    %1674 = vmatpush1.bf16.msra.mxu0 0
    %1675 = vmatprep.subr.bf16.mxu0 0
    %1676 = vmatpush1.bf16.msra.mxu0 0
    %1677 = vmatprep.subr.bf16.mxu0 0
    %1678 = vmatpush1.bf16.msra.mxu0 0
    %1679 = vmatprep.subr.bf16.mxu0 0
    %1680 = vmatpush1.bf16.msra.mxu0 0
    %1681 = vmatprep.subr.bf16.mxu0 0
    %1682 = vmatpush1.bf16.msra.mxu0 0
    %1683 = vmatprep.subr.bf16.mxu0 0
    %1684 = vmatpush1.bf16.msra.mxu0 0
    %1685 = vmatprep.subr.bf16.mxu0 0
    %1686 = vmatpush1.bf16.msra.mxu0 0
    %1687 = vmatprep.subr.bf16.mxu0 0
    %1688 = vmatpush1.bf16.msra.mxu0 0
    %1689 = vmatprep.subr.bf16.mxu0 0
    %1690 = vmatpush1.bf16.msra.mxu0 0
    %1691 = vmatprep.subr.bf16.mxu0 0
    %1692 = vmatpush1.bf16.msra.mxu0 0
    %1693 = vmatprep.subr.bf16.mxu0 0
    %1694 = vmatpush1.bf16.msra.mxu0 0
    %1695 = vmatprep.subr.bf16.mxu0 0
    %1696 = vmatpush1.bf16.msra.mxu0 0
    %1697 = vmatprep.mubr.bf16.mxu0 0
    %1698 = vmatmul.mubr.bf16.gmra.mrb[0].mxu0 %v1376
    %v1699 = vpop.f32.mrb[0].mxu0
    %v1700 = vadd.f32 %v1659, %v1699
    %v1701 = vpop.f32.mrb[0].mxu0
    %v1702 = vadd.f32 %v1661, %v1701
    %v1703 = vpop.f32.mrb[0].mxu0
    %v1704 = vpop.f32.mrb[0].mxu0
    %1705 = vdwg.mxu0
    %v1706 = vld [vmem:[%s5] sm:$0xf]
    %v1708 = vlaneseq
    %v1709 = vshrl.u32 %v1708, 7
    %v1710 = vsub.s32 0, %v1709
    %v1711 = vrot.slane %v1706, %v1710
    %v1712 = vlaneseq
    %v1713 = vshrl.u32 %v1712, 7
    %v1714 = vsub.s32 1, %v1713
    %v1715 = vrot.slane %v1706, %v1714
    %v1716 = vlaneseq
    %v1717 = vshrl.u32 %v1716, 7
    %v1718 = vsub.s32 2, %v1717
    %v1719 = vrot.slane %v1706, %v1718
    %v1720 = vlaneseq
    %v1721 = vshrl.u32 %v1720, 7
    %v1722 = vsub.s32 3, %v1721
    %v1723 = vrot.slane %v1706, %v1722
    %v1728 = vadd.f32 %v1536, %v1711
    %v1729 = vadd.f32 %v1538, %v1715
    %v1730 = vadd.f32 %v1700, %v1719
    %v1731 = vadd.f32 %v1702, %v1723
    %v1732 = vmax.f32 %v1728, 0.0
    %v1733 = vmax.f32 %v1729, 0.0
    %v1734 = vmax.f32 %v1730, 0.0
    %v1735 = vmax.f32 %v1731, 0.0
    %v1736 = vpack.c.bf16 %v1732, %v1732
    %v1737 = vpack.c.bf16 %v1733, %v1733
    %v1738 = vpack.c.bf16 %v1734, %v1734
    %v1739 = vpack.c.bf16 %v1735, %v1735
    %v1740 = vld [vmem:[%s6] sm:$0xf]
    %v1741 = vld [vmem:[%s6 + $0x4] sm:$0xf]
    %v1742 = vld [vmem:[%s6 + $0x8] sm:$0xf]
    %v1743 = vld [vmem:[%s6 + $0xc] sm:$0xf]
    %v1744 = vld [vmem:[%s6 + $0x10] sm:$0xf]
    %v1745 = vld [vmem:[%s6 + $0x14] sm:$0xf]
    %v1746 = vld [vmem:[%s6 + $0x18] sm:$0xf]
    %v1747 = vld [vmem:[%s6 + $0x1c] sm:$0xf]
    %v1748 = vld [vmem:[%s6 + $0x20] sm:$0xf]
    %v1749 = vld [vmem:[%s6 + $0x24] sm:$0xf]
    %v1750 = vld [vmem:[%s6 + $0x28] sm:$0xf]
    %v1751 = vld [vmem:[%s6 + $0x2c] sm:$0xf]
    %v1752 = vld [vmem:[%s6 + $0x30] sm:$0xf]
    %v1753 = vld [vmem:[%s6 + $0x34] sm:$0xf]
    %v1754 = vld [vmem:[%s6 + $0x38] sm:$0xf]
    %v1755 = vld [vmem:[%s6 + $0x3c] sm:$0xf]
    %v1756 = vld [vmem:[%s6 + $0x40] sm:$0xf]
    %v1757 = vld [vmem:[%s6 + $0x44] sm:$0xf]
    %v1758 = vld [vmem:[%s6 + $0x48] sm:$0xf]
    %v1759 = vld [vmem:[%s6 + $0x4c] sm:$0xf]
    %v1760 = vld [vmem:[%s6 + $0x50] sm:$0xf]
    %v1761 = vld [vmem:[%s6 + $0x54] sm:$0xf]
    %v1762 = vld [vmem:[%s6 + $0x58] sm:$0xf]
    %v1763 = vld [vmem:[%s6 + $0x5c] sm:$0xf]
    %v1764 = vld [vmem:[%s6 + $0x60] sm:$0xf]
    %v1765 = vld [vmem:[%s6 + $0x64] sm:$0xf]
    %v1766 = vld [vmem:[%s6 + $0x68] sm:$0xf]
    %v1767 = vld [vmem:[%s6 + $0x6c] sm:$0xf]
    %v1768 = vld [vmem:[%s6 + $0x70] sm:$0xf]
    %v1769 = vld [vmem:[%s6 + $0x74] sm:$0xf]
    %v1770 = vld [vmem:[%s6 + $0x78] sm:$0xf]
    %v1771 = vld [vmem:[%s6 + $0x7c] sm:$0xf]
    %v1772 = vld [vmem:[%s6 + $0x80] sm:$0xf]
    %v1773 = vld [vmem:[%s6 + $0x84] sm:$0xf]
    %v1774 = vld [vmem:[%s6 + $0x88] sm:$0xf]
    %v1775 = vld [vmem:[%s6 + $0x8c] sm:$0xf]
    %v1776 = vld [vmem:[%s6 + $0x90] sm:$0xf]
    %v1777 = vld [vmem:[%s6 + $0x94] sm:$0xf]
    %v1778 = vld [vmem:[%s6 + $0x98] sm:$0xf]
    %v1779 = vld [vmem:[%s6 + $0x9c] sm:$0xf]
    %v1780 = vld [vmem:[%s6 + $0xa0] sm:$0xf]
    %v1781 = vld [vmem:[%s6 + $0xa4] sm:$0xf]
    %v1782 = vld [vmem:[%s6 + $0xa8] sm:$0xf]
    %v1783 = vld [vmem:[%s6 + $0xac] sm:$0xf]
    %v1784 = vld [vmem:[%s6 + $0xb0] sm:$0xf]
    %v1785 = vld [vmem:[%s6 + $0xb4] sm:$0xf]
    %v1786 = vld [vmem:[%s6 + $0xb8] sm:$0xf]
    %v1787 = vld [vmem:[%s6 + $0xbc] sm:$0xf]
    %v1788 = vld [vmem:[%s6 + $0xc0] sm:$0xf]
    %v1789 = vld [vmem:[%s6 + $0xc4] sm:$0xf]
    %v1790 = vld [vmem:[%s7] sm:$0x1]
    %v1792 = vlaneseq
    %v1793 = vshrl.u32 %v1792, 7
    %v1794 = vsub.s32 0, %v1793
    %v1795 = vrot.slane %v1790, %v1794
    %v1847 = vunpack.c.l.b16 %v1740
    %v1848 = vunpack.c.l.b16 %v1741
    %v1849 = vunpack.c.l.b16 %v1742
    %v1850 = vunpack.c.l.b16 %v1743
    %v1851 = vunpack.c.l.b16 %v1744
    %v1852 = vunpack.c.l.b16 %v1745
    %v1853 = vunpack.c.l.b16 %v1746
    %v1854 = vunpack.c.l.b16 %v1747
    %v1855 = vunpack.c.l.b16 %v1748
    %v1856 = vunpack.c.l.b16 %v1749
    %v1857 = vunpack.c.l.b16 %v1750
    %v1858 = vunpack.c.l.b16 %v1751
    %v1859 = vunpack.c.l.b16 %v1752
    %v1860 = vunpack.c.l.b16 %v1753
    %v1861 = vunpack.c.l.b16 %v1754
    %v1862 = vunpack.c.l.b16 %v1755
    %v1863 = vunpack.c.l.b16 %v1756
    %v1864 = vunpack.c.l.b16 %v1757
    %v1865 = vunpack.c.l.b16 %v1758
    %v1866 = vunpack.c.l.b16 %v1759
    %v1867 = vunpack.c.l.b16 %v1760
    %v1868 = vunpack.c.l.b16 %v1761
    %v1869 = vunpack.c.l.b16 %v1762
    %v1870 = vunpack.c.l.b16 %v1763
    %v1871 = vunpack.c.l.b16 %v1764
    %v1872 = vunpack.c.l.b16 %v1765
    %v1873 = vunpack.c.l.b16 %v1766
    %v1874 = vunpack.c.l.b16 %v1767
    %v1875 = vunpack.c.l.b16 %v1768
    %v1876 = vunpack.c.l.b16 %v1769
    %v1877 = vunpack.c.l.b16 %v1770
    %v1878 = vunpack.c.l.b16 %v1771
    %v1879 = vunpack.c.l.b16 %v1772
    %v1880 = vunpack.c.l.b16 %v1773
    %v1881 = vunpack.c.l.b16 %v1774
    %v1882 = vunpack.c.l.b16 %v1775
    %v1883 = vunpack.c.l.b16 %v1776
    %v1884 = vunpack.c.l.b16 %v1777
    %v1885 = vunpack.c.l.b16 %v1778
    %v1886 = vunpack.c.l.b16 %v1779
    %v1887 = vunpack.c.l.b16 %v1780
    %v1888 = vunpack.c.l.b16 %v1781
    %v1889 = vunpack.c.l.b16 %v1782
    %v1890 = vunpack.c.l.b16 %v1783
    %v1891 = vunpack.c.l.b16 %v1784
    %v1892 = vunpack.c.l.b16 %v1785
    %v1893 = vunpack.c.l.b16 %v1786
    %v1894 = vunpack.c.l.b16 %v1787
    %v1895 = vunpack.c.l.b16 %v1788
    %v1896 = vunpack.c.l.b16 %v1789
    %v1897 = vpack.c.b16 %v1848, %v1847
    %v1898 = vpack.c.b16 %v1850, %v1849
    %v1899 = vpack.c.b16 %v1852, %v1851
    %v1900 = vpack.c.b16 %v1854, %v1853
    %v1901 = vpack.c.b16 %v1856, %v1855
    %v1902 = vpack.c.b16 %v1858, %v1857
    %v1903 = vpack.c.b16 %v1860, %v1859
    %v1904 = vpack.c.b16 %v1862, %v1861
    %v1905 = vpack.c.b16 %v1864, %v1863
    %v1906 = vpack.c.b16 %v1866, %v1865
    %v1907 = vpack.c.b16 %v1868, %v1867
    %v1908 = vpack.c.b16 %v1870, %v1869
    %v1909 = vpack.c.b16 %v1872, %v1871
    %v1910 = vpack.c.b16 %v1874, %v1873
    %v1911 = vpack.c.b16 %v1876, %v1875
    %v1912 = vpack.c.b16 %v1878, %v1877
    %v1913 = vpack.c.b16 %v1880, %v1879
    %v1914 = vpack.c.b16 %v1882, %v1881
    %v1915 = vpack.c.b16 %v1884, %v1883
    %v1916 = vpack.c.b16 %v1886, %v1885
    %v1917 = vpack.c.b16 %v1888, %v1887
    %v1918 = vpack.c.b16 %v1890, %v1889
    %v1919 = vpack.c.b16 %v1892, %v1891
    %v1920 = vpack.c.b16 %v1894, %v1893
    %v1921 = vpack.c.b16 %v1896, %v1895
    %v1948 = vsel %vm1374, %v1739, 0
    %1950 = vmatprep.subr.bf16.mxu0 0
    %1951 = vmatpush1.bf16.msra.mxu0 %v1897
    %1952 = vmatprep.subr.bf16.mxu0 0
    %1953 = vmatpush1.bf16.msra.mxu0 %v1898
    %1954 = vmatprep.subr.bf16.mxu0 0
    %1955 = vmatpush1.bf16.msra.mxu0 %v1899
    %1956 = vmatprep.subr.bf16.mxu0 0
    %1957 = vmatpush1.bf16.msra.mxu0 %v1900
    %1958 = vmatprep.subr.bf16.mxu0 0
    %1959 = vmatpush1.bf16.msra.mxu0 %v1901
    %1960 = vmatprep.subr.bf16.mxu0 0
    %1961 = vmatpush1.bf16.msra.mxu0 %v1902
    %1962 = vmatprep.subr.bf16.mxu0 0
    %1963 = vmatpush1.bf16.msra.mxu0 %v1903
    %1964 = vmatprep.subr.bf16.mxu0 0
    %1965 = vmatpush1.bf16.msra.mxu0 %v1904
    %1966 = vmatprep.subr.bf16.mxu0 0
    %1967 = vmatpush1.bf16.msra.mxu0 %v1905
    %1968 = vmatprep.subr.bf16.mxu0 0
    %1969 = vmatpush1.bf16.msra.mxu0 %v1906
    %1970 = vmatprep.subr.bf16.mxu0 0
    %1971 = vmatpush1.bf16.msra.mxu0 %v1907
    %1972 = vmatprep.subr.bf16.mxu0 0
    %1973 = vmatpush1.bf16.msra.mxu0 %v1908
    %1974 = vmatprep.subr.bf16.mxu0 0
    %1975 = vmatpush1.bf16.msra.mxu0 %v1909
    %1976 = vmatprep.subr.bf16.mxu0 0
    %1977 = vmatpush1.bf16.msra.mxu0 %v1910
    %1978 = vmatprep.subr.bf16.mxu0 0
    %1979 = vmatpush1.bf16.msra.mxu0 %v1911
    %1980 = vmatprep.subr.bf16.mxu0 0
    %1981 = vmatpush1.bf16.msra.mxu0 %v1912
    %1982 = vmatprep.mubr.bf16.mxu0 %v1737
    %1983 = vmatmul.mubr.bf16.gmra.mrb[0].mxu0 %v1736
    %v1984 = vpop.f32.mrb[0].mxu0
    %v1985 = vadd.f32 %v1795, %v1984
    %v1986 = vpop.f32.mrb[0].mxu0
    %v1987 = vpop.f32.mrb[0].mxu0
    %v1988 = vpop.f32.mrb[0].mxu0
    %1989 = vdwg.mxu0
    %1990 = vmatprep.subr.bf16.mxu0 0
    %1991 = vmatpush1.bf16.msra.mxu0 %v1913
    %1992 = vmatprep.subr.bf16.mxu0 0
    %1993 = vmatpush1.bf16.msra.mxu0 %v1914
    %1994 = vmatprep.subr.bf16.mxu0 0
    %1995 = vmatpush1.bf16.msra.mxu0 %v1915
    %1996 = vmatprep.subr.bf16.mxu0 0
    %1997 = vmatpush1.bf16.msra.mxu0 %v1916
    %1998 = vmatprep.subr.bf16.mxu0 0
    %1999 = vmatpush1.bf16.msra.mxu0 %v1917
    %2000 = vmatprep.subr.bf16.mxu0 0
    %2001 = vmatpush1.bf16.msra.mxu0 %v1918
    %2002 = vmatprep.subr.bf16.mxu0 0
    %2003 = vmatpush1.bf16.msra.mxu0 %v1919
    %2004 = vmatprep.subr.bf16.mxu0 0
    %2005 = vmatpush1.bf16.msra.mxu0 %v1920
    %2006 = vmatprep.subr.bf16.mxu0 0
    %2007 = vmatpush1.bf16.msra.mxu0 %v1921
    %2008 = vmatprep.subr.bf16.mxu0 0
    %2009 = vmatpush1.bf16.msra.mxu0 0
    %2010 = vmatprep.subr.bf16.mxu0 0
    %2011 = vmatpush1.bf16.msra.mxu0 0
    %2012 = vmatprep.subr.bf16.mxu0 0
    %2013 = vmatpush1.bf16.msra.mxu0 0
    %2014 = vmatprep.subr.bf16.mxu0 0
    %2015 = vmatpush1.bf16.msra.mxu0 0
    %2016 = vmatprep.subr.bf16.mxu0 0
    %2017 = vmatpush1.bf16.msra.mxu0 0
    %2018 = vmatprep.subr.bf16.mxu0 0
    %2019 = vmatpush1.bf16.msra.mxu0 0
    %2020 = vmatprep.subr.bf16.mxu0 0
    %2021 = vmatpush1.bf16.msra.mxu0 0
    %2022 = vmatprep.mubr.bf16.mxu0 %v1948
    %2023 = vmatmul.mubr.bf16.gmra.mrb[0].mxu0 %v1738
    %v2024 = vpop.f32.mrb[0].mxu0
    %v2025 = vadd.f32 %v1985, %v2024
    %v2026 = vpop.f32.mrb[0].mxu0
    %v2027 = vpop.f32.mrb[0].mxu0
    %v2028 = vpop.f32.mrb[0].mxu0
    %2029 = vdwg.mxu0
    %v2030 = vmul.f32 %v2025, 0.5
    %v2031 = vmul.f32 %v2030, 1.442695
    %v2032 = vpow.pop %v2031
    %2034 = vrot.lane.b32.xlu0 %v2032, 108
    %v2035 = vpop.permute.xlu0 %2034
    %v2037 = vmul.f32 %v53, %v2035
    %v2038 = vadd.f32 %v2025, %v2037
    %v2039 = vpack.c.bf16 %v2038, %v2038
    %v2040 = vld [vmem:[%s8] sm:$0xff]
    %v2041 = vld [vmem:[%s8 + $0x8] sm:$0xff]
    %v2042 = vld [vmem:[%s8 + $0x10] sm:$0xff]
    %v2043 = vld [vmem:[%s8 + $0x18] sm:$0xff]
    %v2044 = vld [vmem:[%s8 + $0x20] sm:$0x33]
    %v2045 = vld [vmem:[%s8 + $0x28] sm:$0x33]
    %v2046 = vld [vmem:[%s9] sm:$0xff]
    %v2047 = vld [vmem:[%s9 + $0x8] sm:$0xff]
    %v2048 = vld [vmem:[%s9 + $0x10] sm:$0x11]
    %v2049 = vld [vmem:[%s9 + $0x18] sm:$0x11]
    %v2054 = vunpack.c.l.b16 %v2046
    %v2055 = vunpack.c.h.b16 %v2046
    %v2056 = vunpack.c.l.b16 %v2047
    %v2057 = vunpack.c.h.b16 %v2047
    %v2058 = vunpack.c.l.b16 %v2048
    %v2059 = vunpack.c.h.b16 %v2048
    %v2060 = vunpack.c.l.b16 %v2049
    %v2061 = vunpack.c.h.b16 %v2049
    %v2062 = vpack.c.b16 %v2058, %v2054
    %v2063 = vpack.c.b16 %v2059, %v2055
    %v2064 = vpack.c.b16 %v2060, %v2056
    %v2065 = vpack.c.b16 %v2061, %v2057
    %v2067 = vsel %vm275, %v2062, 0
    %v2070 = vsel %vm275, %v2063, 0
    %v2073 = vsel %vm275, %v2064, 0
    %v2076 = vsel %vm275, %v2065, 0
    %2078 = vmatprep.subr.bf16.mxu0 %v2070
    %2079 = vmatpush1.bf16.msra.mxu0 %v2067
    %2080 = vmatprep.subr.bf16.mxu0 0
    %2081 = vmatpush1.bf16.msra.mxu0 0
    %2082 = vmatprep.subr.bf16.mxu0 0
    %2083 = vmatpush1.bf16.msra.mxu0 0
    %2084 = vmatprep.subr.bf16.mxu0 0
    %2085 = vmatpush1.bf16.msra.mxu0 0
    %2086 = vmatprep.subr.bf16.mxu0 0
    %2087 = vmatpush1.bf16.msra.mxu0 0
    %2088 = vmatprep.subr.bf16.mxu0 0
    %2089 = vmatpush1.bf16.msra.mxu0 0
    %2090 = vmatprep.subr.bf16.mxu0 0
    %2091 = vmatpush1.bf16.msra.mxu0 0
    %2092 = vmatprep.subr.bf16.mxu0 0
    %2093 = vmatpush1.bf16.msra.mxu0 0
    %2094 = vmatprep.subr.bf16.mxu0 0
    %2095 = vmatpush1.bf16.msra.mxu0 0
    %2096 = vmatprep.subr.bf16.mxu0 0
    %2097 = vmatpush1.bf16.msra.mxu0 0
    %2098 = vmatprep.subr.bf16.mxu0 0
    %2099 = vmatpush1.bf16.msra.mxu0 0
    %2100 = vmatprep.subr.bf16.mxu0 0
    %2101 = vmatpush1.bf16.msra.mxu0 0
    %2102 = vmatprep.subr.bf16.mxu0 0
    %2103 = vmatpush1.bf16.msra.mxu0 0
    %2104 = vmatprep.subr.bf16.mxu0 0
    %2105 = vmatpush1.bf16.msra.mxu0 0
    %2106 = vmatprep.subr.bf16.mxu0 0
    %2107 = vmatpush1.bf16.msra.mxu0 0
    %2108 = vmatprep.subr.bf16.mxu0 0
    %2109 = vmatpush1.bf16.msra.mxu0 0
    %2110 = vmatprep.mubr.bf16.mxu0 0
    %2111 = vmatmul.mubr.bf16.gmra.mrb[0].mxu0 %v273
    %v2112 = vpop.f32.mrb[0].mxu0
    %v2113 = vadd.f32 0.0, %v2112
    %v2114 = vpop.f32.mrb[0].mxu0
    %v2115 = vadd.f32 0.0, %v2114
    %v2116 = vpop.f32.mrb[0].mxu0
    %v2117 = vpop.f32.mrb[0].mxu0
    %2118 = vdwg.mxu0
    %2119 = vmatprep.subr.bf16.mxu0 %v2076
    %2120 = vmatpush1.bf16.msra.mxu0 %v2073
    %2121 = vmatprep.subr.bf16.mxu0 0
    %2122 = vmatpush1.bf16.msra.mxu0 0
    %2123 = vmatprep.subr.bf16.mxu0 0
    %2124 = vmatpush1.bf16.msra.mxu0 0
    %2125 = vmatprep.subr.bf16.mxu0 0
    %2126 = vmatpush1.bf16.msra.mxu0 0
    %2127 = vmatprep.subr.bf16.mxu0 0
    %2128 = vmatpush1.bf16.msra.mxu0 0
    %2129 = vmatprep.subr.bf16.mxu0 0
    %2130 = vmatpush1.bf16.msra.mxu0 0
    %2131 = vmatprep.subr.bf16.mxu0 0
    %2132 = vmatpush1.bf16.msra.mxu0 0
    %2133 = vmatprep.subr.bf16.mxu0 0
    %2134 = vmatpush1.bf16.msra.mxu0 0
    %2135 = vmatprep.subr.bf16.mxu0 0
    %2136 = vmatpush1.bf16.msra.mxu0 0
    %2137 = vmatprep.subr.bf16.mxu0 0
    %2138 = vmatpush1.bf16.msra.mxu0 0
    %2139 = vmatprep.subr.bf16.mxu0 0
    %2140 = vmatpush1.bf16.msra.mxu0 0
    %2141 = vmatprep.subr.bf16.mxu0 0
    %2142 = vmatpush1.bf16.msra.mxu0 0
    %2143 = vmatprep.subr.bf16.mxu0 0
    %2144 = vmatpush1.bf16.msra.mxu0 0
    %2145 = vmatprep.subr.bf16.mxu0 0
    %2146 = vmatpush1.bf16.msra.mxu0 0
    %2147 = vmatprep.subr.bf16.mxu0 0
    %2148 = vmatpush1.bf16.msra.mxu0 0
    %2149 = vmatprep.subr.bf16.mxu0 0
    %2150 = vmatpush1.bf16.msra.mxu0 0
    %2151 = vmatprep.mubr.bf16.mxu0 0
    %2152 = vmatmul.mubr.bf16.gmra.mrb[0].mxu0 %v273
    %v2153 = vpop.f32.mrb[0].mxu0
    %v2154 = vadd.f32 0.0, %v2153
    %v2155 = vpop.f32.mrb[0].mxu0
    %v2156 = vadd.f32 0.0, %v2155
    %v2157 = vpop.f32.mrb[0].mxu0
    %v2158 = vpop.f32.mrb[0].mxu0
    %2159 = vdwg.mxu0
    %v2166 = vunpack.c.l.b16 %v2040
    %v2167 = vunpack.c.h.b16 %v2040
    %v2168 = vunpack.c.l.b16 %v2041
    %v2169 = vunpack.c.h.b16 %v2041
    %v2170 = vunpack.c.l.b16 %v2042
    %v2171 = vunpack.c.h.b16 %v2042
    %v2172 = vunpack.c.l.b16 %v2043
    %v2173 = vunpack.c.h.b16 %v2043
    %v2174 = vunpack.c.l.b16 %v2044
    %v2175 = vunpack.c.h.b16 %v2044
    %v2176 = vunpack.c.l.b16 %v2045
    %v2177 = vunpack.c.h.b16 %v2045
    %v2178 = vpack.c.b16 %v2170, %v2166
    %v2179 = vpack.c.b16 %v2171, %v2167
    %v2180 = vpack.c.b16 %v2172, %v2168
    %v2181 = vpack.c.b16 %v2173, %v2169
    %v2182 = vpack.c.b16 %v2174, %v2174
    %v2183 = vpack.c.b16 %v2175, %v2175
    %v2184 = vpack.c.b16 %v2176, %v2176
    %v2185 = vpack.c.b16 %v2177, %v2177
    %vm2190 = vcmask 162816
    %v2192 = vsel %vm2190, %v2039, 0
    %vm2194 = vcmask 1041408
    %v2196 = vsel %vm2194, %v2182, 0
    %v2199 = vsel %vm2194, %v2183, 0
    %v2202 = vsel %vm2194, %v2184, 0
    %v2205 = vsel %vm2194, %v2185, 0
    %2207 = vmatprep.subr.bf16.mxu0 %v2179
    %2208 = vmatpush1.bf16.msra.mxu0 %v2178
    %2209 = vmatprep.subr.bf16.mxu0 %v2199
    %2210 = vmatpush1.bf16.msra.mxu0 %v2196
    %2211 = vmatprep.subr.bf16.mxu0 0
    %2212 = vmatpush1.bf16.msra.mxu0 0
    %2213 = vmatprep.subr.bf16.mxu0 0
    %2214 = vmatpush1.bf16.msra.mxu0 0
    %2215 = vmatprep.subr.bf16.mxu0 0
    %2216 = vmatpush1.bf16.msra.mxu0 0
    %2217 = vmatprep.subr.bf16.mxu0 0
    %2218 = vmatpush1.bf16.msra.mxu0 0
    %2219 = vmatprep.subr.bf16.mxu0 0
    %2220 = vmatpush1.bf16.msra.mxu0 0
    %2221 = vmatprep.subr.bf16.mxu0 0
    %2222 = vmatpush1.bf16.msra.mxu0 0
    %2223 = vmatprep.subr.bf16.mxu0 0
    %2224 = vmatpush1.bf16.msra.mxu0 0
    %2225 = vmatprep.subr.bf16.mxu0 0
    %2226 = vmatpush1.bf16.msra.mxu0 0
    %2227 = vmatprep.subr.bf16.mxu0 0
    %2228 = vmatpush1.bf16.msra.mxu0 0
    %2229 = vmatprep.subr.bf16.mxu0 0
    %2230 = vmatpush1.bf16.msra.mxu0 0
    %2231 = vmatprep.subr.bf16.mxu0 0
    %2232 = vmatpush1.bf16.msra.mxu0 0
    %2233 = vmatprep.subr.bf16.mxu0 0
    %2234 = vmatpush1.bf16.msra.mxu0 0
    %2235 = vmatprep.subr.bf16.mxu0 0
    %2236 = vmatpush1.bf16.msra.mxu0 0
    %2237 = vmatprep.subr.bf16.mxu0 0
    %2238 = vmatpush1.bf16.msra.mxu0 0
    %2239 = vmatprep.mubr.bf16.mxu0 0
    %2240 = vmatmul.mubr.bf16.gmra.mrb[0].mxu0 %v2192
    %v2241 = vpop.f32.mrb[0].mxu0
    %v2242 = vadd.f32 %v2113, %v2241
    %v2243 = vpop.f32.mrb[0].mxu0
    %v2244 = vadd.f32 %v2115, %v2243
    %v2245 = vpop.f32.mrb[0].mxu0
    %v2246 = vpop.f32.mrb[0].mxu0
    %2247 = vdwg.mxu0
    %2248 = vmatprep.subr.bf16.mxu0 %v2181
    %2249 = vmatpush1.bf16.msra.mxu0 %v2180
    %2250 = vmatprep.subr.bf16.mxu0 %v2205
    %2251 = vmatpush1.bf16.msra.mxu0 %v2202
    %2252 = vmatprep.subr.bf16.mxu0 0
    %2253 = vmatpush1.bf16.msra.mxu0 0
    %2254 = vmatprep.subr.bf16.mxu0 0
    %2255 = vmatpush1.bf16.msra.mxu0 0
    %2256 = vmatprep.subr.bf16.mxu0 0
    %2257 = vmatpush1.bf16.msra.mxu0 0
    %2258 = vmatprep.subr.bf16.mxu0 0
    %2259 = vmatpush1.bf16.msra.mxu0 0
    %2260 = vmatprep.subr.bf16.mxu0 0
    %2261 = vmatpush1.bf16.msra.mxu0 0
    %2262 = vmatprep.subr.bf16.mxu0 0
    %2263 = vmatpush1.bf16.msra.mxu0 0
    %2264 = vmatprep.subr.bf16.mxu0 0
    %2265 = vmatpush1.bf16.msra.mxu0 0
    %2266 = vmatprep.subr.bf16.mxu0 0
    %2267 = vmatpush1.bf16.msra.mxu0 0
    %2268 = vmatprep.subr.bf16.mxu0 0
    %2269 = vmatpush1.bf16.msra.mxu0 0
    %2270 = vmatprep.subr.bf16.mxu0 0
    %2271 = vmatpush1.bf16.msra.mxu0 0
    %2272 = vmatprep.subr.bf16.mxu0 0
    %2273 = vmatpush1.bf16.msra.mxu0 0
    %2274 = vmatprep.subr.bf16.mxu0 0
    %2275 = vmatpush1.bf16.msra.mxu0 0
    %2276 = vmatprep.subr.bf16.mxu0 0
    %2277 = vmatpush1.bf16.msra.mxu0 0
    %2278 = vmatprep.subr.bf16.mxu0 0
    %2279 = vmatpush1.bf16.msra.mxu0 0
    %2280 = vmatprep.mubr.bf16.mxu0 0
    %2281 = vmatmul.mubr.bf16.gmra.mrb[0].mxu0 %v2192
    %v2282 = vpop.f32.mrb[0].mxu0
    %v2283 = vadd.f32 %v2154, %v2282
    %v2284 = vpop.f32.mrb[0].mxu0
    %v2285 = vadd.f32 %v2156, %v2284
    %v2286 = vpop.f32.mrb[0].mxu0
    %v2287 = vpop.f32.mrb[0].mxu0
    %2288 = vdwg.mxu0
    %v2289 = vld [vmem:[%s10] sm:$0xf]
    %v2291 = vlaneseq
    %v2292 = vshrl.u32 %v2291, 7
    %v2293 = vsub.s32 0, %v2292
    %v2294 = vrot.slane %v2289, %v2293
    %v2295 = vlaneseq
    %v2296 = vshrl.u32 %v2295, 7
    %v2297 = vsub.s32 1, %v2296
    %v2298 = vrot.slane %v2289, %v2297
    %v2299 = vlaneseq
    %v2300 = vshrl.u32 %v2299, 7
    %v2301 = vsub.s32 2, %v2300
    %v2302 = vrot.slane %v2289, %v2301
    %v2303 = vlaneseq
    %v2304 = vshrl.u32 %v2303, 7
    %v2305 = vsub.s32 3, %v2304
    %v2306 = vrot.slane %v2289, %v2305
    %v2311 = vadd.f32 %v2242, %v2294
    %v2312 = vadd.f32 %v2244, %v2298
    %v2313 = vadd.f32 %v2283, %v2302
    %v2314 = vadd.f32 %v2285, %v2306
    %v2315 = vmax.f32 %v2311, 0.0
    %v2316 = vmax.f32 %v2312, 0.0
    %v2317 = vmax.f32 %v2313, 0.0
    %v2318 = vmax.f32 %v2314, 0.0
    %v2319 = vpack.c.bf16 %v2315, %v2315
    %v2320 = vpack.c.bf16 %v2316, %v2316
    %v2321 = vpack.c.bf16 %v2317, %v2317
    %v2322 = vpack.c.bf16 %v2318, %v2318
    %v2323 = vld [vmem:[%s11] sm:$0xff]
    %v2324 = vld [vmem:[%s11 + $0x8] sm:$0xff]
    %v2325 = vld [vmem:[%s11 + $0x10] sm:$0xff]
    %v2326 = vld [vmem:[%s11 + $0x18] sm:$0xf]
    %v2327 = vld [vmem:[%s11 + $0x1c] sm:$0xff]
    %v2328 = vld [vmem:[%s11 + $0x24] sm:$0xff]
    %v2329 = vld [vmem:[%s11 + $0x2c] sm:$0xff]
    %v2330 = vld [vmem:[%s11 + $0x34] sm:$0xf]
    %v2331 = vld [vmem:[%s11 + $0x38] sm:$0xff]
    %v2332 = vld [vmem:[%s11 + $0x40] sm:$0xff]
    %v2333 = vld [vmem:[%s11 + $0x48] sm:$0xff]
    %v2334 = vld [vmem:[%s11 + $0x50] sm:$0xf]
    %v2335 = vld [vmem:[%s11 + $0x54] sm:$0xff]
    %v2336 = vld [vmem:[%s11 + $0x5c] sm:$0xff]
    %v2337 = vld [vmem:[%s11 + $0x64] sm:$0xff]
    %v2338 = vld [vmem:[%s11 + $0x6c] sm:$0xf]
    %v2339 = vld [vmem:[%s11 + $0x70] sm:$0xff]
    %v2340 = vld [vmem:[%s11 + $0x78] sm:$0xff]
    %v2341 = vld [vmem:[%s11 + $0x80] sm:$0xff]
    %v2342 = vld [vmem:[%s11 + $0x88] sm:$0xf]
    %v2343 = vld [vmem:[%s11 + $0x8c] sm:$0xff]
    %v2344 = vld [vmem:[%s11 + $0x94] sm:$0xff]
    %v2345 = vld [vmem:[%s11 + $0x9c] sm:$0xff]
    %v2346 = vld [vmem:[%s11 + $0xa4] sm:$0xf]
    %v2347 = vld [vmem:[%s11 + $0xa8] sm:$0xff]
    %v2348 = vld [vmem:[%s11 + $0xb0] sm:$0xff]
    %v2349 = vld [vmem:[%s11 + $0xb8] sm:$0xff]
    %v2350 = vld [vmem:[%s11 + $0xc0] sm:$0xf]
    %v2351 = vld [vmem:[%s11 + $0xc4] sm:$0xff]
    %v2352 = vld [vmem:[%s11 + $0xcc] sm:$0xff]
    %v2353 = vld [vmem:[%s11 + $0xd4] sm:$0xff]
    %v2354 = vld [vmem:[%s11 + $0xdc] sm:$0xf]
    %v2355 = vld [vmem:[%s11 + $0xe0] sm:$0xff]
    %v2356 = vld [vmem:[%s11 + $0xe8] sm:$0xff]
    %v2357 = vld [vmem:[%s11 + $0xf0] sm:$0xff]
    %v2358 = vld [vmem:[%s11 + $0xf8] sm:$0xf]
    %v2359 = vld [vmem:[%s11 + $0xfc] sm:$0xff]
    %v2360 = vld [vmem:[%s11 + $0x104] sm:$0xff]
    %v2361 = vld [vmem:[%s11 + $0x10c] sm:$0xff]
    %v2362 = vld [vmem:[%s11 + $0x114] sm:$0xf]
    %v2363 = vld [vmem:[%s11 + $0x118] sm:$0xff]
    %v2364 = vld [vmem:[%s11 + $0x120] sm:$0xff]
    %v2365 = vld [vmem:[%s11 + $0x128] sm:$0xff]
    %v2366 = vld [vmem:[%s11 + $0x130] sm:$0xf]
    %v2367 = vld [vmem:[%s11 + $0x134] sm:$0xff]
    %v2368 = vld [vmem:[%s11 + $0x13c] sm:$0xff]
    %v2369 = vld [vmem:[%s11 + $0x144] sm:$0xff]
    %v2370 = vld [vmem:[%s11 + $0x14c] sm:$0xf]
    %v2371 = vld [vmem:[%s11 + $0x150] sm:$0xff]
    %v2372 = vld [vmem:[%s11 + $0x158] sm:$0xff]
    %v2373 = vld [vmem:[%s11 + $0x160] sm:$0xff]
    %v2374 = vld [vmem:[%s11 + $0x168] sm:$0xf]
    %v2375 = vld [vmem:[%s11 + $0x16c] sm:$0xff]
    %v2376 = vld [vmem:[%s11 + $0x174] sm:$0xff]
    %v2377 = vld [vmem:[%s11 + $0x17c] sm:$0xff]
    %v2378 = vld [vmem:[%s11 + $0x184] sm:$0xf]
    %v2379 = vld [vmem:[%s11 + $0x188] sm:$0xff]
    %v2380 = vld [vmem:[%s11 + $0x190] sm:$0xff]
    %v2381 = vld [vmem:[%s11 + $0x198] sm:$0xff]
    %v2382 = vld [vmem:[%s11 + $0x1a0] sm:$0xf]
    %v2383 = vld [vmem:[%s11 + $0x1a4] sm:$0xff]
    %v2384 = vld [vmem:[%s11 + $0x1ac] sm:$0xff]
    %v2385 = vld [vmem:[%s11 + $0x1b4] sm:$0xff]
    %v2386 = vld [vmem:[%s11 + $0x1bc] sm:$0xf]
    %v2387 = vld [vmem:[%s11 + $0x1c0] sm:$0xff]
    %v2388 = vld [vmem:[%s11 + $0x1c8] sm:$0xff]
    %v2389 = vld [vmem:[%s11 + $0x1d0] sm:$0xff]
    %v2390 = vld [vmem:[%s11 + $0x1d8] sm:$0xf]
    %v2391 = vld [vmem:[%s11 + $0x1dc] sm:$0xff]
    %v2392 = vld [vmem:[%s11 + $0x1e4] sm:$0xff]
    %v2393 = vld [vmem:[%s11 + $0x1ec] sm:$0xff]
    %v2394 = vld [vmem:[%s11 + $0x1f4] sm:$0xf]
    %v2395 = vld [vmem:[%s11 + $0x1f8] sm:$0xff]
    %v2396 = vld [vmem:[%s11 + $0x200] sm:$0xff]
    %v2397 = vld [vmem:[%s11 + $0x208] sm:$0xff]
    %v2398 = vld [vmem:[%s11 + $0x210] sm:$0xf]
    %v2399 = vld [vmem:[%s11 + $0x214] sm:$0xff]
    %v2400 = vld [vmem:[%s11 + $0x21c] sm:$0xff]
    %v2401 = vld [vmem:[%s11 + $0x224] sm:$0xff]
    %v2402 = vld [vmem:[%s11 + $0x22c] sm:$0xf]
    %v2403 = vld [vmem:[%s11 + $0x230] sm:$0xff]
    %v2404 = vld [vmem:[%s11 + $0x238] sm:$0xff]
    %v2405 = vld [vmem:[%s11 + $0x240] sm:$0xff]
    %v2406 = vld [vmem:[%s11 + $0x248] sm:$0xf]
    %v2407 = vld [vmem:[%s11 + $0x24c] sm:$0xff]
    %v2408 = vld [vmem:[%s11 + $0x254] sm:$0xff]
    %v2409 = vld [vmem:[%s11 + $0x25c] sm:$0xff]
    %v2410 = vld [vmem:[%s11 + $0x264] sm:$0xf]
    %v2411 = vld [vmem:[%s11 + $0x268] sm:$0xff]
    %v2412 = vld [vmem:[%s11 + $0x270] sm:$0xff]
    %v2413 = vld [vmem:[%s11 + $0x278] sm:$0xff]
    %v2414 = vld [vmem:[%s11 + $0x280] sm:$0xf]
    %v2415 = vld [vmem:[%s11 + $0x284] sm:$0xff]
    %v2416 = vld [vmem:[%s11 + $0x28c] sm:$0xff]
    %v2417 = vld [vmem:[%s11 + $0x294] sm:$0xff]
    %v2418 = vld [vmem:[%s11 + $0x29c] sm:$0xf]
    %v2419 = vld [vmem:[%s11 + $0x2a0] sm:$0xff]
    %v2420 = vld [vmem:[%s11 + $0x2a8] sm:$0xff]
    %v2421 = vld [vmem:[%s11 + $0x2b0] sm:$0xff]
    %v2422 = vld [vmem:[%s11 + $0x2b8] sm:$0xf]
    %v2423 = vld [vmem:[%s11 + $0x2bc] sm:$0xff]
    %v2424 = vld [vmem:[%s11 + $0x2c4] sm:$0xff]
    %v2425 = vld [vmem:[%s11 + $0x2cc] sm:$0xff]
    %v2426 = vld [vmem:[%s11 + $0x2d4] sm:$0xf]
    %v2427 = vld [vmem:[%s11 + $0x2d8] sm:$0xff]
    %v2428 = vld [vmem:[%s11 + $0x2e0] sm:$0xff]
    %v2429 = vld [vmem:[%s11 + $0x2e8] sm:$0xff]
    %v2430 = vld [vmem:[%s11 + $0x2f0] sm:$0xf]
    %v2431 = vld [vmem:[%s11 + $0x2f4] sm:$0xff]
    %v2432 = vld [vmem:[%s11 + $0x2fc] sm:$0xff]
    %v2433 = vld [vmem:[%s11 + $0x304] sm:$0xff]
    %v2434 = vld [vmem:[%s11 + $0x30c] sm:$0xf]
    %v2435 = vld [vmem:[%s11 + $0x310] sm:$0xff]
    %v2436 = vld [vmem:[%s11 + $0x318] sm:$0xff]
    %v2437 = vld [vmem:[%s11 + $0x320] sm:$0xff]
    %v2438 = vld [vmem:[%s11 + $0x328] sm:$0xf]
    %v2439 = vld [vmem:[%s11 + $0x32c] sm:$0xff]
    %v2440 = vld [vmem:[%s11 + $0x334] sm:$0xff]
    %v2441 = vld [vmem:[%s11 + $0x33c] sm:$0xff]
    %v2442 = vld [vmem:[%s11 + $0x344] sm:$0xf]
    %v2443 = vld [vmem:[%s11 + $0x348] sm:$0xff]
    %v2444 = vld [vmem:[%s11 + $0x350] sm:$0xff]
    %v2445 = vld [vmem:[%s11 + $0x358] sm:$0xff]
    %v2446 = vld [vmem:[%s11 + $0x360] sm:$0xf]
    %v2447 = vld [vmem:[%s11 + $0x364] sm:$0xff]
    %v2448 = vld [vmem:[%s11 + $0x36c] sm:$0xff]
    %v2449 = vld [vmem:[%s11 + $0x374] sm:$0xff]
    %v2450 = vld [vmem:[%s11 + $0x37c] sm:$0xf]
    %v2451 = vld [vmem:[%s11 + $0x380] sm:$0xff]
    %v2452 = vld [vmem:[%s11 + $0x388] sm:$0xff]
    %v2453 = vld [vmem:[%s11 + $0x390] sm:$0xff]
    %v2454 = vld [vmem:[%s11 + $0x398] sm:$0xf]
    %v2455 = vld [vmem:[%s11 + $0x39c] sm:$0xff]
    %v2456 = vld [vmem:[%s11 + $0x3a4] sm:$0xff]
    %v2457 = vld [vmem:[%s11 + $0x3ac] sm:$0xff]
    %v2458 = vld [vmem:[%s11 + $0x3b4] sm:$0xf]
    %v2459 = vld [vmem:[%s11 + $0x3b8] sm:$0xff]
    %v2460 = vld [vmem:[%s11 + $0x3c0] sm:$0xff]
    %v2461 = vld [vmem:[%s11 + $0x3c8] sm:$0xff]
    %v2462 = vld [vmem:[%s11 + $0x3d0] sm:$0xf]
    %v2463 = vld [vmem:[%s11 + $0x3d4] sm:$0xff]
    %v2464 = vld [vmem:[%s11 + $0x3dc] sm:$0xff]
    %v2465 = vld [vmem:[%s11 + $0x3e4] sm:$0xff]
    %v2466 = vld [vmem:[%s11 + $0x3ec] sm:$0xf]
    %v2467 = vld [vmem:[%s11 + $0x3f0] sm:$0xff]
    %v2468 = vld [vmem:[%s11 + $0x3f8] sm:$0xff]
    %v2469 = vld [vmem:[%s11 + $0x400] sm:$0xff]
    %v2470 = vld [vmem:[%s11 + $0x408] sm:$0xf]
    %v2471 = vld [vmem:[%s11 + $0x40c] sm:$0xff]
    %v2472 = vld [vmem:[%s11 + $0x414] sm:$0xff]
    %v2473 = vld [vmem:[%s11 + $0x41c] sm:$0xff]
    %v2474 = vld [vmem:[%s11 + $0x424] sm:$0xf]
    %v2475 = vld [vmem:[%s11 + $0x428] sm:$0xff]
    %v2476 = vld [vmem:[%s11 + $0x430] sm:$0xff]
    %v2477 = vld [vmem:[%s11 + $0x438] sm:$0xff]
    %v2478 = vld [vmem:[%s11 + $0x440] sm:$0xf]
    %v2479 = vld [vmem:[%s11 + $0x444] sm:$0xff]
    %v2480 = vld [vmem:[%s11 + $0x44c] sm:$0xff]
    %v2481 = vld [vmem:[%s11 + $0x454] sm:$0xff]
    %v2482 = vld [vmem:[%s11 + $0x45c] sm:$0xf]
    %v2483 = vld [vmem:[%s11 + $0x460] sm:$0xff]
    %v2484 = vld [vmem:[%s11 + $0x468] sm:$0xff]
    %v2485 = vld [vmem:[%s11 + $0x470] sm:$0xff]
    %v2486 = vld [vmem:[%s11 + $0x478] sm:$0xf]
    %v2487 = vld [vmem:[%s11 + $0x47c] sm:$0xff]
    %v2488 = vld [vmem:[%s11 + $0x484] sm:$0xff]
    %v2489 = vld [vmem:[%s11 + $0x48c] sm:$0xff]
    %v2490 = vld [vmem:[%s11 + $0x494] sm:$0xf]
    %v2491 = vld [vmem:[%s11 + $0x498] sm:$0xff]
    %v2492 = vld [vmem:[%s11 + $0x4a0] sm:$0xff]
    %v2493 = vld [vmem:[%s11 + $0x4a8] sm:$0xff]
    %v2494 = vld [vmem:[%s11 + $0x4b0] sm:$0xf]
    %v2495 = vld [vmem:[%s11 + $0x4b4] sm:$0xff]
    %v2496 = vld [vmem:[%s11 + $0x4bc] sm:$0xff]
    %v2497 = vld [vmem:[%s11 + $0x4c4] sm:$0xff]
    %v2498 = vld [vmem:[%s11 + $0x4cc] sm:$0xf]
    %v2499 = vld [vmem:[%s11 + $0x4d0] sm:$0xff]
    %v2500 = vld [vmem:[%s11 + $0x4d8] sm:$0xff]
    %v2501 = vld [vmem:[%s11 + $0x4e0] sm:$0xff]
    %v2502 = vld [vmem:[%s11 + $0x4e8] sm:$0xf]
    %v2503 = vld [vmem:[%s11 + $0x4ec] sm:$0xff]
    %v2504 = vld [vmem:[%s11 + $0x4f4] sm:$0xff]
    %v2505 = vld [vmem:[%s11 + $0x4fc] sm:$0xff]
    %v2506 = vld [vmem:[%s11 + $0x504] sm:$0xf]
    %v2507 = vld [vmem:[%s11 + $0x508] sm:$0xff]
    %v2508 = vld [vmem:[%s11 + $0x510] sm:$0xff]
    %v2509 = vld [vmem:[%s11 + $0x518] sm:$0xff]
    %v2510 = vld [vmem:[%s11 + $0x520] sm:$0xf]
    %v2511 = vld [vmem:[%s11 + $0x524] sm:$0xff]
    %v2512 = vld [vmem:[%s11 + $0x52c] sm:$0xff]
    %v2513 = vld [vmem:[%s11 + $0x534] sm:$0xff]
    %v2514 = vld [vmem:[%s11 + $0x53c] sm:$0xf]
    %v2515 = vld [vmem:[%s11 + $0x540] sm:$0xff]
    %v2516 = vld [vmem:[%s11 + $0x548] sm:$0xff]
    %v2517 = vld [vmem:[%s11 + $0x550] sm:$0xff]
    %v2518 = vld [vmem:[%s11 + $0x558] sm:$0xf]
    %v2519 = vld [vmem:[%s11 + $0x55c] sm:$0xff]
    %v2520 = vld [vmem:[%s11 + $0x564] sm:$0xff]
    %v2521 = vld [vmem:[%s11 + $0x56c] sm:$0xff]
    %v2522 = vld [vmem:[%s11 + $0x574] sm:$0xf]
    %v2523 = vld [vmem:[%s12] sm:$0x7f]
    %v2525 = vlaneseq
    %v2526 = vshrl.u32 %v2525, 7
    %v2527 = vsub.s32 0, %v2526
    %v2528 = vrot.slane %v2523, %v2527
    %v2529 = vlaneseq
    %v2530 = vshrl.u32 %v2529, 7
    %v2531 = vsub.s32 1, %v2530
    %v2532 = vrot.slane %v2523, %v2531
    %v2533 = vlaneseq
    %v2534 = vshrl.u32 %v2533, 7
    %v2535 = vsub.s32 2, %v2534
    %v2536 = vrot.slane %v2523, %v2535
    %v2537 = vlaneseq
    %v2538 = vshrl.u32 %v2537, 7
    %v2539 = vsub.s32 3, %v2538
    %v2540 = vrot.slane %v2523, %v2539
    %v2541 = vlaneseq
    %v2542 = vshrl.u32 %v2541, 7
    %v2543 = vsub.s32 4, %v2542
    %v2544 = vrot.slane %v2523, %v2543
    %v2545 = vlaneseq
    %v2546 = vshrl.u32 %v2545, 7
    %v2547 = vsub.s32 5, %v2546
    %v2548 = vrot.slane %v2523, %v2547
    %v2549 = vlaneseq
    %v2550 = vshrl.u32 %v2549, 7
    %v2551 = vsub.s32 6, %v2550
    %v2552 = vrot.slane %v2523, %v2551
    %v2760 = vunpack.c.l.b16 %v2323
    %v2761 = vunpack.c.h.b16 %v2323
    %v2762 = vunpack.c.l.b16 %v2324
    %v2763 = vunpack.c.h.b16 %v2324
    %v2764 = vunpack.c.l.b16 %v2325
    %v2765 = vunpack.c.h.b16 %v2325
    %v2766 = vunpack.c.l.b16 %v2326
    %v2767 = vunpack.c.l.b16 %v2327
    %v2768 = vunpack.c.h.b16 %v2327
    %v2769 = vunpack.c.l.b16 %v2328
    %v2770 = vunpack.c.h.b16 %v2328
    %v2771 = vunpack.c.l.b16 %v2329
    %v2772 = vunpack.c.h.b16 %v2329
    %v2773 = vunpack.c.l.b16 %v2330
    %v2774 = vunpack.c.l.b16 %v2331
    %v2775 = vunpack.c.h.b16 %v2331
    %v2776 = vunpack.c.l.b16 %v2332
    %v2777 = vunpack.c.h.b16 %v2332
    %v2778 = vunpack.c.l.b16 %v2333
    %v2779 = vunpack.c.h.b16 %v2333
    %v2780 = vunpack.c.l.b16 %v2334
    %v2781 = vunpack.c.l.b16 %v2335
    %v2782 = vunpack.c.h.b16 %v2335
    %v2783 = vunpack.c.l.b16 %v2336
    %v2784 = vunpack.c.h.b16 %v2336
    %v2785 = vunpack.c.l.b16 %v2337
    %v2786 = vunpack.c.h.b16 %v2337
    %v2787 = vunpack.c.l.b16 %v2338
    %v2788 = vunpack.c.l.b16 %v2339
    %v2789 = vunpack.c.h.b16 %v2339
    %v2790 = vunpack.c.l.b16 %v2340
    %v2791 = vunpack.c.h.b16 %v2340
    %v2792 = vunpack.c.l.b16 %v2341
    %v2793 = vunpack.c.h.b16 %v2341
    %v2794 = vunpack.c.l.b16 %v2342
    %v2795 = vunpack.c.l.b16 %v2343
    %v2796 = vunpack.c.h.b16 %v2343
    %v2797 = vunpack.c.l.b16 %v2344
    %v2798 = vunpack.c.h.b16 %v2344
    %v2799 = vunpack.c.l.b16 %v2345
    %v2800 = vunpack.c.h.b16 %v2345
    %v2801 = vunpack.c.l.b16 %v2346
    %v2802 = vunpack.c.l.b16 %v2347
    %v2803 = vunpack.c.h.b16 %v2347
    %v2804 = vunpack.c.l.b16 %v2348
    %v2805 = vunpack.c.h.b16 %v2348
    %v2806 = vunpack.c.l.b16 %v2349
    %v2807 = vunpack.c.h.b16 %v2349
    %v2808 = vunpack.c.l.b16 %v2350
    %v2809 = vunpack.c.l.b16 %v2351
    %v2810 = vunpack.c.h.b16 %v2351
    %v2811 = vunpack.c.l.b16 %v2352
    %v2812 = vunpack.c.h.b16 %v2352
    %v2813 = vunpack.c.l.b16 %v2353
    %v2814 = vunpack.c.h.b16 %v2353
    %v2815 = vunpack.c.l.b16 %v2354
    %v2816 = vunpack.c.l.b16 %v2355
    %v2817 = vunpack.c.h.b16 %v2355
    %v2818 = vunpack.c.l.b16 %v2356
    %v2819 = vunpack.c.h.b16 %v2356
    %v2820 = vunpack.c.l.b16 %v2357
    %v2821 = vunpack.c.h.b16 %v2357
    %v2822 = vunpack.c.l.b16 %v2358
    %v2823 = vunpack.c.l.b16 %v2359
    %v2824 = vunpack.c.h.b16 %v2359
    %v2825 = vunpack.c.l.b16 %v2360
    %v2826 = vunpack.c.h.b16 %v2360
    %v2827 = vunpack.c.l.b16 %v2361
    %v2828 = vunpack.c.h.b16 %v2361
    %v2829 = vunpack.c.l.b16 %v2362
    %v2830 = vunpack.c.l.b16 %v2363
    %v2831 = vunpack.c.h.b16 %v2363
    %v2832 = vunpack.c.l.b16 %v2364
    %v2833 = vunpack.c.h.b16 %v2364
    %v2834 = vunpack.c.l.b16 %v2365
    %v2835 = vunpack.c.h.b16 %v2365
    %v2836 = vunpack.c.l.b16 %v2366
    %v2837 = vunpack.c.l.b16 %v2367
    %v2838 = vunpack.c.h.b16 %v2367
    %v2839 = vunpack.c.l.b16 %v2368
    %v2840 = vunpack.c.h.b16 %v2368
    %v2841 = vunpack.c.l.b16 %v2369
    %v2842 = vunpack.c.h.b16 %v2369
    %v2843 = vunpack.c.l.b16 %v2370
    %v2844 = vunpack.c.l.b16 %v2371
    %v2845 = vunpack.c.h.b16 %v2371
    %v2846 = vunpack.c.l.b16 %v2372
    %v2847 = vunpack.c.h.b16 %v2372
    %v2848 = vunpack.c.l.b16 %v2373
    %v2849 = vunpack.c.h.b16 %v2373
    %v2850 = vunpack.c.l.b16 %v2374
    %v2851 = vunpack.c.l.b16 %v2375
    %v2852 = vunpack.c.h.b16 %v2375
    %v2853 = vunpack.c.l.b16 %v2376
    %v2854 = vunpack.c.h.b16 %v2376
    %v2855 = vunpack.c.l.b16 %v2377
    %v2856 = vunpack.c.h.b16 %v2377
    %v2857 = vunpack.c.l.b16 %v2378
    %v2858 = vunpack.c.l.b16 %v2379
    %v2859 = vunpack.c.h.b16 %v2379
    %v2860 = vunpack.c.l.b16 %v2380
    %v2861 = vunpack.c.h.b16 %v2380
    %v2862 = vunpack.c.l.b16 %v2381
    %v2863 = vunpack.c.h.b16 %v2381
    %v2864 = vunpack.c.l.b16 %v2382
    %v2865 = vunpack.c.l.b16 %v2383
    %v2866 = vunpack.c.h.b16 %v2383
    %v2867 = vunpack.c.l.b16 %v2384
    %v2868 = vunpack.c.h.b16 %v2384
    %v2869 = vunpack.c.l.b16 %v2385
    %v2870 = vunpack.c.h.b16 %v2385
    %v2871 = vunpack.c.l.b16 %v2386
    %v2872 = vunpack.c.l.b16 %v2387
    %v2873 = vunpack.c.h.b16 %v2387
    %v2874 = vunpack.c.l.b16 %v2388
    %v2875 = vunpack.c.h.b16 %v2388
    %v2876 = vunpack.c.l.b16 %v2389
    %v2877 = vunpack.c.h.b16 %v2389
    %v2878 = vunpack.c.l.b16 %v2390
    %v2879 = vunpack.c.l.b16 %v2391
    %v2880 = vunpack.c.h.b16 %v2391
    %v2881 = vunpack.c.l.b16 %v2392
    %v2882 = vunpack.c.h.b16 %v2392
    %v2883 = vunpack.c.l.b16 %v2393
    %v2884 = vunpack.c.h.b16 %v2393
    %v2885 = vunpack.c.l.b16 %v2394
    %v2886 = vunpack.c.l.b16 %v2395
    %v2887 = vunpack.c.h.b16 %v2395
    %v2888 = vunpack.c.l.b16 %v2396
    %v2889 = vunpack.c.h.b16 %v2396
    %v2890 = vunpack.c.l.b16 %v2397
    %v2891 = vunpack.c.h.b16 %v2397
    %v2892 = vunpack.c.l.b16 %v2398
    %v2893 = vunpack.c.l.b16 %v2399
    %v2894 = vunpack.c.h.b16 %v2399
    %v2895 = vunpack.c.l.b16 %v2400
    %v2896 = vunpack.c.h.b16 %v2400
    %v2897 = vunpack.c.l.b16 %v2401
    %v2898 = vunpack.c.h.b16 %v2401
    %v2899 = vunpack.c.l.b16 %v2402
    %v2900 = vunpack.c.l.b16 %v2403
    %v2901 = vunpack.c.h.b16 %v2403
    %v2902 = vunpack.c.l.b16 %v2404
    %v2903 = vunpack.c.h.b16 %v2404
    %v2904 = vunpack.c.l.b16 %v2405
    %v2905 = vunpack.c.h.b16 %v2405
    %v2906 = vunpack.c.l.b16 %v2406
    %v2907 = vunpack.c.l.b16 %v2407
    %v2908 = vunpack.c.h.b16 %v2407
    %v2909 = vunpack.c.l.b16 %v2408
    %v2910 = vunpack.c.h.b16 %v2408
    %v2911 = vunpack.c.l.b16 %v2409
    %v2912 = vunpack.c.h.b16 %v2409
    %v2913 = vunpack.c.l.b16 %v2410
    %v2914 = vunpack.c.l.b16 %v2411
    %v2915 = vunpack.c.h.b16 %v2411
    %v2916 = vunpack.c.l.b16 %v2412
    %v2917 = vunpack.c.h.b16 %v2412
    %v2918 = vunpack.c.l.b16 %v2413
    %v2919 = vunpack.c.h.b16 %v2413
    %v2920 = vunpack.c.l.b16 %v2414
    %v2921 = vunpack.c.l.b16 %v2415
    %v2922 = vunpack.c.h.b16 %v2415
    %v2923 = vunpack.c.l.b16 %v2416
    %v2924 = vunpack.c.h.b16 %v2416
    %v2925 = vunpack.c.l.b16 %v2417
    %v2926 = vunpack.c.h.b16 %v2417
    %v2927 = vunpack.c.l.b16 %v2418
    %v2928 = vunpack.c.l.b16 %v2419
    %v2929 = vunpack.c.h.b16 %v2419
    %v2930 = vunpack.c.l.b16 %v2420
    %v2931 = vunpack.c.h.b16 %v2420
    %v2932 = vunpack.c.l.b16 %v2421
    %v2933 = vunpack.c.h.b16 %v2421
    %v2934 = vunpack.c.l.b16 %v2422
    %v2935 = vunpack.c.l.b16 %v2423
    %v2936 = vunpack.c.h.b16 %v2423
    %v2937 = vunpack.c.l.b16 %v2424
    %v2938 = vunpack.c.h.b16 %v2424
    %v2939 = vunpack.c.l.b16 %v2425
    %v2940 = vunpack.c.h.b16 %v2425
    %v2941 = vunpack.c.l.b16 %v2426
    %v2942 = vunpack.c.l.b16 %v2427
    %v2943 = vunpack.c.h.b16 %v2427
    %v2944 = vunpack.c.l.b16 %v2428
    %v2945 = vunpack.c.h.b16 %v2428
    %v2946 = vunpack.c.l.b16 %v2429
    %v2947 = vunpack.c.h.b16 %v2429
    %v2948 = vunpack.c.l.b16 %v2430
    %v2949 = vunpack.c.l.b16 %v2431
    %v2950 = vunpack.c.h.b16 %v2431
    %v2951 = vunpack.c.l.b16 %v2432
    %v2952 = vunpack.c.h.b16 %v2432
    %v2953 = vunpack.c.l.b16 %v2433
    %v2954 = vunpack.c.h.b16 %v2433
    %v2955 = vunpack.c.l.b16 %v2434
    %v2956 = vunpack.c.l.b16 %v2435
    %v2957 = vunpack.c.h.b16 %v2435
    %v2958 = vunpack.c.l.b16 %v2436
    %v2959 = vunpack.c.h.b16 %v2436
    %v2960 = vunpack.c.l.b16 %v2437
    %v2961 = vunpack.c.h.b16 %v2437
    %v2962 = vunpack.c.l.b16 %v2438
    %v2963 = vunpack.c.l.b16 %v2439
    %v2964 = vunpack.c.h.b16 %v2439
    %v2965 = vunpack.c.l.b16 %v2440
    %v2966 = vunpack.c.h.b16 %v2440
    %v2967 = vunpack.c.l.b16 %v2441
    %v2968 = vunpack.c.h.b16 %v2441
    %v2969 = vunpack.c.l.b16 %v2442
    %v2970 = vunpack.c.l.b16 %v2443
    %v2971 = vunpack.c.h.b16 %v2443
    %v2972 = vunpack.c.l.b16 %v2444
    %v2973 = vunpack.c.h.b16 %v2444
    %v2974 = vunpack.c.l.b16 %v2445
    %v2975 = vunpack.c.h.b16 %v2445
    %v2976 = vunpack.c.l.b16 %v2446
    %v2977 = vunpack.c.l.b16 %v2447
    %v2978 = vunpack.c.h.b16 %v2447
    %v2979 = vunpack.c.l.b16 %v2448
    %v2980 = vunpack.c.h.b16 %v2448
    %v2981 = vunpack.c.l.b16 %v2449
    %v2982 = vunpack.c.h.b16 %v2449
    %v2983 = vunpack.c.l.b16 %v2450
    %v2984 = vunpack.c.l.b16 %v2451
    %v2985 = vunpack.c.h.b16 %v2451
    %v2986 = vunpack.c.l.b16 %v2452
    %v2987 = vunpack.c.h.b16 %v2452
    %v2988 = vunpack.c.l.b16 %v2453
    %v2989 = vunpack.c.h.b16 %v2453
    %v2990 = vunpack.c.l.b16 %v2454
    %v2991 = vunpack.c.l.b16 %v2455
    %v2992 = vunpack.c.h.b16 %v2455
    %v2993 = vunpack.c.l.b16 %v2456
    %v2994 = vunpack.c.h.b16 %v2456
    %v2995 = vunpack.c.l.b16 %v2457
    %v2996 = vunpack.c.h.b16 %v2457
    %v2997 = vunpack.c.l.b16 %v2458
    %v2998 = vunpack.c.l.b16 %v2459
    %v2999 = vunpack.c.h.b16 %v2459
    %v3000 = vunpack.c.l.b16 %v2460
    %v3001 = vunpack.c.h.b16 %v2460
    %v3002 = vunpack.c.l.b16 %v2461
    %v3003 = vunpack.c.h.b16 %v2461
    %v3004 = vunpack.c.l.b16 %v2462
    %v3005 = vunpack.c.l.b16 %v2463
    %v3006 = vunpack.c.h.b16 %v2463
    %v3007 = vunpack.c.l.b16 %v2464
    %v3008 = vunpack.c.h.b16 %v2464
    %v3009 = vunpack.c.l.b16 %v2465
    %v3010 = vunpack.c.h.b16 %v2465
    %v3011 = vunpack.c.l.b16 %v2466
    %v3012 = vunpack.c.l.b16 %v2467
    %v3013 = vunpack.c.h.b16 %v2467
    %v3014 = vunpack.c.l.b16 %v2468
    %v3015 = vunpack.c.h.b16 %v2468
    %v3016 = vunpack.c.l.b16 %v2469
    %v3017 = vunpack.c.h.b16 %v2469
    %v3018 = vunpack.c.l.b16 %v2470
    %v3019 = vunpack.c.l.b16 %v2471
    %v3020 = vunpack.c.h.b16 %v2471
    %v3021 = vunpack.c.l.b16 %v2472
    %v3022 = vunpack.c.h.b16 %v2472
    %v3023 = vunpack.c.l.b16 %v2473
    %v3024 = vunpack.c.h.b16 %v2473
    %v3025 = vunpack.c.l.b16 %v2474
    %v3026 = vunpack.c.l.b16 %v2475
    %v3027 = vunpack.c.h.b16 %v2475
    %v3028 = vunpack.c.l.b16 %v2476
    %v3029 = vunpack.c.h.b16 %v2476
    %v3030 = vunpack.c.l.b16 %v2477
    %v3031 = vunpack.c.h.b16 %v2477
    %v3032 = vunpack.c.l.b16 %v2478
    %v3033 = vunpack.c.l.b16 %v2479
    %v3034 = vunpack.c.h.b16 %v2479
    %v3035 = vunpack.c.l.b16 %v2480
    %v3036 = vunpack.c.h.b16 %v2480
    %v3037 = vunpack.c.l.b16 %v2481
    %v3038 = vunpack.c.h.b16 %v2481
    %v3039 = vunpack.c.l.b16 %v2482
    %v3040 = vunpack.c.l.b16 %v2483
    %v3041 = vunpack.c.h.b16 %v2483
    %v3042 = vunpack.c.l.b16 %v2484
    %v3043 = vunpack.c.h.b16 %v2484
    %v3044 = vunpack.c.l.b16 %v2485
    %v3045 = vunpack.c.h.b16 %v2485
    %v3046 = vunpack.c.l.b16 %v2486
    %v3047 = vunpack.c.l.b16 %v2487
    %v3048 = vunpack.c.h.b16 %v2487
    %v3049 = vunpack.c.l.b16 %v2488
    %v3050 = vunpack.c.h.b16 %v2488
    %v3051 = vunpack.c.l.b16 %v2489
    %v3052 = vunpack.c.h.b16 %v2489
    %v3053 = vunpack.c.l.b16 %v2490
    %v3054 = vunpack.c.l.b16 %v2491
    %v3055 = vunpack.c.h.b16 %v2491
    %v3056 = vunpack.c.l.b16 %v2492
    %v3057 = vunpack.c.h.b16 %v2492
    %v3058 = vunpack.c.l.b16 %v2493
    %v3059 = vunpack.c.h.b16 %v2493
    %v3060 = vunpack.c.l.b16 %v2494
    %v3061 = vunpack.c.l.b16 %v2495
    %v3062 = vunpack.c.h.b16 %v2495
    %v3063 = vunpack.c.l.b16 %v2496
    %v3064 = vunpack.c.h.b16 %v2496
    %v3065 = vunpack.c.l.b16 %v2497
    %v3066 = vunpack.c.h.b16 %v2497
    %v3067 = vunpack.c.l.b16 %v2498
    %v3068 = vunpack.c.l.b16 %v2499
    %v3069 = vunpack.c.h.b16 %v2499
    %v3070 = vunpack.c.l.b16 %v2500
    %v3071 = vunpack.c.h.b16 %v2500
    %v3072 = vunpack.c.l.b16 %v2501
    %v3073 = vunpack.c.h.b16 %v2501
    %v3074 = vunpack.c.l.b16 %v2502
    %v3075 = vunpack.c.l.b16 %v2503
    %v3076 = vunpack.c.h.b16 %v2503
    %v3077 = vunpack.c.l.b16 %v2504
    %v3078 = vunpack.c.h.b16 %v2504
    %v3079 = vunpack.c.l.b16 %v2505
    %v3080 = vunpack.c.h.b16 %v2505
    %v3081 = vunpack.c.l.b16 %v2506
    %v3082 = vunpack.c.l.b16 %v2507
    %v3083 = vunpack.c.h.b16 %v2507
    %v3084 = vunpack.c.l.b16 %v2508
    %v3085 = vunpack.c.h.b16 %v2508
    %v3086 = vunpack.c.l.b16 %v2509
    %v3087 = vunpack.c.h.b16 %v2509
    %v3088 = vunpack.c.l.b16 %v2510
    %v3089 = vunpack.c.l.b16 %v2511
    %v3090 = vunpack.c.h.b16 %v2511
    %v3091 = vunpack.c.l.b16 %v2512
    %v3092 = vunpack.c.h.b16 %v2512
    %v3093 = vunpack.c.l.b16 %v2513
    %v3094 = vunpack.c.h.b16 %v2513
    %v3095 = vunpack.c.l.b16 %v2514
    %v3096 = vunpack.c.l.b16 %v2515
    %v3097 = vunpack.c.h.b16 %v2515
    %v3098 = vunpack.c.l.b16 %v2516
    %v3099 = vunpack.c.h.b16 %v2516
    %v3100 = vunpack.c.l.b16 %v2517
    %v3101 = vunpack.c.h.b16 %v2517
    %v3102 = vunpack.c.l.b16 %v2518
    %v3103 = vunpack.c.l.b16 %v2519
    %v3104 = vunpack.c.h.b16 %v2519
    %v3105 = vunpack.c.l.b16 %v2520
    %v3106 = vunpack.c.h.b16 %v2520
    %v3107 = vunpack.c.l.b16 %v2521
    %v3108 = vunpack.c.h.b16 %v2521
    %v3109 = vunpack.c.l.b16 %v2522
    %v3110 = vpack.c.b16 %v2767, %v2760
    %v3111 = vpack.c.b16 %v2768, %v2761
    %v3112 = vpack.c.b16 %v2769, %v2762
    %v3113 = vpack.c.b16 %v2770, %v2763
    %v3114 = vpack.c.b16 %v2771, %v2764
    %v3115 = vpack.c.b16 %v2772, %v2765
    %v3116 = vpack.c.b16 %v2773, %v2766
    %v3117 = vpack.c.b16 %v2781, %v2774
    %v3118 = vpack.c.b16 %v2782, %v2775
    %v3119 = vpack.c.b16 %v2783, %v2776
    %v3120 = vpack.c.b16 %v2784, %v2777
    %v3121 = vpack.c.b16 %v2785, %v2778
    %v3122 = vpack.c.b16 %v2786, %v2779
    %v3123 = vpack.c.b16 %v2787, %v2780
    %v3124 = vpack.c.b16 %v2795, %v2788
    %v3125 = vpack.c.b16 %v2796, %v2789
    %v3126 = vpack.c.b16 %v2797, %v2790
    %v3127 = vpack.c.b16 %v2798, %v2791
    %v3128 = vpack.c.b16 %v2799, %v2792
    %v3129 = vpack.c.b16 %v2800, %v2793
    %v3130 = vpack.c.b16 %v2801, %v2794
    %v3131 = vpack.c.b16 %v2809, %v2802
    %v3132 = vpack.c.b16 %v2810, %v2803
    %v3133 = vpack.c.b16 %v2811, %v2804
    %v3134 = vpack.c.b16 %v2812, %v2805
    %v3135 = vpack.c.b16 %v2813, %v2806
    %v3136 = vpack.c.b16 %v2814, %v2807
    %v3137 = vpack.c.b16 %v2815, %v2808
    %v3138 = vpack.c.b16 %v2823, %v2816
    %v3139 = vpack.c.b16 %v2824, %v2817
    %v3140 = vpack.c.b16 %v2825, %v2818
    %v3141 = vpack.c.b16 %v2826, %v2819
    %v3142 = vpack.c.b16 %v2827, %v2820
    %v3143 = vpack.c.b16 %v2828, %v2821
    %v3144 = vpack.c.b16 %v2829, %v2822
    %v3145 = vpack.c.b16 %v2837, %v2830
    %v3146 = vpack.c.b16 %v2838, %v2831
    %v3147 = vpack.c.b16 %v2839, %v2832
    %v3148 = vpack.c.b16 %v2840, %v2833
    %v3149 = vpack.c.b16 %v2841, %v2834
    %v3150 = vpack.c.b16 %v2842, %v2835
    %v3151 = vpack.c.b16 %v2843, %v2836
    %v3152 = vpack.c.b16 %v2851, %v2844
    %v3153 = vpack.c.b16 %v2852, %v2845
    %v3154 = vpack.c.b16 %v2853, %v2846
    %v3155 = vpack.c.b16 %v2854, %v2847
    %v3156 = vpack.c.b16 %v2855, %v2848
    %v3157 = vpack.c.b16 %v2856, %v2849
    %v3158 = vpack.c.b16 %v2857, %v2850
    %v3159 = vpack.c.b16 %v2865, %v2858
    %v3160 = vpack.c.b16 %v2866, %v2859
    %v3161 = vpack.c.b16 %v2867, %v2860
    %v3162 = vpack.c.b16 %v2868, %v2861
    %v3163 = vpack.c.b16 %v2869, %v2862
    %v3164 = vpack.c.b16 %v2870, %v2863
    %v3165 = vpack.c.b16 %v2871, %v2864
    %v3166 = vpack.c.b16 %v2879, %v2872
    %v3167 = vpack.c.b16 %v2880, %v2873
    %v3168 = vpack.c.b16 %v2881, %v2874
    %v3169 = vpack.c.b16 %v2882, %v2875
    %v3170 = vpack.c.b16 %v2883, %v2876
    %v3171 = vpack.c.b16 %v2884, %v2877
    %v3172 = vpack.c.b16 %v2885, %v2878
    %v3173 = vpack.c.b16 %v2893, %v2886
    %v3174 = vpack.c.b16 %v2894, %v2887
    %v3175 = vpack.c.b16 %v2895, %v2888
    %v3176 = vpack.c.b16 %v2896, %v2889
    %v3177 = vpack.c.b16 %v2897, %v2890
    %v3178 = vpack.c.b16 %v2898, %v2891
    %v3179 = vpack.c.b16 %v2899, %v2892
    %v3180 = vpack.c.b16 %v2907, %v2900
    %v3181 = vpack.c.b16 %v2908, %v2901
    %v3182 = vpack.c.b16 %v2909, %v2902
    %v3183 = vpack.c.b16 %v2910, %v2903
    %v3184 = vpack.c.b16 %v2911, %v2904
    %v3185 = vpack.c.b16 %v2912, %v2905
    %v3186 = vpack.c.b16 %v2913, %v2906
    %v3187 = vpack.c.b16 %v2921, %v2914
    %v3188 = vpack.c.b16 %v2922, %v2915
    %v3189 = vpack.c.b16 %v2923, %v2916
    %v3190 = vpack.c.b16 %v2924, %v2917
    %v3191 = vpack.c.b16 %v2925, %v2918
    %v3192 = vpack.c.b16 %v2926, %v2919
    %v3193 = vpack.c.b16 %v2927, %v2920
    %v3194 = vpack.c.b16 %v2935, %v2928
    %v3195 = vpack.c.b16 %v2936, %v2929
    %v3196 = vpack.c.b16 %v2937, %v2930
    %v3197 = vpack.c.b16 %v2938, %v2931
    %v3198 = vpack.c.b16 %v2939, %v2932
    %v3199 = vpack.c.b16 %v2940, %v2933
    %v3200 = vpack.c.b16 %v2941, %v2934
    %v3201 = vpack.c.b16 %v2949, %v2942
    %v3202 = vpack.c.b16 %v2950, %v2943
    %v3203 = vpack.c.b16 %v2951, %v2944
    %v3204 = vpack.c.b16 %v2952, %v2945
    %v3205 = vpack.c.b16 %v2953, %v2946
    %v3206 = vpack.c.b16 %v2954, %v2947
    %v3207 = vpack.c.b16 %v2955, %v2948
    %v3208 = vpack.c.b16 %v2963, %v2956
    %v3209 = vpack.c.b16 %v2964, %v2957
    %v3210 = vpack.c.b16 %v2965, %v2958
    %v3211 = vpack.c.b16 %v2966, %v2959
    %v3212 = vpack.c.b16 %v2967, %v2960
    %v3213 = vpack.c.b16 %v2968, %v2961
    %v3214 = vpack.c.b16 %v2969, %v2962
    %v3215 = vpack.c.b16 %v2977, %v2970
    %v3216 = vpack.c.b16 %v2978, %v2971
    %v3217 = vpack.c.b16 %v2979, %v2972
    %v3218 = vpack.c.b16 %v2980, %v2973
    %v3219 = vpack.c.b16 %v2981, %v2974
    %v3220 = vpack.c.b16 %v2982, %v2975
    %v3221 = vpack.c.b16 %v2983, %v2976
    %v3222 = vpack.c.b16 %v2991, %v2984
    %v3223 = vpack.c.b16 %v2992, %v2985
    %v3224 = vpack.c.b16 %v2993, %v2986
    %v3225 = vpack.c.b16 %v2994, %v2987
    %v3226 = vpack.c.b16 %v2995, %v2988
    %v3227 = vpack.c.b16 %v2996, %v2989
    %v3228 = vpack.c.b16 %v2997, %v2990
    %v3229 = vpack.c.b16 %v3005, %v2998
    %v3230 = vpack.c.b16 %v3006, %v2999
    %v3231 = vpack.c.b16 %v3007, %v3000
    %v3232 = vpack.c.b16 %v3008, %v3001
    %v3233 = vpack.c.b16 %v3009, %v3002
    %v3234 = vpack.c.b16 %v3010, %v3003
    %v3235 = vpack.c.b16 %v3011, %v3004
    %v3236 = vpack.c.b16 %v3019, %v3012
    %v3237 = vpack.c.b16 %v3020, %v3013
    %v3238 = vpack.c.b16 %v3021, %v3014
    %v3239 = vpack.c.b16 %v3022, %v3015
    %v3240 = vpack.c.b16 %v3023, %v3016
    %v3241 = vpack.c.b16 %v3024, %v3017
    %v3242 = vpack.c.b16 %v3025, %v3018
    %v3243 = vpack.c.b16 %v3033, %v3026
    %v3244 = vpack.c.b16 %v3034, %v3027
    %v3245 = vpack.c.b16 %v3035, %v3028
    %v3246 = vpack.c.b16 %v3036, %v3029
    %v3247 = vpack.c.b16 %v3037, %v3030
    %v3248 = vpack.c.b16 %v3038, %v3031
    %v3249 = vpack.c.b16 %v3039, %v3032
    %v3250 = vpack.c.b16 %v3047, %v3040
    %v3251 = vpack.c.b16 %v3048, %v3041
    %v3252 = vpack.c.b16 %v3049, %v3042
    %v3253 = vpack.c.b16 %v3050, %v3043
    %v3254 = vpack.c.b16 %v3051, %v3044
    %v3255 = vpack.c.b16 %v3052, %v3045
    %v3256 = vpack.c.b16 %v3053, %v3046
    %v3257 = vpack.c.b16 %v3061, %v3054
    %v3258 = vpack.c.b16 %v3062, %v3055
    %v3259 = vpack.c.b16 %v3063, %v3056
    %v3260 = vpack.c.b16 %v3064, %v3057
    %v3261 = vpack.c.b16 %v3065, %v3058
    %v3262 = vpack.c.b16 %v3066, %v3059
    %v3263 = vpack.c.b16 %v3067, %v3060
    %v3264 = vpack.c.b16 %v3075, %v3068
    %v3265 = vpack.c.b16 %v3076, %v3069
    %v3266 = vpack.c.b16 %v3077, %v3070
    %v3267 = vpack.c.b16 %v3078, %v3071
    %v3268 = vpack.c.b16 %v3079, %v3072
    %v3269 = vpack.c.b16 %v3080, %v3073
    %v3270 = vpack.c.b16 %v3081, %v3074
    %v3271 = vpack.c.b16 %v3089, %v3082
    %v3272 = vpack.c.b16 %v3090, %v3083
    %v3273 = vpack.c.b16 %v3091, %v3084
    %v3274 = vpack.c.b16 %v3092, %v3085
    %v3275 = vpack.c.b16 %v3093, %v3086
    %v3276 = vpack.c.b16 %v3094, %v3087
    %v3277 = vpack.c.b16 %v3095, %v3088
    %v3278 = vpack.c.b16 %v3103, %v3096
    %v3279 = vpack.c.b16 %v3104, %v3097
    %v3280 = vpack.c.b16 %v3105, %v3098
    %v3281 = vpack.c.b16 %v3106, %v3099
    %v3282 = vpack.c.b16 %v3107, %v3100
    %v3283 = vpack.c.b16 %v3108, %v3101
    %v3284 = vpack.c.b16 %v3109, %v3102
    %v3461 = vsel %vm1374, %v2322, 0
    %3463 = vmatprep.subr.bf16.mxu0 %v3111
    %3464 = vmatpush1.bf16.msra.mxu0 %v3110
    %3465 = vmatprep.subr.bf16.mxu0 %v3118
    %3466 = vmatpush1.bf16.msra.mxu0 %v3117
    %3467 = vmatprep.subr.bf16.mxu0 %v3125
    %3468 = vmatpush1.bf16.msra.mxu0 %v3124
    %3469 = vmatprep.subr.bf16.mxu0 %v3132
    %3470 = vmatpush1.bf16.msra.mxu0 %v3131
    %3471 = vmatprep.subr.bf16.mxu0 %v3139
    %3472 = vmatpush1.bf16.msra.mxu0 %v3138
    %3473 = vmatprep.subr.bf16.mxu0 %v3146
    %3474 = vmatpush1.bf16.msra.mxu0 %v3145
    %3475 = vmatprep.subr.bf16.mxu0 %v3153
    %3476 = vmatpush1.bf16.msra.mxu0 %v3152
    %3477 = vmatprep.subr.bf16.mxu0 %v3160
    %3478 = vmatpush1.bf16.msra.mxu0 %v3159
    %3479 = vmatprep.subr.bf16.mxu0 %v3167
    %3480 = vmatpush1.bf16.msra.mxu0 %v3166
    %3481 = vmatprep.subr.bf16.mxu0 %v3174
    %3482 = vmatpush1.bf16.msra.mxu0 %v3173
    %3483 = vmatprep.subr.bf16.mxu0 %v3181
    %3484 = vmatpush1.bf16.msra.mxu0 %v3180
    %3485 = vmatprep.subr.bf16.mxu0 %v3188
    %3486 = vmatpush1.bf16.msra.mxu0 %v3187
    %3487 = vmatprep.subr.bf16.mxu0 %v3195
    %3488 = vmatpush1.bf16.msra.mxu0 %v3194
    %3489 = vmatprep.subr.bf16.mxu0 %v3202
    %3490 = vmatpush1.bf16.msra.mxu0 %v3201
    %3491 = vmatprep.subr.bf16.mxu0 %v3209
    %3492 = vmatpush1.bf16.msra.mxu0 %v3208
    %3493 = vmatprep.subr.bf16.mxu0 %v3216
    %3494 = vmatpush1.bf16.msra.mxu0 %v3215
    %3495 = vmatprep.mubr.bf16.mxu0 %v2320
    %3496 = vmatmul.mubr.bf16.gmra.mrb[0].mxu0 %v2319
    %v3497 = vpop.f32.mrb[0].mxu0
    %v3498 = vadd.f32 %v2528, %v3497
    %v3499 = vpop.f32.mrb[0].mxu0
    %v3500 = vadd.f32 %v2532, %v3499
    %v3501 = vpop.f32.mrb[0].mxu0
    %v3502 = vpop.f32.mrb[0].mxu0
    %3503 = vdwg.mxu0
    %3504 = vmatprep.subr.bf16.mxu0 %v3223
    %3505 = vmatpush1.bf16.msra.mxu0 %v3222
    %3506 = vmatprep.subr.bf16.mxu0 %v3230
    %3507 = vmatpush1.bf16.msra.mxu0 %v3229
    %3508 = vmatprep.subr.bf16.mxu0 %v3237
    %3509 = vmatpush1.bf16.msra.mxu0 %v3236
    %3510 = vmatprep.subr.bf16.mxu0 %v3244
    %3511 = vmatpush1.bf16.msra.mxu0 %v3243
    %3512 = vmatprep.subr.bf16.mxu0 %v3251
    %3513 = vmatpush1.bf16.msra.mxu0 %v3250
    %3514 = vmatprep.subr.bf16.mxu0 %v3258
    %3515 = vmatpush1.bf16.msra.mxu0 %v3257
    %3516 = vmatprep.subr.bf16.mxu0 %v3265
    %3517 = vmatpush1.bf16.msra.mxu0 %v3264
    %3518 = vmatprep.subr.bf16.mxu0 %v3272
    %3519 = vmatpush1.bf16.msra.mxu0 %v3271
    %3520 = vmatprep.subr.bf16.mxu0 %v3279
    %3521 = vmatpush1.bf16.msra.mxu0 %v3278
    %3522 = vmatprep.subr.bf16.mxu0 0
    %3523 = vmatpush1.bf16.msra.mxu0 0
    %3524 = vmatprep.subr.bf16.mxu0 0
    %3525 = vmatpush1.bf16.msra.mxu0 0
    %3526 = vmatprep.subr.bf16.mxu0 0
    %3527 = vmatpush1.bf16.msra.mxu0 0
    %3528 = vmatprep.subr.bf16.mxu0 0
    %3529 = vmatpush1.bf16.msra.mxu0 0
    %3530 = vmatprep.subr.bf16.mxu0 0
    %3531 = vmatpush1.bf16.msra.mxu0 0
    %3532 = vmatprep.subr.bf16.mxu0 0
    %3533 = vmatpush1.bf16.msra.mxu0 0
    %3534 = vmatprep.subr.bf16.mxu0 0
    %3535 = vmatpush1.bf16.msra.mxu0 0
    %3536 = vmatprep.mubr.bf16.mxu0 %v3461
    %3537 = vmatmul.mubr.bf16.gmra.mrb[0].mxu0 %v2321
    %v3538 = vpop.f32.mrb[0].mxu0
    %v3539 = vadd.f32 %v3498, %v3538
    %v3540 = vpop.f32.mrb[0].mxu0
    %v3541 = vadd.f32 %v3500, %v3540
    %v3542 = vpop.f32.mrb[0].mxu0
    %v3543 = vpop.f32.mrb[0].mxu0
    %3544 = vdwg.mxu0
    %3545 = vmatprep.subr.bf16.mxu0 %v3113
    %3546 = vmatpush1.bf16.msra.mxu0 %v3112
    %3547 = vmatprep.subr.bf16.mxu0 %v3120
    %3548 = vmatpush1.bf16.msra.mxu0 %v3119
    %3549 = vmatprep.subr.bf16.mxu0 %v3127
    %3550 = vmatpush1.bf16.msra.mxu0 %v3126
    %3551 = vmatprep.subr.bf16.mxu0 %v3134
    %3552 = vmatpush1.bf16.msra.mxu0 %v3133
    %3553 = vmatprep.subr.bf16.mxu0 %v3141
    %3554 = vmatpush1.bf16.msra.mxu0 %v3140
    %3555 = vmatprep.subr.bf16.mxu0 %v3148
    %3556 = vmatpush1.bf16.msra.mxu0 %v3147
    %3557 = vmatprep.subr.bf16.mxu0 %v3155
    %3558 = vmatpush1.bf16.msra.mxu0 %v3154
    %3559 = vmatprep.subr.bf16.mxu0 %v3162
    %3560 = vmatpush1.bf16.msra.mxu0 %v3161
    %3561 = vmatprep.subr.bf16.mxu0 %v3169
    %3562 = vmatpush1.bf16.msra.mxu0 %v3168
    %3563 = vmatprep.subr.bf16.mxu0 %v3176
    %3564 = vmatpush1.bf16.msra.mxu0 %v3175
    %3565 = vmatprep.subr.bf16.mxu0 %v3183
    %3566 = vmatpush1.bf16.msra.mxu0 %v3182
    %3567 = vmatprep.subr.bf16.mxu0 %v3190
    %3568 = vmatpush1.bf16.msra.mxu0 %v3189
    %3569 = vmatprep.subr.bf16.mxu0 %v3197
    %3570 = vmatpush1.bf16.msra.mxu0 %v3196
    %3571 = vmatprep.subr.bf16.mxu0 %v3204
    %3572 = vmatpush1.bf16.msra.mxu0 %v3203
    %3573 = vmatprep.subr.bf16.mxu0 %v3211
    %3574 = vmatpush1.bf16.msra.mxu0 %v3210
    %3575 = vmatprep.subr.bf16.mxu0 %v3218
    %3576 = vmatpush1.bf16.msra.mxu0 %v3217
    %3577 = vmatprep.mubr.bf16.mxu0 %v2320
    %3578 = vmatmul.mubr.bf16.gmra.mrb[0].mxu0 %v2319
    %v3579 = vpop.f32.mrb[0].mxu0
    %v3580 = vadd.f32 %v2536, %v3579
    %v3581 = vpop.f32.mrb[0].mxu0
    %v3582 = vadd.f32 %v2540, %v3581
    %v3583 = vpop.f32.mrb[0].mxu0
    %v3584 = vpop.f32.mrb[0].mxu0
    %3585 = vdwg.mxu0
    %3586 = vmatprep.subr.bf16.mxu0 %v3225
    %3587 = vmatpush1.bf16.msra.mxu0 %v3224
    %3588 = vmatprep.subr.bf16.mxu0 %v3232
    %3589 = vmatpush1.bf16.msra.mxu0 %v3231
    %3590 = vmatprep.subr.bf16.mxu0 %v3239
    %3591 = vmatpush1.bf16.msra.mxu0 %v3238
    %3592 = vmatprep.subr.bf16.mxu0 %v3246
    %3593 = vmatpush1.bf16.msra.mxu0 %v3245
    %3594 = vmatprep.subr.bf16.mxu0 %v3253
    %3595 = vmatpush1.bf16.msra.mxu0 %v3252
    %3596 = vmatprep.subr.bf16.mxu0 %v3260
    %3597 = vmatpush1.bf16.msra.mxu0 %v3259
    %3598 = vmatprep.subr.bf16.mxu0 %v3267
    %3599 = vmatpush1.bf16.msra.mxu0 %v3266
    %3600 = vmatprep.subr.bf16.mxu0 %v3274
    %3601 = vmatpush1.bf16.msra.mxu0 %v3273
    %3602 = vmatprep.subr.bf16.mxu0 %v3281
    %3603 = vmatpush1.bf16.msra.mxu0 %v3280
    %3604 = vmatprep.subr.bf16.mxu0 0
    %3605 = vmatpush1.bf16.msra.mxu0 0
    %3606 = vmatprep.subr.bf16.mxu0 0
    %3607 = vmatpush1.bf16.msra.mxu0 0
    %3608 = vmatprep.subr.bf16.mxu0 0
    %3609 = vmatpush1.bf16.msra.mxu0 0
    %3610 = vmatprep.subr.bf16.mxu0 0
    %3611 = vmatpush1.bf16.msra.mxu0 0
    %3612 = vmatprep.subr.bf16.mxu0 0
    %3613 = vmatpush1.bf16.msra.mxu0 0
    %3614 = vmatprep.subr.bf16.mxu0 0
    %3615 = vmatpush1.bf16.msra.mxu0 0
    %3616 = vmatprep.subr.bf16.mxu0 0
    %3617 = vmatpush1.bf16.msra.mxu0 0
    %3618 = vmatprep.mubr.bf16.mxu0 %v3461
    %3619 = vmatmul.mubr.bf16.gmra.mrb[0].mxu0 %v2321
    %v3620 = vpop.f32.mrb[0].mxu0
    %v3621 = vadd.f32 %v3580, %v3620
    %v3622 = vpop.f32.mrb[0].mxu0
    %v3623 = vadd.f32 %v3582, %v3622
    %v3624 = vpop.f32.mrb[0].mxu0
    %v3625 = vpop.f32.mrb[0].mxu0
    %3626 = vdwg.mxu0
    %3627 = vmatprep.subr.bf16.mxu0 %v3115
    %3628 = vmatpush1.bf16.msra.mxu0 %v3114
    %3629 = vmatprep.subr.bf16.mxu0 %v3122
    %3630 = vmatpush1.bf16.msra.mxu0 %v3121
    %3631 = vmatprep.subr.bf16.mxu0 %v3129
    %3632 = vmatpush1.bf16.msra.mxu0 %v3128
    %3633 = vmatprep.subr.bf16.mxu0 %v3136
    %3634 = vmatpush1.bf16.msra.mxu0 %v3135
    %3635 = vmatprep.subr.bf16.mxu0 %v3143
    %3636 = vmatpush1.bf16.msra.mxu0 %v3142
    %3637 = vmatprep.subr.bf16.mxu0 %v3150
    %3638 = vmatpush1.bf16.msra.mxu0 %v3149
    %3639 = vmatprep.subr.bf16.mxu0 %v3157
    %3640 = vmatpush1.bf16.msra.mxu0 %v3156
    %3641 = vmatprep.subr.bf16.mxu0 %v3164
    %3642 = vmatpush1.bf16.msra.mxu0 %v3163
    %3643 = vmatprep.subr.bf16.mxu0 %v3171
    %3644 = vmatpush1.bf16.msra.mxu0 %v3170
    %3645 = vmatprep.subr.bf16.mxu0 %v3178
    %3646 = vmatpush1.bf16.msra.mxu0 %v3177
    %3647 = vmatprep.subr.bf16.mxu0 %v3185
    %3648 = vmatpush1.bf16.msra.mxu0 %v3184
    %3649 = vmatprep.subr.bf16.mxu0 %v3192
    %3650 = vmatpush1.bf16.msra.mxu0 %v3191
    %3651 = vmatprep.subr.bf16.mxu0 %v3199
    %3652 = vmatpush1.bf16.msra.mxu0 %v3198
    %3653 = vmatprep.subr.bf16.mxu0 %v3206
    %3654 = vmatpush1.bf16.msra.mxu0 %v3205
    %3655 = vmatprep.subr.bf16.mxu0 %v3213
    %3656 = vmatpush1.bf16.msra.mxu0 %v3212
    %3657 = vmatprep.subr.bf16.mxu0 %v3220
    %3658 = vmatpush1.bf16.msra.mxu0 %v3219
    %3659 = vmatprep.mubr.bf16.mxu0 %v2320
    %3660 = vmatmul.mubr.bf16.gmra.mrb[0].mxu0 %v2319
    %v3661 = vpop.f32.mrb[0].mxu0
    %v3662 = vadd.f32 %v2544, %v3661
    %v3663 = vpop.f32.mrb[0].mxu0
    %v3664 = vadd.f32 %v2548, %v3663
    %v3665 = vpop.f32.mrb[0].mxu0
    %v3666 = vpop.f32.mrb[0].mxu0
    %3667 = vdwg.mxu0
    %3668 = vmatprep.subr.bf16.mxu0 %v3227
    %3669 = vmatpush1.bf16.msra.mxu0 %v3226
    %3670 = vmatprep.subr.bf16.mxu0 %v3234
    %3671 = vmatpush1.bf16.msra.mxu0 %v3233
    %3672 = vmatprep.subr.bf16.mxu0 %v3241
    %3673 = vmatpush1.bf16.msra.mxu0 %v3240
    %3674 = vmatprep.subr.bf16.mxu0 %v3248
    %3675 = vmatpush1.bf16.msra.mxu0 %v3247
    %3676 = vmatprep.subr.bf16.mxu0 %v3255
    %3677 = vmatpush1.bf16.msra.mxu0 %v3254
    %3678 = vmatprep.subr.bf16.mxu0 %v3262
    %3679 = vmatpush1.bf16.msra.mxu0 %v3261
    %3680 = vmatprep.subr.bf16.mxu0 %v3269
    %3681 = vmatpush1.bf16.msra.mxu0 %v3268
    %3682 = vmatprep.subr.bf16.mxu0 %v3276
    %3683 = vmatpush1.bf16.msra.mxu0 %v3275
    %3684 = vmatprep.subr.bf16.mxu0 %v3283
    %3685 = vmatpush1.bf16.msra.mxu0 %v3282
    %3686 = vmatprep.subr.bf16.mxu0 0
    %3687 = vmatpush1.bf16.msra.mxu0 0
    %3688 = vmatprep.subr.bf16.mxu0 0
    %3689 = vmatpush1.bf16.msra.mxu0 0
    %3690 = vmatprep.subr.bf16.mxu0 0
    %3691 = vmatpush1.bf16.msra.mxu0 0
    %3692 = vmatprep.subr.bf16.mxu0 0
    %3693 = vmatpush1.bf16.msra.mxu0 0
    %3694 = vmatprep.subr.bf16.mxu0 0
    %3695 = vmatpush1.bf16.msra.mxu0 0
    %3696 = vmatprep.subr.bf16.mxu0 0
    %3697 = vmatpush1.bf16.msra.mxu0 0
    %3698 = vmatprep.subr.bf16.mxu0 0
    %3699 = vmatpush1.bf16.msra.mxu0 0
    %3700 = vmatprep.mubr.bf16.mxu0 %v3461
    %3701 = vmatmul.mubr.bf16.gmra.mrb[0].mxu0 %v2321
    %v3702 = vpop.f32.mrb[0].mxu0
    %v3703 = vadd.f32 %v3662, %v3702
    %v3704 = vpop.f32.mrb[0].mxu0
    %v3705 = vadd.f32 %v3664, %v3704
    %v3706 = vpop.f32.mrb[0].mxu0
    %v3707 = vpop.f32.mrb[0].mxu0
    %3708 = vdwg.mxu0
    %3709 = vmatprep.subr.bf16.mxu0 0
    %3710 = vmatpush1.bf16.msra.mxu0 %v3116
    %3711 = vmatprep.subr.bf16.mxu0 0
    %3712 = vmatpush1.bf16.msra.mxu0 %v3123
    %3713 = vmatprep.subr.bf16.mxu0 0
    %3714 = vmatpush1.bf16.msra.mxu0 %v3130
    %3715 = vmatprep.subr.bf16.mxu0 0
    %3716 = vmatpush1.bf16.msra.mxu0 %v3137
    %3717 = vmatprep.subr.bf16.mxu0 0
    %3718 = vmatpush1.bf16.msra.mxu0 %v3144
    %3719 = vmatprep.subr.bf16.mxu0 0
    %3720 = vmatpush1.bf16.msra.mxu0 %v3151
    %3721 = vmatprep.subr.bf16.mxu0 0
    %3722 = vmatpush1.bf16.msra.mxu0 %v3158
    %3723 = vmatprep.subr.bf16.mxu0 0
    %3724 = vmatpush1.bf16.msra.mxu0 %v3165
    %3725 = vmatprep.subr.bf16.mxu0 0
    %3726 = vmatpush1.bf16.msra.mxu0 %v3172
    %3727 = vmatprep.subr.bf16.mxu0 0
    %3728 = vmatpush1.bf16.msra.mxu0 %v3179
    %3729 = vmatprep.subr.bf16.mxu0 0
    %3730 = vmatpush1.bf16.msra.mxu0 %v3186
    %3731 = vmatprep.subr.bf16.mxu0 0
    %3732 = vmatpush1.bf16.msra.mxu0 %v3193
    %3733 = vmatprep.subr.bf16.mxu0 0
    %3734 = vmatpush1.bf16.msra.mxu0 %v3200
    %3735 = vmatprep.subr.bf16.mxu0 0
    %3736 = vmatpush1.bf16.msra.mxu0 %v3207
    %3737 = vmatprep.subr.bf16.mxu0 0
    %3738 = vmatpush1.bf16.msra.mxu0 %v3214
    %3739 = vmatprep.subr.bf16.mxu0 0
    %3740 = vmatpush1.bf16.msra.mxu0 %v3221
    %3741 = vmatprep.mubr.bf16.mxu0 %v2320
    %3742 = vmatmul.mubr.bf16.gmra.mrb[0].mxu0 %v2319
    %v3743 = vpop.f32.mrb[0].mxu0
    %v3744 = vadd.f32 %v2552, %v3743
    %v3745 = vpop.f32.mrb[0].mxu0
    %v3746 = vpop.f32.mrb[0].mxu0
    %v3747 = vpop.f32.mrb[0].mxu0
    %3748 = vdwg.mxu0
    %3749 = vmatprep.subr.bf16.mxu0 0
    %3750 = vmatpush1.bf16.msra.mxu0 %v3228
    %3751 = vmatprep.subr.bf16.mxu0 0
    %3752 = vmatpush1.bf16.msra.mxu0 %v3235
    %3753 = vmatprep.subr.bf16.mxu0 0
    %3754 = vmatpush1.bf16.msra.mxu0 %v3242
    %3755 = vmatprep.subr.bf16.mxu0 0
    %3756 = vmatpush1.bf16.msra.mxu0 %v3249
    %3757 = vmatprep.subr.bf16.mxu0 0
    %3758 = vmatpush1.bf16.msra.mxu0 %v3256
    %3759 = vmatprep.subr.bf16.mxu0 0
    %3760 = vmatpush1.bf16.msra.mxu0 %v3263
    %3761 = vmatprep.subr.bf16.mxu0 0
    %3762 = vmatpush1.bf16.msra.mxu0 %v3270
    %3763 = vmatprep.subr.bf16.mxu0 0
    %3764 = vmatpush1.bf16.msra.mxu0 %v3277
    %3765 = vmatprep.subr.bf16.mxu0 0
    %3766 = vmatpush1.bf16.msra.mxu0 %v3284
    %3767 = vmatprep.subr.bf16.mxu0 0
    %3768 = vmatpush1.bf16.msra.mxu0 0
    %3769 = vmatprep.subr.bf16.mxu0 0
    %3770 = vmatpush1.bf16.msra.mxu0 0
    %3771 = vmatprep.subr.bf16.mxu0 0
    %3772 = vmatpush1.bf16.msra.mxu0 0
    %3773 = vmatprep.subr.bf16.mxu0 0
    %3774 = vmatpush1.bf16.msra.mxu0 0
    %3775 = vmatprep.subr.bf16.mxu0 0
    %3776 = vmatpush1.bf16.msra.mxu0 0
    %3777 = vmatprep.subr.bf16.mxu0 0
    %3778 = vmatpush1.bf16.msra.mxu0 0
    %3779 = vmatprep.subr.bf16.mxu0 0
    %3780 = vmatpush1.bf16.msra.mxu0 0
    %3781 = vmatprep.mubr.bf16.mxu0 %v3461
    %3782 = vmatmul.mubr.bf16.gmra.mrb[0].mxu0 %v2321
    %v3783 = vpop.f32.mrb[0].mxu0
    %v3784 = vadd.f32 %v3744, %v3783
    %v3785 = vpop.f32.mrb[0].mxu0
    %v3786 = vpop.f32.mrb[0].mxu0
    %v3787 = vpop.f32.mrb[0].mxu0
    %3788 = vdwg.mxu0
    %v3789 = vsub.f32 0.0, %v3539
    %v3790 = vsub.f32 0.0, %v3541
    %v3791 = vsub.f32 0.0, %v3621
    %v3792 = vsub.f32 0.0, %v3623
    %v3793 = vsub.f32 0.0, %v3703
    %v3794 = vsub.f32 0.0, %v3705
    %v3795 = vsub.f32 0.0, %v3784
    %v3796 = vmul.f32 %v3789, 1.442695
    %v3797 = vpow.pop %v3796
    %v3798 = vmul.f32 %v3790, 1.442695
    %v3799 = vpow.pop %v3798
    %v3800 = vmul.f32 %v3791, 1.442695
    %v3801 = vpow.pop %v3800
    %v3802 = vmul.f32 %v3792, 1.442695
    %v3803 = vpow.pop %v3802
    %v3804 = vmul.f32 %v3793, 1.442695
    %v3805 = vpow.pop %v3804
    %v3806 = vmul.f32 %v3794, 1.442695
    %v3807 = vpow.pop %v3806
    %v3808 = vmul.f32 %v3795, 1.442695
    %v3809 = vpow.pop %v3808
    %v3810 = vadd.f32 %v3797, 1.0
    %v3811 = vadd.f32 %v3799, 1.0
    %v3812 = vadd.f32 %v3801, 1.0
    %v3813 = vadd.f32 %v3803, 1.0
    %v3814 = vadd.f32 %v3805, 1.0
    %v3815 = vadd.f32 %v3807, 1.0
    %v3816 = vadd.f32 %v3809, 1.0
    %v3817 = vrcp.pop %v3810
    %v3818 = vrcp.pop %v3811
    %v3819 = vrcp.pop %v3812
    %v3820 = vrcp.pop %v3813
    %v3821 = vrcp.pop %v3814
    %v3822 = vrcp.pop %v3815
    %v3823 = vrcp.pop %v3816
    %v3824 = vpack.c.bf16 %v3817, %v3817
    %v3825 = vpack.c.bf16 %v3818, %v3818
    %v3826 = vpack.c.bf16 %v3819, %v3819
    %v3827 = vpack.c.bf16 %v3820, %v3820
    %v3828 = vpack.c.bf16 %v3821, %v3821
    %v3829 = vpack.c.bf16 %v3822, %v3822
    %v3830 = vpack.c.bf16 %v3823, %v3823
    %v3838 = vunpack.c.l.b16 %v3824
    %v3839 = vunpack.c.l.b16 %v3825
    %v3840 = vunpack.c.l.b16 %v3826
    %v3841 = vunpack.c.l.b16 %v3827
    %v3842 = vunpack.c.l.b16 %v3828
    %v3843 = vunpack.c.l.b16 %v3829
    %v3844 = vunpack.c.l.b16 %v3830
    %v3845 = vpack.c.b16 %v3839, %v3838
    %v3846 = vpack.c.b16 %v3841, %v3840
    %v3847 = vpack.c.b16 %v3843, %v3842
    %v3848 = vpack.c.b16 %v3844, %v3844
    %3853 = vst [vmem:[#allocation2] sm:$0xff] %v3845
    %3854 = vst [vmem:[#allocation2 + $0x8] sm:$0xff] %v3846
    %3855 = vst [vmem:[#allocation2 + $0x10] sm:$0xff] %v3847
    %vm3856 = vcmask 125952
    %3857 = vst.msk [vmem:[#allocation2 + $0x18] sm:$0xf] %vm3856, %v3848
    %3858 = vst [vmem:[%s14] sm:$0xff] %v2025
    // Predicated region
    $region54: #{vae_forward.1} parent=1 // pred_check
      _
    $region55: #{vae_forward.1} parent=1 // pred_check_branch
      %3860 = sbr.rel (0) target = $region57
    $region56: #{vae_forward.1} parent=1 // pred_region
      %s3862 = ssub.s32 448, 448
      %3863 = vsyncadd [#allocation3], %s3862
      %s3865 = sshll.u32 [#allocation2], 4
      %s3866 = int_to_ptr.vmem [resolvable:$true] %s3865
      %3868 = dma.vmem_to_hbm [thread:$0]  %s3866, 448, %s13, [#allocation3]
    $region57: #{vae_forward.1} parent=1 // pred_fallthru
      _
    // Predicated region
    $region58: #{vae_forward.1} parent=1 // pred_check
      _
    $region59: #{vae_forward.1} parent=1 // pred_check_branch
      %3870 = sbr.rel (0) target = $region61
    $region60: #{vae_forward.1} parent=1 // pred_region
      _
    $region61: #{vae_forward.1} parent=1 // pred_fallthru
      _
    // Predicated region
    $region62: #{vae_forward.1} parent=1 // pred_check
      _
    $region63: #{vae_forward.1} parent=1 // pred_check_branch
      %3872 = sbr.rel (0) target = $region65
    $region64: #{vae_forward.1} parent=1 // pred_region
      %3873 = dma.done [#allocation3], 448
    $region65: #{vae_forward.1} parent=1 // pred_fallthru
      _
    // Predicated region
    $region66: #{vae_forward.1} parent=1 // pred_check
      _
    $region67: #{vae_forward.1} parent=1 // pred_check_branch
      %3875 = sbr.rel (0) target = $region69
    $region68: #{vae_forward.1} parent=1 // pred_region
      _
    $region69: #{vae_forward.1} parent=1 // pred_fallthru
      _
    %3876 = vsyncpa [#allocation3], 1

</llo_original>
